<compile_context>
chip_gen: v7x
topology: tpu7x:2x2x1
jax: 0.10.0
libtpu: 0.0.40
codegen_flags: <defaults>
</compile_context>

<pallas_src>
import functools

import jax
import jax.numpy as jnp
from jax.experimental import pallas as pl
from jax.experimental.pallas import tpu as pltpu

NEG_SLOPE = 0.2   # args.model == 'dgcnn' -> LeakyReLU(negative_slope=0.2)
BN_EPS = 1e-5


def _round_up(x, m):
    return (x + m - 1) // m * m


def _leaky(y, neg_slope=NEG_SLOPE):
    return jnp.where(y > 0, y, neg_slope * y)


# ------------------------------- fused kernel --------------------------------

def _transform_kernel(x_ref, w1_ref, s1_ref, w2_ref, s2_ref, w3_ref, s3_ref,
                      fw1_ref, fs1_ref, fw2_ref, fs2_ref, fw3_ref, fs3_ref,
                      o_ref, acc_ref, *, k, nt, n_valid, n_padded):
    """conv1->conv2->kmax->conv3 with running N-max; fc head on the last point tile."""
    j = pl.program_id(1)

    @pl.when(j == 0)
    def _():
        acc_ref[...] = jnp.full(acc_ref.shape, -jnp.inf, acc_ref.dtype)

    # conv1 -> leaky -> conv2 -> leaky over the nt*k neighbor rows of this tile.
    x = x_ref[0]                                                          # (nt*k, cin) bf16
    h = jnp.dot(x, w1_ref[...], preferred_element_type=jnp.float32)
    h = _leaky(h + s1_ref[...])
    h = jnp.dot(h.astype(jnp.bfloat16), w2_ref[...], preferred_element_type=jnp.float32)
    h = _leaky(h + s2_ref[...])                                           # (nt*k, 128) f32
    # max over the k neighbors of each point.
    h = jnp.max(h.reshape(nt, k, h.shape[-1]), axis=1)                    # (nt, 128) f32
    # conv3 -> leaky.
    h = jnp.dot(h.astype(jnp.bfloat16), w3_ref[...], preferred_element_type=jnp.float32)
    h = _leaky(h + s3_ref[...])                                           # (nt, 1024) f32
    if n_padded != n_valid:
        # Mask padded points so they never win the max (compiled only when padding exists).
        row = jax.lax.broadcasted_iota(jnp.int32, (nt, 1), 0) + j * nt
        h = jnp.where(row < n_valid, h, -jnp.inf)
    acc_ref[...] = jnp.maximum(acc_ref[...], jnp.max(h, axis=0, keepdims=True))

    @pl.when(j == pl.num_programs(1) - 1)
    def _():
        # fc1 -> leaky -> fc2 -> leaky -> fc3 (+identity folded into fs3) on the global feature.
        # Broadcast the single feature row to 8 sublanes (min MXU tile) -> rows are identical.
        f = jnp.broadcast_to(acc_ref[...], (8, acc_ref.shape[-1])).astype(jnp.bfloat16)
        f = jnp.dot(f, fw1_ref[...], preferred_element_type=jnp.float32)
        f = _leaky(f + fs1_ref[...])
        f = jnp.dot(f.astype(jnp.bfloat16), fw2_ref[...], preferred_element_type=jnp.float32)
        f = _leaky(f + fs2_ref[...])
        f = jnp.dot(f.astype(jnp.bfloat16), fw3_ref[...], preferred_element_type=jnp.float32)
        o_ref[0] = (f + fs3_ref[...]).astype(o_ref.dtype)                 # (8, 128)


def transform_net_fused(x_rows, params, *, k, nt=128):
    """x_rows: [B, N*k, cin_pad] bf16 -> [B, 128] f32 (fc3 output, lane-dense padded)."""
    B, M, cin = x_rows.shape
    N = M // k
    w1, s1 = params["conv1"]["w"], params["conv1"]["shift"]
    w2, s2 = params["conv2"]["w"], params["conv2"]["shift"]
    w3, s3 = params["conv3"]["w"], params["conv3"]["shift"]
    fw1, fs1 = params["fc1"]["w"], params["fc1"]["shift"]
    fw2, fs2 = params["fc2"]["w"], params["fc2"]["shift"]
    fw3, fs3 = params["fc3"]["w"], params["fc3"]["shift"]
    c1, c2, c3 = w1.shape[1], w2.shape[1], w3.shape[1]
    f1, f2, f3 = fw1.shape[1], fw2.shape[1], fw3.shape[1]

    nt = min(nt, _round_up(N, 8))
    n_p = _round_up(N, nt)
    if n_p != N:
        # Pad whole points (all k neighbor rows); padded points are masked to -inf in-kernel.
        x_rows = jnp.pad(x_rows.reshape(B, N, k, cin),
                         ((0, 0), (0, n_p - N), (0, 0), (0, 0))).reshape(B, n_p * k, cin)

    const = lambda b, j: (0, 0)
    out = pl.pallas_call(
        functools.partial(_transform_kernel, k=k, nt=nt, n_valid=N, n_padded=n_p),
        out_shape=jax.ShapeDtypeStruct((B, 8, f3), jnp.float32),
        grid_spec=pltpu.PrefetchScalarGridSpec(
            num_scalar_prefetch=0,
            grid=(B, n_p // nt),
            in_specs=[
                pl.BlockSpec((1, nt * k, cin), lambda b, j: (b, j, 0)),
                pl.BlockSpec((cin, c1), const), pl.BlockSpec((1, c1), const),
                pl.BlockSpec((c1, c2), const), pl.BlockSpec((1, c2), const),
                pl.BlockSpec((c2, c3), const), pl.BlockSpec((1, c3), const),
                pl.BlockSpec((c3, f1), const), pl.BlockSpec((1, f1), const),
                pl.BlockSpec((f1, f2), const), pl.BlockSpec((1, f2), const),
                pl.BlockSpec((f2, f3), const), pl.BlockSpec((1, f3), const),
            ],
            out_specs=pl.BlockSpec((1, 8, f3), lambda b, j: (b, 0, 0)),
            scratch_shapes=[pltpu.VMEM((1, c3), jnp.float32)],
        ),
        compiler_params=pltpu.CompilerParams(
            dimension_semantics=("parallel", "arbitrary")),
    )(x_rows, w1, s1, w2, s2, w3, s3, fw1, fs1, fw2, fs2, fw3, fs3)
    return out[:, 0, :]


# ------------------------- parameter construction ----------------------------

def _bn_params(key, ch):
    k1, k2, k3, k4 = jax.random.split(key, 4)
    gamma = 1.0 + 0.1 * jax.random.normal(k1, (ch,), jnp.float32)
    beta = 0.1 * jax.random.normal(k2, (ch,), jnp.float32)
    mean = 0.1 * jax.random.normal(k3, (ch,), jnp.float32)
    var = 1.0 + 0.1 * jnp.abs(jax.random.normal(k4, (ch,), jnp.float32))
    return gamma, beta, mean, var


def _layer(key, cin, cout, *, use_bias, use_bn, cin_pad=None, cout_pad=None, extra_shift=None):
    kw, kb, kbn = jax.random.split(key, 3)
    w = jax.random.normal(kw, (cin, cout), jnp.float32) / jnp.sqrt(float(cin))
    bias = (jax.random.normal(kb, (cout,), jnp.float32) / jnp.sqrt(float(cin))
            if use_bias else jnp.zeros((cout,), jnp.float32))
    if use_bn:
        gamma, beta, mean, var = _bn_params(kbn, cout)
        scale = gamma / jnp.sqrt(var + BN_EPS)
        w = w * scale[None, :]                      # fold BN scale into the weight
        shift = (bias - mean) * scale + beta        # folded bias/BN shift
    else:
        shift = bias
    if extra_shift is not None:
        shift = shift + extra_shift
    cin_pad = cin_pad or cin
    cout_pad = cout_pad or cout
    w = jnp.pad(w, ((0, cin_pad - cin), (0, cout_pad - cout)))
    shift = jnp.pad(shift, (0, cout_pad - cout))
    return {"w": w.astype(jnp.bfloat16), "shift": shift[None, :].astype(jnp.float32)}


def init_params(key, in_ch=6, K_out=3):
    ks = jax.random.split(key, 6)
    in_ch_pad = _round_up(in_ch, 8)               # conv1 Cin 6 -> 8 (sublane-friendly)
    out_pad = _round_up(K_out * K_out, 128)       # fc3 Cout 9 -> 128 (lane-dense store)
    iden = jnp.eye(K_out, dtype=jnp.float32).reshape(-1)
    # dgcnn: conv biases False, fc1 bias False; fc2/fc3 bias True (PyTorch defaults).
    return {
        "conv1": _layer(ks[0], in_ch, 64, use_bias=False, use_bn=True, cin_pad=in_ch_pad),
        "conv2": _layer(ks[1], 64, 128, use_bias=False, use_bn=True),
        "conv3": _layer(ks[2], 128, 1024, use_bias=False, use_bn=True),
        "fc1":   _layer(ks[3], 1024, 512, use_bias=False, use_bn=True),
        "fc2":   _layer(ks[4], 512, 256, use_bias=True, use_bn=True),
        # Identity matrix (iden) added after fc3 is folded into fc3's shift.
        "fc3":   _layer(ks[5], 256, K_out * K_out, use_bias=True, use_bn=False,
                        cout_pad=out_pad, extra_shift=iden),
    }


# ------------------------------- forward pass ---------------------------------

def transform_net_forward(x_nchw, params, K_out=3):
    B, C_in, N, k = x_nchw.shape
    cin_pad = params["conv1"]["w"].shape[0]
    rows = jnp.transpose(x_nchw, (0, 2, 3, 1)).reshape(B, N * k, C_in)
    rows = jnp.pad(rows, ((0, 0), (0, 0), (0, cin_pad - C_in))).astype(jnp.bfloat16)
    out = transform_net_fused(rows, params, k=k)                           # [B, 128] f32
    return out[:, :K_out * K_out].reshape(B, K_out, K_out)


# ----------------------------- pure-JAX reference ------------------------------

def _ref_layer(x, p, neg_slope):
    y = jnp.dot(x, p["w"], preferred_element_type=jnp.float32) + p["shift"]
    if neg_slope is not None:
        y = jnp.where(y > 0, y, neg_slope * y)
    return y


def reference_forward(x_nchw, params, K_out=3):
    B, C_in, N, k = x_nchw.shape
    cin_pad = params["conv1"]["w"].shape[0]
    h = jnp.transpose(x_nchw, (0, 2, 3, 1)).reshape(B * N * k, C_in)
    h = jnp.pad(h, ((0, 0), (0, cin_pad - C_in))).astype(jnp.bfloat16)
    h = _ref_layer(h, params["conv1"], NEG_SLOPE).astype(jnp.bfloat16)
    h = _ref_layer(h, params["conv2"], NEG_SLOPE)
    h = jnp.max(h.reshape(B * N, k, -1), axis=1).astype(jnp.bfloat16)
    h = _ref_layer(h, params["conv3"], NEG_SLOPE)
    h = jnp.max(h.reshape(B, N, -1), axis=1).astype(jnp.bfloat16)
    h = _ref_layer(h, params["fc1"], NEG_SLOPE).astype(jnp.bfloat16)
    h = _ref_layer(h, params["fc2"], NEG_SLOPE).astype(jnp.bfloat16)
    h = _ref_layer(h, params["fc3"], None)
    return h[:, :K_out * K_out].reshape(B, K_out, K_out)


# ------------------------------------ main -------------------------------------

if __name__ == "__main__":
    key = jax.random.PRNGKey(0)
    kx, kp = jax.random.split(key)

    B, C_in, N, k = 2, 6, 16, 8          # edge-feature input (B, in_ch, num_points, k)
    x = jax.random.normal(kx, (B, C_in, N, k), jnp.float32)
    params = init_params(kp, in_ch=C_in, K_out=3)

    out = jax.block_until_ready(transform_net_forward(x, params))
    assert out.shape == (B, 3, 3) and out.dtype == jnp.float32

    ref = reference_forward(x, params)
    assert jnp.allclose(out, ref, rtol=1e-2, atol=1e-2), \
        f"max abs err {float(jnp.max(jnp.abs(out - ref)))}"

    print("KERNEL_OK")
</pallas_src>

<mosaic_0001>
module attributes {stable_mosaic.version = 11 : i64} {
  func.func @_transform_kernel(%arg0: i32, %arg1: i32, %arg2: memref<1x128x8xbf16, #tpu.memory_space<vmem>>, %arg3: memref<8x64xbf16, #tpu.memory_space<vmem>>, %arg4: memref<1x64xf32, #tpu.memory_space<vmem>>, %arg5: memref<64x128xbf16, #tpu.memory_space<vmem>>, %arg6: memref<1x128xf32, #tpu.memory_space<vmem>>, %arg7: memref<128x1024xbf16, #tpu.memory_space<vmem>>, %arg8: memref<1x1024xf32, #tpu.memory_space<vmem>>, %arg9: memref<1024x512xbf16, #tpu.memory_space<vmem>>, %arg10: memref<1x512xf32, #tpu.memory_space<vmem>>, %arg11: memref<512x256xbf16, #tpu.memory_space<vmem>>, %arg12: memref<1x256xf32, #tpu.memory_space<vmem>>, %arg13: memref<256x128xbf16, #tpu.memory_space<vmem>>, %arg14: memref<1x128xf32, #tpu.memory_space<vmem>>, %arg15: memref<1x8x128xf32, #tpu.memory_space<vmem>>, %arg16: memref<1x1024xf32, #tpu.memory_space<vmem>>) attributes {dimension_semantics = [#tpu.dimension_semantics<parallel>, #tpu.dimension_semantics<arbitrary>], iteration_bounds = array<i64: 2, 1>, scalar_prefetch = 0 : i64, scratch_operands = 1 : i64, tpu.core_type = #tpu.core_type<tc>, window_params = [{transform_indices = @transform_0, window_bounds = array<i64: 1, 128, 8>}, {pipeline_mode = #tpu.pipeline_mode<synchronous>, transform_indices = @transform_1, window_bounds = array<i64: 8, 64>}, {pipeline_mode = #tpu.pipeline_mode<synchronous>, transform_indices = @transform_2, window_bounds = array<i64: 1, 64>}, {pipeline_mode = #tpu.pipeline_mode<synchronous>, transform_indices = @transform_3, window_bounds = array<i64: 64, 128>}, {pipeline_mode = #tpu.pipeline_mode<synchronous>, transform_indices = @transform_4, window_bounds = array<i64: 1, 128>}, {pipeline_mode = #tpu.pipeline_mode<synchronous>, transform_indices = @transform_5, window_bounds = array<i64: 128, 1024>}, {pipeline_mode = #tpu.pipeline_mode<synchronous>, transform_indices = @transform_6, window_bounds = array<i64: 1, 1024>}, {pipeline_mode = #tpu.pipeline_mode<synchronous>, transform_indices = @transform_7, window_bounds = array<i64: 1024, 512>}, {pipeline_mode = #tpu.pipeline_mode<synchronous>, transform_indices = @transform_8, window_bounds = array<i64: 1, 512>}, {pipeline_mode = #tpu.pipeline_mode<synchronous>, transform_indices = @transform_9, window_bounds = array<i64: 512, 256>}, {pipeline_mode = #tpu.pipeline_mode<synchronous>, transform_indices = @transform_10, window_bounds = array<i64: 1, 256>}, {pipeline_mode = #tpu.pipeline_mode<synchronous>, transform_indices = @transform_11, window_bounds = array<i64: 256, 128>}, {pipeline_mode = #tpu.pipeline_mode<synchronous>, transform_indices = @transform_12, window_bounds = array<i64: 1, 128>}, {transform_indices = @transform_13, window_bounds = array<i64: 1, 8, 128>}]} {
    %c0_i32 = arith.constant 0 : i32
    %0 = arith.cmpi eq, %arg1, %c0_i32 : i32
    %1 = arith.extui %0 : i1 to i32
    %c0_i32_0 = arith.constant 0 : i32
    %2 = arith.cmpi ne, %1, %c0_i32_0 : i32
    scf.if %2 {
      %cst_31 = arith.constant 0xFF800000 : f32
      %47 = vector.broadcast %cst_31 : f32 to vector<1x1024xf32>
      %c0_32 = arith.constant 0 : index
      %c0_33 = arith.constant 0 : index
      %48 = vector.load %arg16[%c0_32, %c0_33] : memref<1x1024xf32, #tpu.memory_space<vmem>>, vector<1x1024xf32>
      tpu.vector_store %arg16[%c0_32, %c0_33], %47 {strides = array<i32>} : memref<1x1024xf32, #tpu.memory_space<vmem>>, vector<1x1024xf32>,
    } else {
    }
    %c0 = arith.constant 0 : index
    %c0_1 = arith.constant 0 : index
    %c0_2 = arith.constant 0 : index
    %3 = vector.load %arg2[%c0, %c0_1, %c0_2] : memref<1x128x8xbf16, #tpu.memory_space<vmem>>, vector<1x128x8xbf16>
    %4 = vector.shape_cast %3 : vector<1x128x8xbf16> to vector<128x8xbf16>
    %c0_3 = arith.constant 0 : index
    %c0_4 = arith.constant 0 : index
    %5 = vector.load %arg3[%c0_3, %c0_4] : memref<8x64xbf16, #tpu.memory_space<vmem>>, vector<8x64xbf16>
    %cst = arith.constant dense<0.000000e+00> : vector<128x64xf32>
    %6 = tpu.matmul %4, %5, %cst {dimension_numbers = #tpu.dot_dimension_numbers<[1], [0], [0], [1], [0, 0, 1, 1], [], []>} : vector<128x8xbf16>, vector<8x64xbf16>, vector<128x64xf32> -> vector<128x64xf32>
    %c0_5 = arith.constant 0 : index
    %c0_6 = arith.constant 0 : index
    %7 = vector.load %arg4[%c0_5, %c0_6] : memref<1x64xf32, #tpu.memory_space<vmem>>, vector<1x64xf32>
    %8 = vector.broadcast %7 : vector<1x64xf32> to vector<128x64xf32>
    %9 = arith.addf %6, %8 : vector<128x64xf32>
    %cst_7 = arith.constant 0.000000e+00 : f32
    %10 = vector.broadcast %cst_7 : f32 to vector<128x64xf32>
    %11 = arith.cmpf ogt, %9, %10 : vector<128x64xf32>
    %cst_8 = arith.constant 2.000000e-01 : f32
    %12 = vector.broadcast %cst_8 : f32 to vector<128x64xf32>
    %13 = arith.mulf %12, %9 : vector<128x64xf32>
    %14 = arith.select %11, %9, %13 : vector<128x64xi1>, vector<128x64xf32>
    %15 = arith.truncf %14 : vector<128x64xf32> to vector<128x64xbf16>
    %c0_9 = arith.constant 0 : index
    %c0_10 = arith.constant 0 : index
    %16 = vector.load %arg5[%c0_9, %c0_10] : memref<64x128xbf16, #tpu.memory_space<vmem>>, vector<64x128xbf16>
    %cst_11 = arith.constant dense<0.000000e+00> : vector<128x128xf32>
    %17 = tpu.matmul %15, %16, %cst_11 {dimension_numbers = #tpu.dot_dimension_numbers<[1], [0], [0], [1], [0, 0, 1, 1], [], []>} : vector<128x64xbf16>, vector<64x128xbf16>, vector<128x128xf32> -> vector<128x128xf32>
    %c0_12 = arith.constant 0 : index
    %c0_13 = arith.constant 0 : index
    %18 = vector.load %arg6[%c0_12, %c0_13] : memref<1x128xf32, #tpu.memory_space<vmem>>, vector<1x128xf32>
    %19 = vector.broadcast %18 : vector<1x128xf32> to vector<128x128xf32>
    %20 = arith.addf %17, %19 : vector<128x128xf32>
    %cst_14 = arith.constant 0.000000e+00 : f32
    %21 = vector.broadcast %cst_14 : f32 to vector<128x128xf32>
    %22 = arith.cmpf ogt, %20, %21 : vector<128x128xf32>
    %cst_15 = arith.constant 2.000000e-01 : f32
    %23 = vector.broadcast %cst_15 : f32 to vector<128x128xf32>
    %24 = arith.mulf %23, %20 : vector<128x128xf32>
    %25 = arith.select %22, %20, %24 : vector<128x128xi1>, vector<128x128xf32>
    %26 = vector.shape_cast %25 : vector<128x128xf32> to vector<16x8x128xf32>
    %cst_16 = arith.constant dense<0xFF800000> : vector<16x128xf32>
    %27 = vector.multi_reduction <maximumf>, %26, %cst_16 [1] : vector<16x8x128xf32> to vector<16x128xf32>
    %28 = arith.truncf %27 : vector<16x128xf32> to vector<16x128xbf16>
    %c0_17 = arith.constant 0 : index
    %c0_18 = arith.constant 0 : index
    %29 = vector.load %arg7[%c0_17, %c0_18] : memref<128x1024xbf16, #tpu.memory_space<vmem>>, vector<128x1024xbf16>
    %cst_19 = arith.constant dense<0.000000e+00> : vector<16x1024xf32>
    %30 = tpu.matmul %28, %29, %cst_19 {dimension_numbers = #tpu.dot_dimension_numbers<[1], [0], [0], [1], [0, 0, 1, 1], [], []>} : vector<16x128xbf16>, vector<128x1024xbf16>, vector<16x1024xf32> -> vector<16x1024xf32>
    %c0_20 = arith.constant 0 : index
    %c0_21 = arith.constant 0 : index
    %31 = vector.load %arg8[%c0_20, %c0_21] : memref<1x1024xf32, #tpu.memory_space<vmem>>, vector<1x1024xf32>
    %32 = vector.broadcast %31 : vector<1x1024xf32> to vector<16x1024xf32>
    %33 = arith.addf %30, %32 : vector<16x1024xf32>
    %cst_22 = arith.constant 0.000000e+00 : f32
    %34 = vector.broadcast %cst_22 : f32 to vector<16x1024xf32>
    %35 = arith.cmpf ogt, %33, %34 : vector<16x1024xf32>
    %cst_23 = arith.constant 2.000000e-01 : f32
    %36 = vector.broadcast %cst_23 : f32 to vector<16x1024xf32>
    %37 = arith.mulf %36, %33 : vector<16x1024xf32>
    %38 = arith.select %35, %33, %37 : vector<16x1024xi1>, vector<16x1024xf32>
    %c0_24 = arith.constant 0 : index
    %c0_25 = arith.constant 0 : index
    %39 = vector.load %arg16[%c0_24, %c0_25] : memref<1x1024xf32, #tpu.memory_space<vmem>>, vector<1x1024xf32>
    %cst_26 = arith.constant dense<0xFF800000> : vector<1024xf32>
    %40 = vector.multi_reduction <maximumf>, %38, %cst_26 [0] : vector<16x1024xf32> to vector<1024xf32>
    %41 = vector.shape_cast %40 : vector<1024xf32> to vector<1x1024xf32>
    %42 = arith.maximumf %39, %41 : vector<1x1024xf32>
    %c0_27 = arith.constant 0 : index
    %c0_28 = arith.constant 0 : index
    %43 = vector.load %arg16[%c0_27, %c0_28] : memref<1x1024xf32, #tpu.memory_space<vmem>>, vector<1x1024xf32>
    tpu.vector_store %arg16[%c0_27, %c0_28], %42 {strides = array<i32>} : memref<1x1024xf32, #tpu.memory_space<vmem>>, vector<1x1024xf32>,
    %c0_i32_29 = arith.constant 0 : i32
    %44 = arith.cmpi eq, %arg1, %c0_i32_29 : i32
    %45 = arith.extui %44 : i1 to i32
    %c0_i32_30 = arith.constant 0 : i32
    %46 = arith.cmpi ne, %45, %c0_i32_30 : i32
    scf.if %46 {
      %c0_31 = arith.constant 0 : index
      %c0_32 = arith.constant 0 : index
      %47 = vector.load %arg16[%c0_31, %c0_32] : memref<1x1024xf32, #tpu.memory_space<vmem>>, vector<1x1024xf32>
      %48 = vector.shape_cast %47 : vector<1x1024xf32> to vector<1x1024xf32>
      %49 = vector.broadcast %48 : vector<1x1024xf32> to vector<8x1024xf32>
      %50 = arith.truncf %49 : vector<8x1024xf32> to vector<8x1024xbf16>
      %c0_33 = arith.constant 0 : index
      %c0_34 = arith.constant 0 : index
      %51 = vector.load %arg9[%c0_33, %c0_34] : memref<1024x512xbf16, #tpu.memory_space<vmem>>, vector<1024x512xbf16>
      %cst_35 = arith.constant dense<0.000000e+00> : vector<8x512xf32>
      %52 = tpu.matmul %50, %51, %cst_35 {dimension_numbers = #tpu.dot_dimension_numbers<[1], [0], [0], [1], [0, 0, 1, 1], [], []>} : vector<8x1024xbf16>, vector<1024x512xbf16>, vector<8x512xf32> -> vector<8x512xf32>
      %c0_36 = arith.constant 0 : index
      %c0_37 = arith.constant 0 : index
      %53 = vector.load %arg10[%c0_36, %c0_37] : memref<1x512xf32, #tpu.memory_space<vmem>>, vector<1x512xf32>
      %54 = vector.broadcast %53 : vector<1x512xf32> to vector<8x512xf32>
      %55 = arith.addf %52, %54 : vector<8x512xf32>
      %cst_38 = arith.constant 0.000000e+00 : f32
      %56 = vector.broadcast %cst_38 : f32 to vector<8x512xf32>
      %57 = arith.cmpf ogt, %55, %56 : vector<8x512xf32>
      %cst_39 = arith.constant 2.000000e-01 : f32
      %58 = vector.broadcast %cst_39 : f32 to vector<8x512xf32>
      %59 = arith.mulf %58, %55 : vector<8x512xf32>
      %60 = arith.select %57, %55, %59 : vector<8x512xi1>, vector<8x512xf32>
      %61 = arith.truncf %60 : vector<8x512xf32> to vector<8x512xbf16>
      %c0_40 = arith.constant 0 : index
      %c0_41 = arith.constant 0 : index
      %62 = vector.load %arg11[%c0_40, %c0_41] : memref<512x256xbf16, #tpu.memory_space<vmem>>, vector<512x256xbf16>
      %cst_42 = arith.constant dense<0.000000e+00> : vector<8x256xf32>
      %63 = tpu.matmul %61, %62, %cst_42 {dimension_numbers = #tpu.dot_dimension_numbers<[1], [0], [0], [1], [0, 0, 1, 1], [], []>} : vector<8x512xbf16>, vector<512x256xbf16>, vector<8x256xf32> -> vector<8x256xf32>
      %c0_43 = arith.constant 0 : index
      %c0_44 = arith.constant 0 : index
      %64 = vector.load %arg12[%c0_43, %c0_44] : memref<1x256xf32, #tpu.memory_space<vmem>>, vector<1x256xf32>
      %65 = vector.broadcast %64 : vector<1x256xf32> to vector<8x256xf32>
      %66 = arith.addf %63, %65 : vector<8x256xf32>
      %cst_45 = arith.constant 0.000000e+00 : f32
      %67 = vector.broadcast %cst_45 : f32 to vector<8x256xf32>
      %68 = arith.cmpf ogt, %66, %67 : vector<8x256xf32>
      %cst_46 = arith.constant 2.000000e-01 : f32
      %69 = vector.broadcast %cst_46 : f32 to vector<8x256xf32>
      %70 = arith.mulf %69, %66 : vector<8x256xf32>
      %71 = arith.select %68, %66, %70 : vector<8x256xi1>, vector<8x256xf32>
      %72 = arith.truncf %71 : vector<8x256xf32> to vector<8x256xbf16>
      %c0_47 = arith.constant 0 : index
      %c0_48 = arith.constant 0 : index
      %73 = vector.load %arg13[%c0_47, %c0_48] : memref<256x128xbf16, #tpu.memory_space<vmem>>, vector<256x128xbf16>
      %cst_49 = arith.constant dense<0.000000e+00> : vector<8x128xf32>
      %74 = tpu.matmul %72, %73, %cst_49 {dimension_numbers = #tpu.dot_dimension_numbers<[1], [0], [0], [1], [0, 0, 1, 1], [], []>} : vector<8x256xbf16>, vector<256x128xbf16>, vector<8x128xf32> -> vector<8x128xf32>
      %c0_50 = arith.constant 0 : index
      %c0_51 = arith.constant 0 : index
      %75 = vector.load %arg14[%c0_50, %c0_51] : memref<1x128xf32, #tpu.memory_space<vmem>>, vector<1x128xf32>
      %76 = vector.broadcast %75 : vector<1x128xf32> to vector<8x128xf32>
      %77 = arith.addf %74, %76 : vector<8x128xf32>
      %c0_52 = arith.constant 0 : index
      %c0_53 = arith.constant 0 : index
      %c0_54 = arith.constant 0 : index
      %78 = vector.load %arg15[%c0_52, %c0_53, %c0_54] : memref<1x8x128xf32, #tpu.memory_space<vmem>>, vector<1x8x128xf32>
      %79 = vector.shape_cast %78 : vector<1x8x128xf32> to vector<8x128xf32>
      %80 = vector.shape_cast %77 : vector<8x128xf32> to vector<1x8x128xf32>
      tpu.vector_store %arg15[%c0_52, %c0_53, %c0_54], %80 {strides = array<i32>} : memref<1x8x128xf32, #tpu.memory_space<vmem>>, vector<1x8x128xf32>,
    } else {
    }
    return
  }
  func.func @transform_0(%arg0: i32, %arg1: i32) -> (i32, i32, i32) {
    %c0_i32 = arith.constant 0 : i32
    %c0_i32_0 = arith.constant 0 : i32
    return %arg0, %arg1, %c0_i32 : i32, i32, i32
  }
  func.func @transform_1(%arg0: i32, %arg1: i32) -> (i32, i32) {
    %c0_i32 = arith.constant 0 : i32
    %c0_i32_0 = arith.constant 0 : i32
    %c0_i32_1 = arith.constant 0 : i32
    return %c0_i32, %c0_i32_0 : i32, i32
  }
  func.func @transform_2(%arg0: i32, %arg1: i32) -> (i32, i32) {
    %c0_i32 = arith.constant 0 : i32
    %c0_i32_0 = arith.constant 0 : i32
    %c0_i32_1 = arith.constant 0 : i32
    return %c0_i32, %c0_i32_0 : i32, i32
  }
  func.func @transform_3(%arg0: i32, %arg1: i32) -> (i32, i32) {
    %c0_i32 = arith.constant 0 : i32
    %c0_i32_0 = arith.constant 0 : i32
    %c0_i32_1 = arith.constant 0 : i32
    return %c0_i32, %c0_i32_0 : i32, i32
  }
  func.func @transform_4(%arg0: i32, %arg1: i32) -> (i32, i32) {
    %c0_i32 = arith.constant 0 : i32
    %c0_i32_0 = arith.constant 0 : i32
    %c0_i32_1 = arith.constant 0 : i32
    return %c0_i32, %c0_i32_0 : i32, i32
  }
  func.func @transform_5(%arg0: i32, %arg1: i32) -> (i32, i32) {
    %c0_i32 = arith.constant 0 : i32
    %c0_i32_0 = arith.constant 0 : i32
    %c0_i32_1 = arith.constant 0 : i32
    return %c0_i32, %c0_i32_0 : i32, i32
  }
  func.func @transform_6(%arg0: i32, %arg1: i32) -> (i32, i32) {
    %c0_i32 = arith.constant 0 : i32
    %c0_i32_0 = arith.constant 0 : i32
    %c0_i32_1 = arith.constant 0 : i32
    return %c0_i32, %c0_i32_0 : i32, i32
  }
  func.func @transform_7(%arg0: i32, %arg1: i32) -> (i32, i32) {
    %c0_i32 = arith.constant 0 : i32
    %c0_i32_0 = arith.constant 0 : i32
    %c0_i32_1 = arith.constant 0 : i32
    return %c0_i32, %c0_i32_0 : i32, i32
  }
  func.func @transform_8(%arg0: i32, %arg1: i32) -> (i32, i32) {
    %c0_i32 = arith.constant 0 : i32
    %c0_i32_0 = arith.constant 0 : i32
    %c0_i32_1 = arith.constant 0 : i32
    return %c0_i32, %c0_i32_0 : i32, i32
  }
  func.func @transform_9(%arg0: i32, %arg1: i32) -> (i32, i32) {
    %c0_i32 = arith.constant 0 : i32
    %c0_i32_0 = arith.constant 0 : i32
    %c0_i32_1 = arith.constant 0 : i32
    return %c0_i32, %c0_i32_0 : i32, i32
  }
  func.func @transform_10(%arg0: i32, %arg1: i32) -> (i32, i32) {
    %c0_i32 = arith.constant 0 : i32
    %c0_i32_0 = arith.constant 0 : i32
    %c0_i32_1 = arith.constant 0 : i32
    return %c0_i32, %c0_i32_0 : i32, i32
  }
  func.func @transform_11(%arg0: i32, %arg1: i32) -> (i32, i32) {
    %c0_i32 = arith.constant 0 : i32
    %c0_i32_0 = arith.constant 0 : i32
    %c0_i32_1 = arith.constant 0 : i32
    return %c0_i32, %c0_i32_0 : i32, i32
  }
  func.func @transform_12(%arg0: i32, %arg1: i32) -> (i32, i32) {
    %c0_i32 = arith.constant 0 : i32
    %c0_i32_0 = arith.constant 0 : i32
    %c0_i32_1 = arith.constant 0 : i32
    return %c0_i32, %c0_i32_0 : i32, i32
  }
  func.func @transform_13(%arg0: i32, %arg1: i32) -> (i32, i32, i32) {
    %c0_i32 = arith.constant 0 : i32
    %c0_i32_0 = arith.constant 0 : i32
    %c0_i32_1 = arith.constant 0 : i32
    return %arg0, %c0_i32, %c0_i32_0 : i32, i32, i32
  }
}

</mosaic_0001>

<llo_original>
// kernel: tpu_custom_call.1
$region0: #{tpu_custom_call.1}
  #allocation0 [shape = 'u32[]', space=smem, size = 0x4, offset = 0x4, fixed_abs, tag = 'smem constant byte address 0x4 - core index']
  #allocation1 [shape = 'u32[144,128]{1,0:T(1,128)}', space=vmem, size = 0x12000, scoped, tag = 'internal scratch']
  #allocation2 [shape = 'f32[1,1024]{1,0:T(1,128)}', space=vmem, size = 0x1000, scoped, tag = 'scratch operand']
  %s0 = inlined_call_operand.vmem [shape: bf16[2,128,8], index: 0, kind: input, shape index: {}]
  %s1 = inlined_call_operand.vmem [shape: bf16[8,64], index: 1, kind: input, shape index: {}]
  %s2 = inlined_call_operand.vmem [shape: f32[1,64], index: 2, kind: input, shape index: {}]
  %s3 = inlined_call_operand.vmem [shape: bf16[64,128], index: 3, kind: input, shape index: {}]
  %s4 = inlined_call_operand.hbm [shape: f32[1,128], index: 4, kind: input, shape index: {}]
  %s5 = inlined_call_operand.hbm [shape: bf16[128,1024], index: 5, kind: input, shape index: {}]
  %s6 = inlined_call_operand.vmem [shape: f32[1,1024], index: 6, kind: input, shape index: {}]
  %s7 = inlined_call_operand.hbm [shape: bf16[1024,512], index: 7, kind: input, shape index: {}]
  %s8 = inlined_call_operand.vmem [shape: f32[1,512], index: 8, kind: input, shape index: {}]
  %s9 = inlined_call_operand.hbm [shape: bf16[512,256], index: 9, kind: input, shape index: {}]
  %s10 = inlined_call_operand.hbm [shape: f32[1,256], index: 10, kind: input, shape index: {}]
  %s11 = inlined_call_operand.vmem [shape: bf16[256,128], index: 11, kind: input, shape index: {}]
  %s12 = inlined_call_operand.vmem [shape: f32[1,128], index: 12, kind: input, shape index: {}]
  %s13 = inlined_call_operand.hbm [shape: f32[2,8,128], index: 13, kind: output, shape index: {}]
  %s14 = sld [smem:[#allocation0]]
  $region113: #{tpu_custom_call.1} parent=0
    _
  %s16 = ssub.s32 1, %s14
  %s17 = scalar_select 0, %s16, %s14
  $region1: #{tpu_custom_call.1} parent=0
    #allocation3 [shape = 'u8[512]{0}', space=vmem, size = 0x400, scoped, tag = 'input window, operand 4, single buffered']
    #allocation4 [shape = 's32[2]{0}', space=sflag, size = 0x8, scoped, tag = 'scoped memory for tpu_custom_call.1']
    #allocation5 [shape = 's32[2]{0}', space=sflag, size = 0x8, scoped, tag = 'scoped memory for tpu_custom_call.1']
    #allocation6 [shape = 'u8[262144]{0}', space=vmem, size = 0x40000, scoped, tag = 'input window, operand 5, single buffered']
    #allocation7 [shape = 's32[1]{0}', space=sflag, size = 0x4, scoped, tag = 'scoped memory for tpu_custom_call.1']
    #allocation8 [shape = 'u8[1048576]{0}', space=vmem, size = 0x100000, scoped, tag = 'input window, operand 7, single buffered']
    #allocation9 [shape = 'u8[262144]{0}', space=vmem, size = 0x40000, scoped, tag = 'input window, operand 9, single buffered']
    #allocation10 [shape = 's32[1]{0}', space=sflag, size = 0x4, scoped, tag = 'scoped memory for tpu_custom_call.1']
    #allocation11 [shape = 'u8[1024]{0}', space=vmem, size = 0x400, scoped, tag = 'input window, operand 10, single buffered']
    #allocation12 [shape = 'u8[8192]{0}', space=vmem, size = 0x2000, scoped, tag = 'output window, operand 0']
    %18 = vsyncpa [#allocation4], 0
    %19 = vsyncpa [#allocation7], 0
    %20 = vsyncpa [#allocation10], 0
    %21 = vsyncpa [#allocation5], 0
    %s22 = scalar_lea.sflag [#allocation5], 1
    %23 = vsyncpa %s22, 0
    loop: start=0, step=1, limit=4
    $region2: #{tpu_custom_call.1} parent=1 // loop_pre_header
      _
    $region3: #{tpu_custom_call.1} parent=1 // loop_header
      %s25 = sphi 0, %s29
      %p26 = scmp.ge.s32.totalorder %s25, 4
      %s32 = sphi 0, %s44
      %s33 = sphi 0, %s40
      %s34 = sphi 0, %s32
      %s35 = sphi 0, %s33
      %s36 = sphi 0, %s34
      %s37 = sphi 0, %s35
      %s49 = sphi 0, %s51
      %s52 = sphi 0, %s49
      %s53 = sphi 0, %s52
      %s69 = sphi 0, %s53
      %s73 = sphi 0, %s73
      %s75 = sphi 0, %s73
      %s76 = sphi 0, %s75
      %s90 = sphi 0, %s76
      %s94 = sphi 0, %s94
      %s96 = sphi 0, %s94
      %s97 = sphi 0, %s96
      %s111 = sphi 0, %s97
      %s115 = sphi 0, %s115
      %s117 = sphi 0, %s115
      %s118 = sphi 0, %s117
      %s132 = sphi 0, %s118
      %s136 = sphi 0, %s136
      %s138 = sphi 0, %s136
      %s139 = sphi 0, %s138
      %s153 = sphi 0, %s139
      %s157 = sphi 0, %s157
      %s159 = sphi 0, %s157
      %s160 = sphi 0, %s159
      %s174 = sphi 0, %s160
      %s178 = sphi 0, %s178
      %s180 = sphi 0, %s178
      %s181 = sphi 0, %s180
      %s195 = sphi 0, %s181
      %s199 = sphi 0, %s199
      %s201 = sphi 0, %s199
      %s202 = sphi 0, %s201
      %s216 = sphi 0, %s202
      %s220 = sphi 0, %s220
      %s222 = sphi 0, %s220
      %s223 = sphi 0, %s222
      %s237 = sphi 0, %s223
      %s241 = sphi 0, %s241
      %s243 = sphi 0, %s241
      %s244 = sphi 0, %s243
      %s258 = sphi 0, %s244
      %s262 = sphi 0, %s262
      %s264 = sphi 0, %s262
      %s265 = sphi 0, %s264
      %s279 = sphi 0, %s265
      %s283 = sphi 0, %s283
      %s285 = sphi 0, %s283
      %s286 = sphi 0, %s285
      %s300 = sphi 0, %s286
      %s304 = sphi 0, %s304
      %s306 = sphi 0, %s304
      %s307 = sphi 0, %s306
      %s321 = sphi 0, %s307
      %s327 = sphi 0, %s329
      %s330 = sphi 0, %s327
      %s331 = sphi 0, %s330
      %s347 = sphi 0, %s331
    $region4: #{tpu_custom_call.1} parent=1 // loop_header_branch
      %28 = sbr.rel (%p26) target = $region8
    $region5: #{tpu_custom_call.1} parent=1 // loop_body
      %s30 = ssub.s32 %s25, 1
      %s31 = ssub.s32 %s25, 2
      %s38 = sadd.s32 1, %s33
      %p39 = scmp.ge.s32.totalorder %s38, 1
      %s40 = scalar_select %p39, 0, %s38
      %s41 = sadd.s32 1, %s32
      %s42 = scalar_select %p39, %s41, %s32
      %p43 = scmp.ge.s32.totalorder %s42, 2
      %s44 = scalar_select %p43, 0, %s42
      %s45 = ssub.s32 %s32, %s44
      %s46 = ssub.s32 %s33, %s40
      %s47 = sor.u32 %s45, %s46
      %p48 = scmp.eq.s32.totalorder %s47, 0
      %s50 = sadd.s32 %s49, 1
      %s51 = scalar_select %p48, %s49, %s50
      %p54 = pneg %p48
      %p55 = scmp.eq.s32.totalorder %s25, 1
      %p56 = por %p54, %p55
      %p57 = scmp.ne.s32.totalorder %s49, %s52
      %p58 = scmp.eq.s32.totalorder %s25, 0
      %p59 = por %p57, %p58
      %p60 = scmp.ne.s32.totalorder %s49, %s52
      %p61 = scmp.eq.s32.totalorder %s30, 1
      %p62 = por %p60, %p61
      %p63 = scmp.ne.s32.totalorder %s52, %s53
      %p64 = scmp.eq.s32.totalorder %s30, 0
      %p65 = por %p63, %p64
      %p66 = scmp.ne.s32.totalorder %s52, %s53
      %p67 = scmp.eq.s32.totalorder %s31, 1
      %p68 = por %p66, %p67
      %p70 = scmp.ne.s32.totalorder %s53, %s69
      %p71 = scmp.eq.s32.totalorder %s31, 0
      %p72 = por %p70, %p71
      %s74 = sadd.s32 %s73, 1
      %p77 = scmp.eq.s32.totalorder %s25, 1
      %p78 = scmp.ne.s32.totalorder %s73, %s75
      %p79 = scmp.eq.s32.totalorder %s25, 0
      %p80 = por %p78, %p79
      %p81 = scmp.ne.s32.totalorder %s73, %s75
      %p82 = scmp.eq.s32.totalorder %s30, 1
      %p83 = por %p81, %p82
      %p84 = scmp.ne.s32.totalorder %s75, %s76
      %p85 = scmp.eq.s32.totalorder %s30, 0
      %p86 = por %p84, %p85
      %p87 = scmp.ne.s32.totalorder %s75, %s76
      %p88 = scmp.eq.s32.totalorder %s31, 1
      %p89 = por %p87, %p88
      %p91 = scmp.ne.s32.totalorder %s76, %s90
      %p92 = scmp.eq.s32.totalorder %s31, 0
      %p93 = por %p91, %p92
      %s95 = sadd.s32 %s94, 1
      %p98 = scmp.eq.s32.totalorder %s25, 1
      %p99 = scmp.ne.s32.totalorder %s94, %s96
      %p100 = scmp.eq.s32.totalorder %s25, 0
      %p101 = por %p99, %p100
      %p102 = scmp.ne.s32.totalorder %s94, %s96
      %p103 = scmp.eq.s32.totalorder %s30, 1
      %p104 = por %p102, %p103
      %p105 = scmp.ne.s32.totalorder %s96, %s97
      %p106 = scmp.eq.s32.totalorder %s30, 0
      %p107 = por %p105, %p106
      %p108 = scmp.ne.s32.totalorder %s96, %s97
      %p109 = scmp.eq.s32.totalorder %s31, 1
      %p110 = por %p108, %p109
      %p112 = scmp.ne.s32.totalorder %s97, %s111
      %p113 = scmp.eq.s32.totalorder %s31, 0
      %p114 = por %p112, %p113
      %s116 = sadd.s32 %s115, 1
      %p119 = scmp.eq.s32.totalorder %s25, 1
      %p120 = scmp.ne.s32.totalorder %s115, %s117
      %p121 = scmp.eq.s32.totalorder %s25, 0
      %p122 = por %p120, %p121
      %p123 = scmp.ne.s32.totalorder %s115, %s117
      %p124 = scmp.eq.s32.totalorder %s30, 1
      %p125 = por %p123, %p124
      %p126 = scmp.ne.s32.totalorder %s117, %s118
      %p127 = scmp.eq.s32.totalorder %s30, 0
      %p128 = por %p126, %p127
      %p129 = scmp.ne.s32.totalorder %s117, %s118
      %p130 = scmp.eq.s32.totalorder %s31, 1
      %p131 = por %p129, %p130
      %p133 = scmp.ne.s32.totalorder %s118, %s132
      %p134 = scmp.eq.s32.totalorder %s31, 0
      %p135 = por %p133, %p134
      %s137 = sadd.s32 %s136, 1
      %p140 = scmp.eq.s32.totalorder %s25, 1
      %p141 = scmp.ne.s32.totalorder %s136, %s138
      %p142 = scmp.eq.s32.totalorder %s25, 0
      %p143 = por %p141, %p142
      %p144 = scmp.ne.s32.totalorder %s136, %s138
      %p145 = scmp.eq.s32.totalorder %s30, 1
      %p146 = por %p144, %p145
      %p147 = scmp.ne.s32.totalorder %s138, %s139
      %p148 = scmp.eq.s32.totalorder %s30, 0
      %p149 = por %p147, %p148
      %p150 = scmp.ne.s32.totalorder %s138, %s139
      %p151 = scmp.eq.s32.totalorder %s31, 1
      %p152 = por %p150, %p151
      %p154 = scmp.ne.s32.totalorder %s139, %s153
      %p155 = scmp.eq.s32.totalorder %s31, 0
      %p156 = por %p154, %p155
      %s158 = sadd.s32 %s157, 1
      %p161 = scmp.eq.s32.totalorder %s25, 1
      %p162 = scmp.ne.s32.totalorder %s157, %s159
      %p163 = scmp.eq.s32.totalorder %s25, 0
      %p164 = por %p162, %p163
      %p165 = scmp.ne.s32.totalorder %s157, %s159
      %p166 = scmp.eq.s32.totalorder %s30, 1
      %p167 = por %p165, %p166
      %p168 = scmp.ne.s32.totalorder %s159, %s160
      %p169 = scmp.eq.s32.totalorder %s30, 0
      %p170 = por %p168, %p169
      %p171 = scmp.ne.s32.totalorder %s159, %s160
      %p172 = scmp.eq.s32.totalorder %s31, 1
      %p173 = por %p171, %p172
      %p175 = scmp.ne.s32.totalorder %s160, %s174
      %p176 = scmp.eq.s32.totalorder %s31, 0
      %p177 = por %p175, %p176
      %s179 = sadd.s32 %s178, 1
      %p182 = scmp.eq.s32.totalorder %s25, 1
      %p183 = scmp.ne.s32.totalorder %s178, %s180
      %p184 = scmp.eq.s32.totalorder %s25, 0
      %p185 = por %p183, %p184
      %p186 = scmp.ne.s32.totalorder %s178, %s180
      %p187 = scmp.eq.s32.totalorder %s30, 1
      %p188 = por %p186, %p187
      %p189 = scmp.ne.s32.totalorder %s180, %s181
      %p190 = scmp.eq.s32.totalorder %s30, 0
      %p191 = por %p189, %p190
      %p192 = scmp.ne.s32.totalorder %s180, %s181
      %p193 = scmp.eq.s32.totalorder %s31, 1
      %p194 = por %p192, %p193
      %p196 = scmp.ne.s32.totalorder %s181, %s195
      %p197 = scmp.eq.s32.totalorder %s31, 0
      %p198 = por %p196, %p197
      %s200 = sadd.s32 %s199, 1
      %p203 = scmp.eq.s32.totalorder %s25, 1
      %p204 = scmp.ne.s32.totalorder %s199, %s201
      %p205 = scmp.eq.s32.totalorder %s25, 0
      %p206 = por %p204, %p205
      %p207 = scmp.ne.s32.totalorder %s199, %s201
      %p208 = scmp.eq.s32.totalorder %s30, 1
      %p209 = por %p207, %p208
      %p210 = scmp.ne.s32.totalorder %s201, %s202
      %p211 = scmp.eq.s32.totalorder %s30, 0
      %p212 = por %p210, %p211
      %p213 = scmp.ne.s32.totalorder %s201, %s202
      %p214 = scmp.eq.s32.totalorder %s31, 1
      %p215 = por %p213, %p214
      %p217 = scmp.ne.s32.totalorder %s202, %s216
      %p218 = scmp.eq.s32.totalorder %s31, 0
      %p219 = por %p217, %p218
      %s221 = sadd.s32 %s220, 1
      %p224 = scmp.eq.s32.totalorder %s25, 1
      %p225 = scmp.ne.s32.totalorder %s220, %s222
      %p226 = scmp.eq.s32.totalorder %s25, 0
      %p227 = por %p225, %p226
      %p228 = scmp.ne.s32.totalorder %s220, %s222
      %p229 = scmp.eq.s32.totalorder %s30, 1
      %p230 = por %p228, %p229
      %p231 = scmp.ne.s32.totalorder %s222, %s223
      %p232 = scmp.eq.s32.totalorder %s30, 0
      %p233 = por %p231, %p232
      %p234 = scmp.ne.s32.totalorder %s222, %s223
      %p235 = scmp.eq.s32.totalorder %s31, 1
      %p236 = por %p234, %p235
      %p238 = scmp.ne.s32.totalorder %s223, %s237
      %p239 = scmp.eq.s32.totalorder %s31, 0
      %p240 = por %p238, %p239
      %s242 = sadd.s32 %s241, 1
      %p245 = scmp.eq.s32.totalorder %s25, 1
      %p246 = scmp.ne.s32.totalorder %s241, %s243
      %p247 = scmp.eq.s32.totalorder %s25, 0
      %p248 = por %p246, %p247
      %p249 = scmp.ne.s32.totalorder %s241, %s243
      %p250 = scmp.eq.s32.totalorder %s30, 1
      %p251 = por %p249, %p250
      %p252 = scmp.ne.s32.totalorder %s243, %s244
      %p253 = scmp.eq.s32.totalorder %s30, 0
      %p254 = por %p252, %p253
      %p255 = scmp.ne.s32.totalorder %s243, %s244
      %p256 = scmp.eq.s32.totalorder %s31, 1
      %p257 = por %p255, %p256
      %p259 = scmp.ne.s32.totalorder %s244, %s258
      %p260 = scmp.eq.s32.totalorder %s31, 0
      %p261 = por %p259, %p260
      %s263 = sadd.s32 %s262, 1
      %p266 = scmp.eq.s32.totalorder %s25, 1
      %p267 = scmp.ne.s32.totalorder %s262, %s264
      %p268 = scmp.eq.s32.totalorder %s25, 0
      %p269 = por %p267, %p268
      %p270 = scmp.ne.s32.totalorder %s262, %s264
      %p271 = scmp.eq.s32.totalorder %s30, 1
      %p272 = por %p270, %p271
      %p273 = scmp.ne.s32.totalorder %s264, %s265
      %p274 = scmp.eq.s32.totalorder %s30, 0
      %p275 = por %p273, %p274
      %p276 = scmp.ne.s32.totalorder %s264, %s265
      %p277 = scmp.eq.s32.totalorder %s31, 1
      %p278 = por %p276, %p277
      %p280 = scmp.ne.s32.totalorder %s265, %s279
      %p281 = scmp.eq.s32.totalorder %s31, 0
      %p282 = por %p280, %p281
      %s284 = sadd.s32 %s283, 1
      %p287 = scmp.eq.s32.totalorder %s25, 1
      %p288 = scmp.ne.s32.totalorder %s283, %s285
      %p289 = scmp.eq.s32.totalorder %s25, 0
      %p290 = por %p288, %p289
      %p291 = scmp.ne.s32.totalorder %s283, %s285
      %p292 = scmp.eq.s32.totalorder %s30, 1
      %p293 = por %p291, %p292
      %p294 = scmp.ne.s32.totalorder %s285, %s286
      %p295 = scmp.eq.s32.totalorder %s30, 0
      %p296 = por %p294, %p295
      %p297 = scmp.ne.s32.totalorder %s285, %s286
      %p298 = scmp.eq.s32.totalorder %s31, 1
      %p299 = por %p297, %p298
      %p301 = scmp.ne.s32.totalorder %s286, %s300
      %p302 = scmp.eq.s32.totalorder %s31, 0
      %p303 = por %p301, %p302
      %s305 = sadd.s32 %s304, 1
      %p308 = scmp.eq.s32.totalorder %s25, 1
      %p309 = scmp.ne.s32.totalorder %s304, %s306
      %p310 = scmp.eq.s32.totalorder %s25, 0
      %p311 = por %p309, %p310
      %p312 = scmp.ne.s32.totalorder %s304, %s306
      %p313 = scmp.eq.s32.totalorder %s30, 1
      %p314 = por %p312, %p313
      %p315 = scmp.ne.s32.totalorder %s306, %s307
      %p316 = scmp.eq.s32.totalorder %s30, 0
      %p317 = por %p315, %p316
      %p318 = scmp.ne.s32.totalorder %s306, %s307
      %p319 = scmp.eq.s32.totalorder %s31, 1
      %p320 = por %p318, %p319
      %p322 = scmp.ne.s32.totalorder %s307, %s321
      %p323 = scmp.eq.s32.totalorder %s31, 0
      %p324 = por %p322, %p323
      %s325 = ssub.s32 %s32, %s44
      %p326 = scmp.eq.s32.totalorder %s325, 0
      %s328 = sadd.s32 %s327, 1
      %s329 = scalar_select %p326, %s327, %s328
      %p332 = pneg %p326
      %p333 = scmp.eq.s32.totalorder %s25, 1
      %p334 = por %p332, %p333
      %p335 = scmp.ne.s32.totalorder %s327, %s330
      %p336 = scmp.eq.s32.totalorder %s25, 0
      %p337 = por %p335, %p336
      %p338 = scmp.ne.s32.totalorder %s327, %s330
      %p339 = scmp.eq.s32.totalorder %s30, 1
      %p340 = por %p338, %p339
      %p341 = scmp.ne.s32.totalorder %s330, %s331
      %p342 = scmp.eq.s32.totalorder %s30, 0
      %p343 = por %p341, %p342
      %p344 = scmp.ne.s32.totalorder %s330, %s331
      %p345 = scmp.eq.s32.totalorder %s31, 1
      %p346 = por %p344, %p345
      %p348 = scmp.ne.s32.totalorder %s331, %s347
      %p349 = scmp.eq.s32.totalorder %s31, 0
      %p350 = por %p348, %p349
      %p351 = scmp.le.s32.totalorder 1, %s25
      %p352 = scmp.lt.s32.totalorder %s25, 3
      %p353 = pnand %p351, %p352
      %p354 = pneg %p353
      // Predicated region
      $region9: #{tpu_custom_call.1} parent=5 // pred_check
        _
      $region10: #{tpu_custom_call.1} parent=5 // pred_check_branch
        %356 = sbr.rel (%p353) target = $region12
      $region11: #{tpu_custom_call.1} parent=5 // pred_region
        %s357 = ssub.s32 %s25, 1
        // Predicated region
        $region13: #{tpu_custom_call.1} parent=11 // pred_check
          %p358 = pneg %p86
        $region14: #{tpu_custom_call.1} parent=11 // pred_check_branch
          %360 = sbr.rel (%p358) target = $region16
        $region15: #{tpu_custom_call.1} parent=11 // pred_region
          _
        $region16: #{tpu_custom_call.1} parent=11 // pred_fallthru
          _
        // Predicated region
        $region17: #{tpu_custom_call.1} parent=11 // pred_check
          %p361 = pneg %p107
        $region18: #{tpu_custom_call.1} parent=11 // pred_check_branch
          %363 = sbr.rel (%p361) target = $region20
        $region19: #{tpu_custom_call.1} parent=11 // pred_region
          _
        $region20: #{tpu_custom_call.1} parent=11 // pred_fallthru
          _
        // Predicated region
        $region21: #{tpu_custom_call.1} parent=11 // pred_check
          %p364 = pneg %p128
        $region22: #{tpu_custom_call.1} parent=11 // pred_check_branch
          %366 = sbr.rel (%p364) target = $region24
        $region23: #{tpu_custom_call.1} parent=11 // pred_region
          _
        $region24: #{tpu_custom_call.1} parent=11 // pred_fallthru
          _
        // Predicated region
        $region25: #{tpu_custom_call.1} parent=11 // pred_check
          %p367 = pneg %p149
        $region26: #{tpu_custom_call.1} parent=11 // pred_check_branch
          %369 = sbr.rel (%p367) target = $region28
        $region27: #{tpu_custom_call.1} parent=11 // pred_region
          %s371 = ssub.s32 16, 16
          %372 = vsyncadd [#allocation4], %s371
          %s374 = sshll.u32 [#allocation3], 4
          %s375 = int_to_ptr.vmem [resolvable:$true] %s374
          %377 = dma.hbm_to_vmem [thread:$0]  %s4, 16, %s375, [#allocation4]
        $region28: #{tpu_custom_call.1} parent=11 // pred_fallthru
          _
        // Predicated region
        $region29: #{tpu_custom_call.1} parent=11 // pred_check
          %p378 = pneg %p170
        $region30: #{tpu_custom_call.1} parent=11 // pred_check_branch
          %380 = sbr.rel (%p378) target = $region32
        $region31: #{tpu_custom_call.1} parent=11 // pred_region
          %s382 = ssub.s32 8192, 8192
          %383 = vsyncadd [#allocation7], %s382
          %s384 = sshll.u32 [#allocation6], 4
          %s385 = int_to_ptr.vmem [resolvable:$true] %s384
          %390 = dma.hbm_to_vmem [thread:$0]  %s5, 8192, %s385, [#allocation7], 512, 512, 32
        $region32: #{tpu_custom_call.1} parent=11 // pred_fallthru
          _
        // Predicated region
        $region33: #{tpu_custom_call.1} parent=11 // pred_check
          %p391 = pneg %p191
        $region34: #{tpu_custom_call.1} parent=11 // pred_check_branch
          %393 = sbr.rel (%p391) target = $region36
        $region35: #{tpu_custom_call.1} parent=11 // pred_region
          _
        $region36: #{tpu_custom_call.1} parent=11 // pred_fallthru
          _
        // Predicated region
        $region37: #{tpu_custom_call.1} parent=11 // pred_check
          %p394 = pneg %p212
        $region38: #{tpu_custom_call.1} parent=11 // pred_check_branch
          %396 = sbr.rel (%p394) target = $region40
        $region39: #{tpu_custom_call.1} parent=11 // pred_region
          %s398 = ssub.s32 32768, 32768
          %399 = vsyncadd [#allocation7], %s398
          %s400 = sshll.u32 [#allocation8], 4
          %s401 = int_to_ptr.vmem [resolvable:$true] %s400
          %406 = dma.hbm_to_vmem [thread:$0]  %s7, 32768, %s401, [#allocation7], 256, 256, 16
        $region40: #{tpu_custom_call.1} parent=11 // pred_fallthru
          _
        // Predicated region
        $region41: #{tpu_custom_call.1} parent=11 // pred_check
          %p407 = pneg %p233
        $region42: #{tpu_custom_call.1} parent=11 // pred_check_branch
          %409 = sbr.rel (%p407) target = $region44
        $region43: #{tpu_custom_call.1} parent=11 // pred_region
          _
        $region44: #{tpu_custom_call.1} parent=11 // pred_fallthru
          _
        // Predicated region
        $region45: #{tpu_custom_call.1} parent=11 // pred_check
          %p410 = pneg %p254
        $region46: #{tpu_custom_call.1} parent=11 // pred_check_branch
          %412 = sbr.rel (%p410) target = $region48
        $region47: #{tpu_custom_call.1} parent=11 // pred_region
          %s414 = ssub.s32 8192, 8192
          %415 = vsyncadd [#allocation10], %s414
          %s416 = sshll.u32 [#allocation9], 4
          %s417 = int_to_ptr.vmem [resolvable:$true] %s416
          %422 = dma.hbm_to_vmem [thread:$0]  %s9, 8192, %s417, [#allocation10], 128, 128, 8
        $region48: #{tpu_custom_call.1} parent=11 // pred_fallthru
          _
        // Predicated region
        $region49: #{tpu_custom_call.1} parent=11 // pred_check
          %p423 = pneg %p275
        $region50: #{tpu_custom_call.1} parent=11 // pred_check_branch
          %425 = sbr.rel (%p423) target = $region52
        $region51: #{tpu_custom_call.1} parent=11 // pred_region
          %s427 = ssub.s32 32, 32
          %428 = vsyncadd [#allocation10], %s427
          %s430 = sshll.u32 [#allocation11], 4
          %s431 = int_to_ptr.vmem [resolvable:$true] %s430
          %433 = dma.hbm_to_vmem [thread:$0]  %s10, 32, %s431, [#allocation10]
        $region52: #{tpu_custom_call.1} parent=11 // pred_fallthru
          _
        // Predicated region
        $region53: #{tpu_custom_call.1} parent=11 // pred_check
          %p434 = pneg %p296
        $region54: #{tpu_custom_call.1} parent=11 // pred_check_branch
          %436 = sbr.rel (%p434) target = $region56
        $region55: #{tpu_custom_call.1} parent=11 // pred_region
          _
        $region56: #{tpu_custom_call.1} parent=11 // pred_fallthru
          _
        // Predicated region
        $region57: #{tpu_custom_call.1} parent=11 // pred_check
          %p437 = pneg %p317
        $region58: #{tpu_custom_call.1} parent=11 // pred_check_branch
          %439 = sbr.rel (%p437) target = $region60
        $region59: #{tpu_custom_call.1} parent=11 // pred_region
          _
        $region60: #{tpu_custom_call.1} parent=11 // pred_fallthru
          _
      $region12: #{tpu_custom_call.1} parent=5 // pred_fallthru
        _
      %p440 = scmp.lt.s32.totalorder %s25, 2
      // Predicated region
      $region61: #{tpu_custom_call.1} parent=5 // pred_check
        %p441 = pneg %p440
      $region62: #{tpu_custom_call.1} parent=5 // pred_check_branch
        %443 = sbr.rel (%p441) target = $region64
      $region63: #{tpu_custom_call.1} parent=5 // pred_region
        // Predicated region
        $region65: #{tpu_custom_call.1} parent=63 // pred_check
          %p444 = pneg %p59
        $region66: #{tpu_custom_call.1} parent=63 // pred_check_branch
          %446 = sbr.rel (%p444) target = $region68
        $region67: #{tpu_custom_call.1} parent=63 // pred_region
          %s447 = smul.u32 16, %s33
          %p448 = scmp.lt.s32.totalorder %s32, 1
          %s449 = scalar_select %p448, %s32, 1
          %p450 = scmp.lt.s32.totalorder %s447, 15
          %s451 = scalar_select %p450, %s447, 15
          %s452 = smul.addr %s449, 16
          %s453 = sadd.s32 %s451, %s452
          %s454 = smul.addr %s453, 4
          %s455 = scalar_lea.vmem %s0, %s454
          %s456 = smul.u32 16, %s33
        $region68: #{tpu_custom_call.1} parent=63 // pred_fallthru
          _
      $region64: #{tpu_custom_call.1} parent=5 // pred_fallthru
        _
      %p457 = scmp.le.s32.totalorder 1, %s25
      %p458 = scmp.lt.s32.totalorder %s25, 3
      %p459 = pnand %p457, %p458
      %p460 = pneg %p459
      // Predicated region
      $region69: #{tpu_custom_call.1} parent=5 // pred_check
        _
      $region70: #{tpu_custom_call.1} parent=5 // pred_check_branch
        %462 = sbr.rel (%p459) target = $region72
      $region71: #{tpu_custom_call.1} parent=5 // pred_region
        %s463 = ssub.s32 %s25, 1
        // Predicated region
        $region73: #{tpu_custom_call.1} parent=71 // pred_check
          %p464 = pneg %p149
        $region74: #{tpu_custom_call.1} parent=71 // pred_check_branch
          %466 = sbr.rel (%p464) target = $region76
        $region75: #{tpu_custom_call.1} parent=71 // pred_region
          %467 = dma.done [#allocation4], 16
        $region76: #{tpu_custom_call.1} parent=71 // pred_fallthru
          _
        // Predicated region
        $region77: #{tpu_custom_call.1} parent=71 // pred_check
          %p468 = pneg %p170
        $region78: #{tpu_custom_call.1} parent=71 // pred_check_branch
          %470 = sbr.rel (%p468) target = $region80
        $region79: #{tpu_custom_call.1} parent=71 // pred_region
          %471 = dma.done [#allocation7], 8192
        $region80: #{tpu_custom_call.1} parent=71 // pred_fallthru
          _
        // Predicated region
        $region81: #{tpu_custom_call.1} parent=71 // pred_check
          %p472 = pneg %p212
        $region82: #{tpu_custom_call.1} parent=71 // pred_check_branch
          %474 = sbr.rel (%p472) target = $region84
        $region83: #{tpu_custom_call.1} parent=71 // pred_region
          %475 = dma.done [#allocation7], 32768
        $region84: #{tpu_custom_call.1} parent=71 // pred_fallthru
          _
        // Predicated region
        $region85: #{tpu_custom_call.1} parent=71 // pred_check
          %p476 = pneg %p254
        $region86: #{tpu_custom_call.1} parent=71 // pred_check_branch
          %478 = sbr.rel (%p476) target = $region88
        $region87: #{tpu_custom_call.1} parent=71 // pred_region
          %479 = dma.done [#allocation10], 8192
        $region88: #{tpu_custom_call.1} parent=71 // pred_fallthru
          _
        // Predicated region
        $region89: #{tpu_custom_call.1} parent=71 // pred_check
          %p480 = pneg %p275
        $region90: #{tpu_custom_call.1} parent=71 // pred_check_branch
          %482 = sbr.rel (%p480) target = $region92
        $region91: #{tpu_custom_call.1} parent=71 // pred_region
          %483 = dma.done [#allocation10], 32
        $region92: #{tpu_custom_call.1} parent=71 // pred_fallthru
          _
        %s484 = smul.u32 16, %s35
        %p485 = scmp.lt.s32.totalorder %s34, 1
        %s486 = scalar_select %p485, %s34, 1
        %p487 = scmp.lt.s32.totalorder %s484, 15
        %s488 = scalar_select %p487, %s484, 15
        %s489 = smul.addr %s486, 16
        %s490 = sadd.s32 %s488, %s489
        %s491 = smul.addr %s490, 4
        %s492 = scalar_lea.vmem %s0, %s491
        %p493 = pneg %p65
        %p494 = pneg %p62
        %p495 = pneg %p86
        %p496 = pneg %p83
        %p497 = pneg %p107
        %p498 = pneg %p104
        %p499 = pneg %p128
        %p500 = pneg %p125
        %p501 = pneg %p149
        %p502 = pneg %p146
        %p503 = pneg %p170
        %p504 = pneg %p167
        %p505 = pneg %p191
        %p506 = pneg %p188
        %p507 = pneg %p212
        %p508 = pneg %p209
        %p509 = pneg %p233
        %p510 = pneg %p230
        %p511 = pneg %p254
        %p512 = pneg %p251
        %p513 = pneg %p275
        %p514 = pneg %p272
        %p515 = pneg %p296
        %p516 = pneg %p293
        %p517 = pneg %p317
        %p518 = pneg %p314
        %p519 = pneg %p343
        %p520 = pneg %p340
        %s521 = sand.u32 %s330, 1
        %s522 = scalar_lea.sflag [#allocation5], %s521
        %s523 = sand.u32 %s330, 1
        %s524 = smul.addr %s523, 8
        %s525 = scalar_lea.vmem [#allocation12], %s524
        %s526 = smul.u32 16, %s35
        %p527 = scmp.lt.s32.totalorder %s34, 1
        %s528 = scalar_select %p527, %s34, 1
        %p529 = scmp.lt.s32.totalorder %s526, 15
        %s530 = scalar_select %p529, %s526, 15
        %s531 = smul.addr %s528, 16
        %s532 = sadd.s32 %s530, %s531
        %s533 = smul.addr %s532, 4
        %s534 = scalar_lea.vmem %s0, %s533
        %s535 = smul.u32 16, %s35
        %p537 = scmp.eq.s32.totalorder %s35, 0
        // Predicated region
        $region93: #{tpu_custom_call.1} parent=71 // pred_check
          %p538 = pneg %p537
        $region94: #{tpu_custom_call.1} parent=71 // pred_check_branch
          %540 = sbr.rel (%p538) target = $region96
        $region95: #{tpu_custom_call.1} parent=71 // pred_region
          %541 = vst [vmem:[#allocation2] sm:$0xff] -inf
        $region96: #{tpu_custom_call.1} parent=71 // pred_fallthru
          _
        %v542 = vld [vmem:[%s534] sm:$0xf]
        %v543 = vld [vmem:[%s534 + $0x4] sm:$0xf]
        %v544 = vld [vmem:[%s534 + $0x8] sm:$0xf]
        %v545 = vld [vmem:[%s534 + $0xc] sm:$0xf]
        %v546 = vld [vmem:[%s534 + $0x10] sm:$0xf]
        %v547 = vld [vmem:[%s534 + $0x14] sm:$0xf]
        %v548 = vld [vmem:[%s534 + $0x18] sm:$0xf]
        %v549 = vld [vmem:[%s534 + $0x1c] sm:$0xf]
        %v550 = vld [vmem:[%s534 + $0x20] sm:$0xf]
        %v551 = vld [vmem:[%s534 + $0x24] sm:$0xf]
        %v552 = vld [vmem:[%s534 + $0x28] sm:$0xf]
        %v553 = vld [vmem:[%s534 + $0x2c] sm:$0xf]
        %v554 = vld [vmem:[%s534 + $0x30] sm:$0xf]
        %v555 = vld [vmem:[%s534 + $0x34] sm:$0xf]
        %v556 = vld [vmem:[%s534 + $0x38] sm:$0xf]
        %v557 = vld [vmem:[%s534 + $0x3c] sm:$0xf]
        %v558 = vld [vmem:[%s1] sm:$0xf]
        %v559 = vld [vmem:[%s2] sm:$0x1]
        %v561 = vlaneseq
        %v562 = vshrl.u32 %v561, 7
        %v563 = vsub.s32 0, %v562
        %v564 = vrot.slane %v559, %v563
        %v582 = vunpack.c.l.b16 %v542
        %v583 = vunpack.c.l.b16 %v543
        %v584 = vunpack.c.l.b16 %v544
        %v585 = vunpack.c.l.b16 %v545
        %v586 = vunpack.c.l.b16 %v546
        %v587 = vunpack.c.l.b16 %v547
        %v588 = vunpack.c.l.b16 %v548
        %v589 = vunpack.c.l.b16 %v549
        %v590 = vunpack.c.l.b16 %v550
        %v591 = vunpack.c.l.b16 %v551
        %v592 = vunpack.c.l.b16 %v552
        %v593 = vunpack.c.l.b16 %v553
        %v594 = vunpack.c.l.b16 %v554
        %v595 = vunpack.c.l.b16 %v555
        %v596 = vunpack.c.l.b16 %v556
        %v597 = vunpack.c.l.b16 %v557
        %v598 = vpack.c.b16 %v583, %v582
        %v599 = vpack.c.b16 %v585, %v584
        %v600 = vpack.c.b16 %v587, %v586
        %v601 = vpack.c.b16 %v589, %v588
        %v602 = vpack.c.b16 %v591, %v590
        %v603 = vpack.c.b16 %v593, %v592
        %v604 = vpack.c.b16 %v595, %v594
        %v605 = vpack.c.b16 %v597, %v596
        %vm606 = vcmask 64512
        %v608 = vsel %vm606, %v598, 0
        %v611 = vsel %vm606, %v599, 0
        %v614 = vsel %vm606, %v600, 0
        %v617 = vsel %vm606, %v601, 0
        %v620 = vsel %vm606, %v602, 0
        %v623 = vsel %vm606, %v603, 0
        %v626 = vsel %vm606, %v604, 0
        %v629 = vsel %vm606, %v605, 0
        %vm631 = vcmask 1043456
        %v633 = vsel %vm631, %v558, 0
        %635 = vmatprep.subr.bf16.mxu0 0
        %636 = vmatpush1.bf16.msra.mxu0 %v633
        %637 = vmatprep.subr.bf16.mxu0 0
        %638 = vmatpush1.bf16.msra.mxu0 0
        %639 = vmatprep.subr.bf16.mxu0 0
        %640 = vmatpush1.bf16.msra.mxu0 0
        %641 = vmatprep.subr.bf16.mxu0 0
        %642 = vmatpush1.bf16.msra.mxu0 0
        %643 = vmatprep.subr.bf16.mxu0 0
        %644 = vmatpush1.bf16.msra.mxu0 0
        %645 = vmatprep.subr.bf16.mxu0 0
        %646 = vmatpush1.bf16.msra.mxu0 0
        %647 = vmatprep.subr.bf16.mxu0 0
        %648 = vmatpush1.bf16.msra.mxu0 0
        %649 = vmatprep.subr.bf16.mxu0 0
        %650 = vmatpush1.bf16.msra.mxu0 0
        %651 = vmatprep.subr.bf16.mxu0 0
        %652 = vmatpush1.bf16.msra.mxu0 0
        %653 = vmatprep.subr.bf16.mxu0 0
        %654 = vmatpush1.bf16.msra.mxu0 0
        %655 = vmatprep.subr.bf16.mxu0 0
        %656 = vmatpush1.bf16.msra.mxu0 0
        %657 = vmatprep.subr.bf16.mxu0 0
        %658 = vmatpush1.bf16.msra.mxu0 0
        %659 = vmatprep.subr.bf16.mxu0 0
        %660 = vmatpush1.bf16.msra.mxu0 0
        %661 = vmatprep.subr.bf16.mxu0 0
        %662 = vmatpush1.bf16.msra.mxu0 0
        %663 = vmatprep.subr.bf16.mxu0 0
        %664 = vmatpush1.bf16.msra.mxu0 0
        %665 = vmatprep.subr.bf16.mxu0 0
        %666 = vmatpush1.bf16.msra.mxu0 0
        %667 = vmatprep.mubr.bf16.mxu0 0
        %668 = vmatmul.mubr.bf16.gmra.mrb[0].mxu0 %v608
        %v669 = vpop.f32.mrb[0].mxu0
        %v670 = vadd.f32 %v564, %v669
        %v671 = vpop.f32.mrb[0].mxu0
        %v672 = vpop.f32.mrb[0].mxu0
        %v673 = vadd.f32 %v564, %v672
        %v674 = vpop.f32.mrb[0].mxu0
        %675 = vmatprep.mubr.bf16.mxu0 0
        %676 = vmatmul.mubr.bf16.gmra.mrb[0].mxu0 %v611
        %v677 = vpop.f32.mrb[0].mxu0
        %v678 = vadd.f32 %v564, %v677
        %v679 = vpop.f32.mrb[0].mxu0
        %v680 = vpop.f32.mrb[0].mxu0
        %v681 = vadd.f32 %v564, %v680
        %v682 = vpop.f32.mrb[0].mxu0
        %683 = vmatprep.mubr.bf16.mxu0 0
        %684 = vmatmul.mubr.bf16.gmra.mrb[0].mxu0 %v614
        %v685 = vpop.f32.mrb[0].mxu0
        %v686 = vadd.f32 %v564, %v685
        %v687 = vpop.f32.mrb[0].mxu0
        %v688 = vpop.f32.mrb[0].mxu0
        %v689 = vadd.f32 %v564, %v688
        %v690 = vpop.f32.mrb[0].mxu0
        %691 = vmatprep.mubr.bf16.mxu0 0
        %692 = vmatmul.mubr.bf16.gmra.mrb[0].mxu0 %v617
        %v693 = vpop.f32.mrb[0].mxu0
        %v694 = vadd.f32 %v564, %v693
        %v695 = vpop.f32.mrb[0].mxu0
        %v696 = vpop.f32.mrb[0].mxu0
        %v697 = vadd.f32 %v564, %v696
        %v698 = vpop.f32.mrb[0].mxu0
        %699 = vmatprep.mubr.bf16.mxu0 0
        %700 = vmatmul.mubr.bf16.gmra.mrb[0].mxu0 %v620
        %v701 = vpop.f32.mrb[0].mxu0
        %v702 = vadd.f32 %v564, %v701
        %v703 = vpop.f32.mrb[0].mxu0
        %v704 = vpop.f32.mrb[0].mxu0
        %v705 = vadd.f32 %v564, %v704
        %v706 = vpop.f32.mrb[0].mxu0
        %707 = vmatprep.mubr.bf16.mxu0 0
        %708 = vmatmul.mubr.bf16.gmra.mrb[0].mxu0 %v623
        %v709 = vpop.f32.mrb[0].mxu0
        %v710 = vadd.f32 %v564, %v709
        %v711 = vpop.f32.mrb[0].mxu0
        %v712 = vpop.f32.mrb[0].mxu0
        %v713 = vadd.f32 %v564, %v712
        %v714 = vpop.f32.mrb[0].mxu0
        %715 = vmatprep.mubr.bf16.mxu0 0
        %716 = vmatmul.mubr.bf16.gmra.mrb[0].mxu0 %v626
        %v717 = vpop.f32.mrb[0].mxu0
        %v718 = vadd.f32 %v564, %v717
        %v719 = vpop.f32.mrb[0].mxu0
        %v720 = vpop.f32.mrb[0].mxu0
        %v721 = vadd.f32 %v564, %v720
        %v722 = vpop.f32.mrb[0].mxu0
        %723 = vmatprep.mubr.bf16.mxu0 0
        %724 = vmatmul.mubr.bf16.gmra.mrb[0].mxu0 %v629
        %v725 = vpop.f32.mrb[0].mxu0
        %v726 = vadd.f32 %v564, %v725
        %v727 = vpop.f32.mrb[0].mxu0
        %v728 = vpop.f32.mrb[0].mxu0
        %v729 = vadd.f32 %v564, %v728
        %v730 = vpop.f32.mrb[0].mxu0
        %731 = vdwg.mxu0
        %vm732 = vcmp.gt.f32.partialorder %v670, 0.0
        %vm733 = vcmp.gt.f32.partialorder %v673, 0.0
        %vm734 = vcmp.gt.f32.partialorder %v678, 0.0
        %vm735 = vcmp.gt.f32.partialorder %v681, 0.0
        %vm736 = vcmp.gt.f32.partialorder %v686, 0.0
        %vm737 = vcmp.gt.f32.partialorder %v689, 0.0
        %vm738 = vcmp.gt.f32.partialorder %v694, 0.0
        %vm739 = vcmp.gt.f32.partialorder %v697, 0.0
        %vm740 = vcmp.gt.f32.partialorder %v702, 0.0
        %vm741 = vcmp.gt.f32.partialorder %v705, 0.0
        %vm742 = vcmp.gt.f32.partialorder %v710, 0.0
        %vm743 = vcmp.gt.f32.partialorder %v713, 0.0
        %vm744 = vcmp.gt.f32.partialorder %v718, 0.0
        %vm745 = vcmp.gt.f32.partialorder %v721, 0.0
        %vm746 = vcmp.gt.f32.partialorder %v726, 0.0
        %vm747 = vcmp.gt.f32.partialorder %v729, 0.0
        %v748 = vmul.f32 %v670, 0.2
        %v749 = vmul.f32 %v673, 0.2
        %v750 = vmul.f32 %v678, 0.2
        %v751 = vmul.f32 %v681, 0.2
        %v752 = vmul.f32 %v686, 0.2
        %v753 = vmul.f32 %v689, 0.2
        %v754 = vmul.f32 %v694, 0.2
        %v755 = vmul.f32 %v697, 0.2
        %v756 = vmul.f32 %v702, 0.2
        %v757 = vmul.f32 %v705, 0.2
        %v758 = vmul.f32 %v710, 0.2
        %v759 = vmul.f32 %v713, 0.2
        %v760 = vmul.f32 %v718, 0.2
        %v761 = vmul.f32 %v721, 0.2
        %v762 = vmul.f32 %v726, 0.2
        %v763 = vmul.f32 %v729, 0.2
        %v764 = vsel %vm732, %v670, %v748
        %v765 = vsel %vm733, %v673, %v749
        %v766 = vsel %vm734, %v678, %v750
        %v767 = vsel %vm735, %v681, %v751
        %v768 = vsel %vm736, %v686, %v752
        %v769 = vsel %vm737, %v689, %v753
        %v770 = vsel %vm738, %v694, %v754
        %v771 = vsel %vm739, %v697, %v755
        %v772 = vsel %vm740, %v702, %v756
        %v773 = vsel %vm741, %v705, %v757
        %v774 = vsel %vm742, %v710, %v758
        %v775 = vsel %vm743, %v713, %v759
        %v776 = vsel %vm744, %v718, %v760
        %v777 = vsel %vm745, %v721, %v761
        %v778 = vsel %vm746, %v726, %v762
        %v779 = vsel %vm747, %v729, %v763
        %v780 = vpack.c.bf16 %v765, %v764
        %v781 = vpack.c.bf16 %v767, %v766
        %v782 = vpack.c.bf16 %v769, %v768
        %v783 = vpack.c.bf16 %v771, %v770
        %v784 = vpack.c.bf16 %v773, %v772
        %v785 = vpack.c.bf16 %v775, %v774
        %v786 = vpack.c.bf16 %v777, %v776
        %v787 = vpack.c.bf16 %v779, %v778
        %v788 = vld [vmem:[%s3] sm:$0xf]
        %v789 = vld [vmem:[%s3 + $0x4] sm:$0xf]
        %v790 = vld [vmem:[%s3 + $0x8] sm:$0xf]
        %v791 = vld [vmem:[%s3 + $0xc] sm:$0xf]
        %v792 = vld [vmem:[%s3 + $0x10] sm:$0xf]
        %v793 = vld [vmem:[%s3 + $0x14] sm:$0xf]
        %v794 = vld [vmem:[%s3 + $0x18] sm:$0xf]
        %v795 = vld [vmem:[%s3 + $0x1c] sm:$0xf]
        %v796 = vld [vmem:[#allocation3] sm:$0x1]
        %v798 = vlaneseq
        %v799 = vshrl.u32 %v798, 7
        %v800 = vsub.s32 0, %v799
        %v801 = vrot.slane %v796, %v800
        %v811 = vunpack.c.l.b16 %v788
        %v812 = vunpack.c.l.b16 %v789
        %v813 = vunpack.c.l.b16 %v790
        %v814 = vunpack.c.l.b16 %v791
        %v815 = vunpack.c.l.b16 %v792
        %v816 = vunpack.c.l.b16 %v793
        %v817 = vunpack.c.l.b16 %v794
        %v818 = vunpack.c.l.b16 %v795
        %v819 = vpack.c.b16 %v812, %v811
        %v820 = vpack.c.b16 %v814, %v813
        %v821 = vpack.c.b16 %v816, %v815
        %v822 = vpack.c.b16 %v818, %v817
        %vm827 = vcmask 523264
        %v829 = vsel %vm827, %v780, 0
        %v832 = vsel %vm827, %v781, 0
        %v835 = vsel %vm827, %v782, 0
        %v838 = vsel %vm827, %v783, 0
        %v841 = vsel %vm827, %v784, 0
        %v844 = vsel %vm827, %v785, 0
        %v847 = vsel %vm827, %v786, 0
        %v850 = vsel %vm827, %v787, 0
        %852 = vmatprep.subr.bf16.mxu0 0
        %853 = vmatpush1.bf16.msra.mxu0 %v819
        %854 = vmatprep.subr.bf16.mxu0 0
        %855 = vmatpush1.bf16.msra.mxu0 %v820
        %856 = vmatprep.subr.bf16.mxu0 0
        %857 = vmatpush1.bf16.msra.mxu0 %v821
        %858 = vmatprep.subr.bf16.mxu0 0
        %859 = vmatpush1.bf16.msra.mxu0 %v822
        %860 = vmatprep.subr.bf16.mxu0 0
        %861 = vmatpush1.bf16.msra.mxu0 0
        %862 = vmatprep.subr.bf16.mxu0 0
        %863 = vmatpush1.bf16.msra.mxu0 0
        %864 = vmatprep.subr.bf16.mxu0 0
        %865 = vmatpush1.bf16.msra.mxu0 0
        %866 = vmatprep.subr.bf16.mxu0 0
        %867 = vmatpush1.bf16.msra.mxu0 0
        %868 = vmatprep.subr.bf16.mxu0 0
        %869 = vmatpush1.bf16.msra.mxu0 0
        %870 = vmatprep.subr.bf16.mxu0 0
        %871 = vmatpush1.bf16.msra.mxu0 0
        %872 = vmatprep.subr.bf16.mxu0 0
        %873 = vmatpush1.bf16.msra.mxu0 0
        %874 = vmatprep.subr.bf16.mxu0 0
        %875 = vmatpush1.bf16.msra.mxu0 0
        %876 = vmatprep.subr.bf16.mxu0 0
        %877 = vmatpush1.bf16.msra.mxu0 0
        %878 = vmatprep.subr.bf16.mxu0 0
        %879 = vmatpush1.bf16.msra.mxu0 0
        %880 = vmatprep.subr.bf16.mxu0 0
        %881 = vmatpush1.bf16.msra.mxu0 0
        %882 = vmatprep.subr.bf16.mxu0 0
        %883 = vmatpush1.bf16.msra.mxu0 0
        %884 = vmatprep.mubr.bf16.mxu0 0
        %885 = vmatmul.mubr.bf16.gmra.mrb[0].mxu0 %v829
        %v886 = vpop.f32.mrb[0].mxu0
        %v887 = vadd.f32 %v801, %v886
        %v888 = vpop.f32.mrb[0].mxu0
        %v889 = vpop.f32.mrb[0].mxu0
        %v890 = vadd.f32 %v801, %v889
        %v891 = vpop.f32.mrb[0].mxu0
        %892 = vmatprep.mubr.bf16.mxu0 0
        %893 = vmatmul.mubr.bf16.gmra.mrb[0].mxu0 %v832
        %v894 = vpop.f32.mrb[0].mxu0
        %v895 = vadd.f32 %v801, %v894
        %v896 = vpop.f32.mrb[0].mxu0
        %v897 = vpop.f32.mrb[0].mxu0
        %v898 = vadd.f32 %v801, %v897
        %v899 = vpop.f32.mrb[0].mxu0
        %900 = vmatprep.mubr.bf16.mxu0 0
        %901 = vmatmul.mubr.bf16.gmra.mrb[0].mxu0 %v835
        %v902 = vpop.f32.mrb[0].mxu0
        %v903 = vadd.f32 %v801, %v902
        %v904 = vpop.f32.mrb[0].mxu0
        %v905 = vpop.f32.mrb[0].mxu0
        %v906 = vadd.f32 %v801, %v905
        %v907 = vpop.f32.mrb[0].mxu0
        %908 = vmatprep.mubr.bf16.mxu0 0
        %909 = vmatmul.mubr.bf16.gmra.mrb[0].mxu0 %v838
        %v910 = vpop.f32.mrb[0].mxu0
        %v911 = vadd.f32 %v801, %v910
        %v912 = vpop.f32.mrb[0].mxu0
        %v913 = vpop.f32.mrb[0].mxu0
        %v914 = vadd.f32 %v801, %v913
        %v915 = vpop.f32.mrb[0].mxu0
        %916 = vmatprep.mubr.bf16.mxu0 0
        %917 = vmatmul.mubr.bf16.gmra.mrb[0].mxu0 %v841
        %v918 = vpop.f32.mrb[0].mxu0
        %v919 = vadd.f32 %v801, %v918
        %v920 = vpop.f32.mrb[0].mxu0
        %v921 = vpop.f32.mrb[0].mxu0
        %v922 = vadd.f32 %v801, %v921
        %v923 = vpop.f32.mrb[0].mxu0
        %924 = vmatprep.mubr.bf16.mxu0 0
        %925 = vmatmul.mubr.bf16.gmra.mrb[0].mxu0 %v844
        %v926 = vpop.f32.mrb[0].mxu0
        %v927 = vadd.f32 %v801, %v926
        %v928 = vpop.f32.mrb[0].mxu0
        %v929 = vpop.f32.mrb[0].mxu0
        %v930 = vadd.f32 %v801, %v929
        %v931 = vpop.f32.mrb[0].mxu0
        %932 = vmatprep.mubr.bf16.mxu0 0
        %933 = vmatmul.mubr.bf16.gmra.mrb[0].mxu0 %v847
        %v934 = vpop.f32.mrb[0].mxu0
        %v935 = vadd.f32 %v801, %v934
        %v936 = vpop.f32.mrb[0].mxu0
        %v937 = vpop.f32.mrb[0].mxu0
        %v938 = vadd.f32 %v801, %v937
        %v939 = vpop.f32.mrb[0].mxu0
        %940 = vmatprep.mubr.bf16.mxu0 0
        %941 = vmatmul.mubr.bf16.gmra.mrb[0].mxu0 %v850
        %v942 = vpop.f32.mrb[0].mxu0
        %v943 = vadd.f32 %v801, %v942
        %v944 = vpop.f32.mrb[0].mxu0
        %v945 = vpop.f32.mrb[0].mxu0
        %v946 = vadd.f32 %v801, %v945
        %v947 = vpop.f32.mrb[0].mxu0
        %948 = vdwg.mxu0
        %vm949 = vcmp.gt.f32.partialorder %v887, 0.0
        %vm950 = vcmp.gt.f32.partialorder %v890, 0.0
        %vm951 = vcmp.gt.f32.partialorder %v895, 0.0
        %vm952 = vcmp.gt.f32.partialorder %v898, 0.0
        %vm953 = vcmp.gt.f32.partialorder %v903, 0.0
        %vm954 = vcmp.gt.f32.partialorder %v906, 0.0
        %vm955 = vcmp.gt.f32.partialorder %v911, 0.0
        %vm956 = vcmp.gt.f32.partialorder %v914, 0.0
        %vm957 = vcmp.gt.f32.partialorder %v919, 0.0
        %vm958 = vcmp.gt.f32.partialorder %v922, 0.0
        %vm959 = vcmp.gt.f32.partialorder %v927, 0.0
        %vm960 = vcmp.gt.f32.partialorder %v930, 0.0
        %vm961 = vcmp.gt.f32.partialorder %v935, 0.0
        %vm962 = vcmp.gt.f32.partialorder %v938, 0.0
        %vm963 = vcmp.gt.f32.partialorder %v943, 0.0
        %vm964 = vcmp.gt.f32.partialorder %v946, 0.0
        %v965 = vmul.f32 %v887, 0.2
        %v966 = vmul.f32 %v890, 0.2
        %v967 = vmul.f32 %v895, 0.2
        %v968 = vmul.f32 %v898, 0.2
        %v969 = vmul.f32 %v903, 0.2
        %v970 = vmul.f32 %v906, 0.2
        %v971 = vmul.f32 %v911, 0.2
        %v972 = vmul.f32 %v914, 0.2
        %v973 = vmul.f32 %v919, 0.2
        %v974 = vmul.f32 %v922, 0.2
        %v975 = vmul.f32 %v927, 0.2
        %v976 = vmul.f32 %v930, 0.2
        %v977 = vmul.f32 %v935, 0.2
        %v978 = vmul.f32 %v938, 0.2
        %v979 = vmul.f32 %v943, 0.2
        %v980 = vmul.f32 %v946, 0.2
        %v981 = vsel %vm949, %v887, %v965
        %v982 = vsel %vm950, %v890, %v966
        %v983 = vsel %vm951, %v895, %v967
        %v984 = vsel %vm952, %v898, %v968
        %v985 = vsel %vm953, %v903, %v969
        %v986 = vsel %vm954, %v906, %v970
        %v987 = vsel %vm955, %v911, %v971
        %v988 = vsel %vm956, %v914, %v972
        %v989 = vsel %vm957, %v919, %v973
        %v990 = vsel %vm958, %v922, %v974
        %v991 = vsel %vm959, %v927, %v975
        %v992 = vsel %vm960, %v930, %v976
        %v993 = vsel %vm961, %v935, %v977
        %v994 = vsel %vm962, %v938, %v978
        %v995 = vsel %vm963, %v943, %v979
        %v996 = vsel %vm964, %v946, %v980
        %v997 = vrot.slane %v981, 4
        %v998 = vmax.f32 %v981, %v997
        %v999 = vrot.slane %v998, 2
        %v1000 = vmax.f32 %v998, %v999
        %v1001 = vrot.slane %v1000, 1
        %v1002 = vmax.f32 %v1000, %v1001
        %v1003 = vrot.slane %v982, 4
        %v1004 = vmax.f32 %v982, %v1003
        %v1005 = vrot.slane %v1004, 2
        %v1006 = vmax.f32 %v1004, %v1005
        %v1007 = vrot.slane %v1006, 1
        %v1008 = vmax.f32 %v1006, %v1007
        %v1009 = vrot.slane %v983, 4
        %v1010 = vmax.f32 %v983, %v1009
        %v1011 = vrot.slane %v1010, 2
        %v1012 = vmax.f32 %v1010, %v1011
        %v1013 = vrot.slane %v1012, 1
        %v1014 = vmax.f32 %v1012, %v1013
        %v1015 = vrot.slane %v984, 4
        %v1016 = vmax.f32 %v984, %v1015
        %v1017 = vrot.slane %v1016, 2
        %v1018 = vmax.f32 %v1016, %v1017
        %v1019 = vrot.slane %v1018, 1
        %v1020 = vmax.f32 %v1018, %v1019
        %v1021 = vrot.slane %v985, 4
        %v1022 = vmax.f32 %v985, %v1021
        %v1023 = vrot.slane %v1022, 2
        %v1024 = vmax.f32 %v1022, %v1023
        %v1025 = vrot.slane %v1024, 1
        %v1026 = vmax.f32 %v1024, %v1025
        %v1027 = vrot.slane %v986, 4
        %v1028 = vmax.f32 %v986, %v1027
        %v1029 = vrot.slane %v1028, 2
        %v1030 = vmax.f32 %v1028, %v1029
        %v1031 = vrot.slane %v1030, 1
        %v1032 = vmax.f32 %v1030, %v1031
        %v1033 = vrot.slane %v987, 4
        %v1034 = vmax.f32 %v987, %v1033
        %v1035 = vrot.slane %v1034, 2
        %v1036 = vmax.f32 %v1034, %v1035
        %v1037 = vrot.slane %v1036, 1
        %v1038 = vmax.f32 %v1036, %v1037
        %v1039 = vrot.slane %v988, 4
        %v1040 = vmax.f32 %v988, %v1039
        %v1041 = vrot.slane %v1040, 2
        %v1042 = vmax.f32 %v1040, %v1041
        %v1043 = vrot.slane %v1042, 1
        %v1044 = vmax.f32 %v1042, %v1043
        %v1045 = vrot.slane %v989, 4
        %v1046 = vmax.f32 %v989, %v1045
        %v1047 = vrot.slane %v1046, 2
        %v1048 = vmax.f32 %v1046, %v1047
        %v1049 = vrot.slane %v1048, 1
        %v1050 = vmax.f32 %v1048, %v1049
        %v1051 = vrot.slane %v990, 4
        %v1052 = vmax.f32 %v990, %v1051
        %v1053 = vrot.slane %v1052, 2
        %v1054 = vmax.f32 %v1052, %v1053
        %v1055 = vrot.slane %v1054, 1
        %v1056 = vmax.f32 %v1054, %v1055
        %v1057 = vrot.slane %v991, 4
        %v1058 = vmax.f32 %v991, %v1057
        %v1059 = vrot.slane %v1058, 2
        %v1060 = vmax.f32 %v1058, %v1059
        %v1061 = vrot.slane %v1060, 1
        %v1062 = vmax.f32 %v1060, %v1061
        %v1063 = vrot.slane %v992, 4
        %v1064 = vmax.f32 %v992, %v1063
        %v1065 = vrot.slane %v1064, 2
        %v1066 = vmax.f32 %v1064, %v1065
        %v1067 = vrot.slane %v1066, 1
        %v1068 = vmax.f32 %v1066, %v1067
        %v1069 = vrot.slane %v993, 4
        %v1070 = vmax.f32 %v993, %v1069
        %v1071 = vrot.slane %v1070, 2
        %v1072 = vmax.f32 %v1070, %v1071
        %v1073 = vrot.slane %v1072, 1
        %v1074 = vmax.f32 %v1072, %v1073
        %v1075 = vrot.slane %v994, 4
        %v1076 = vmax.f32 %v994, %v1075
        %v1077 = vrot.slane %v1076, 2
        %v1078 = vmax.f32 %v1076, %v1077
        %v1079 = vrot.slane %v1078, 1
        %v1080 = vmax.f32 %v1078, %v1079
        %v1081 = vrot.slane %v995, 4
        %v1082 = vmax.f32 %v995, %v1081
        %v1083 = vrot.slane %v1082, 2
        %v1084 = vmax.f32 %v1082, %v1083
        %v1085 = vrot.slane %v1084, 1
        %v1086 = vmax.f32 %v1084, %v1085
        %v1087 = vrot.slane %v996, 4
        %v1088 = vmax.f32 %v996, %v1087
        %v1089 = vrot.slane %v1088, 2
        %v1090 = vmax.f32 %v1088, %v1089
        %v1091 = vrot.slane %v1090, 1
        %v1092 = vmax.f32 %v1090, %v1091
        %v1093 = vpack.c.bf16 %v1002, %v1002
        %v1094 = vpack.c.bf16 %v1008, %v1008
        %v1095 = vpack.c.bf16 %v1014, %v1014
        %v1096 = vpack.c.bf16 %v1020, %v1020
        %v1097 = vpack.c.bf16 %v1026, %v1026
        %v1098 = vpack.c.bf16 %v1032, %v1032
        %v1099 = vpack.c.bf16 %v1038, %v1038
        %v1100 = vpack.c.bf16 %v1044, %v1044
        %v1101 = vpack.c.bf16 %v1050, %v1050
        %v1102 = vpack.c.bf16 %v1056, %v1056
        %v1103 = vpack.c.bf16 %v1062, %v1062
        %v1104 = vpack.c.bf16 %v1068, %v1068
        %v1105 = vpack.c.bf16 %v1074, %v1074
        %v1106 = vpack.c.bf16 %v1080, %v1080
        %v1107 = vpack.c.bf16 %v1086, %v1086
        %v1108 = vpack.c.bf16 %v1092, %v1092
        %v1109 = vld [vmem:[#allocation6] sm:$0xff]
        %v1110 = vld [vmem:[#allocation6 + $0x8] sm:$0xff]
        %v1111 = vld [vmem:[#allocation6 + $0x10] sm:$0xff]
        %v1112 = vld [vmem:[#allocation6 + $0x18] sm:$0xff]
        %v1113 = vld [vmem:[#allocation6 + $0x20] sm:$0xff]
        %v1114 = vld [vmem:[#allocation6 + $0x28] sm:$0xff]
        %v1115 = vld [vmem:[#allocation6 + $0x30] sm:$0xff]
        %v1116 = vld [vmem:[#allocation6 + $0x38] sm:$0xff]
        %v1117 = vld [vmem:[#allocation6 + $0x40] sm:$0xff]
        %v1118 = vld [vmem:[#allocation6 + $0x48] sm:$0xff]
        %v1119 = vld [vmem:[#allocation6 + $0x50] sm:$0xff]
        %v1120 = vld [vmem:[#allocation6 + $0x58] sm:$0xff]
        %v1121 = vld [vmem:[#allocation6 + $0x60] sm:$0xff]
        %v1122 = vld [vmem:[#allocation6 + $0x68] sm:$0xff]
        %v1123 = vld [vmem:[#allocation6 + $0x70] sm:$0xff]
        %v1124 = vld [vmem:[#allocation6 + $0x78] sm:$0xff]
        %v1125 = vld [vmem:[#allocation6 + $0x80] sm:$0xff]
        %v1126 = vld [vmem:[#allocation6 + $0x88] sm:$0xff]
        %v1127 = vld [vmem:[#allocation6 + $0x90] sm:$0xff]
        %v1128 = vld [vmem:[#allocation6 + $0x98] sm:$0xff]
        %v1129 = vld [vmem:[#allocation6 + $0xa0] sm:$0xff]
        %v1130 = vld [vmem:[#allocation6 + $0xa8] sm:$0xff]
        %v1131 = vld [vmem:[#allocation6 + $0xb0] sm:$0xff]
        %v1132 = vld [vmem:[#allocation6 + $0xb8] sm:$0xff]
        %v1133 = vld [vmem:[#allocation6 + $0xc0] sm:$0xff]
        %v1134 = vld [vmem:[#allocation6 + $0xc8] sm:$0xff]
        %v1135 = vld [vmem:[#allocation6 + $0xd0] sm:$0xff]
        %v1136 = vld [vmem:[#allocation6 + $0xd8] sm:$0xff]
        %v1137 = vld [vmem:[#allocation6 + $0xe0] sm:$0xff]
        %v1138 = vld [vmem:[#allocation6 + $0xe8] sm:$0xff]
        %v1139 = vld [vmem:[#allocation6 + $0xf0] sm:$0xff]
        %v1140 = vld [vmem:[#allocation6 + $0xf8] sm:$0xff]
        %v1141 = vld [vmem:[#allocation6 + $0x100] sm:$0xff]
        %v1142 = vld [vmem:[#allocation6 + $0x108] sm:$0xff]
        %v1143 = vld [vmem:[#allocation6 + $0x110] sm:$0xff]
        %v1144 = vld [vmem:[#allocation6 + $0x118] sm:$0xff]
        %v1145 = vld [vmem:[#allocation6 + $0x120] sm:$0xff]
        %v1146 = vld [vmem:[#allocation6 + $0x128] sm:$0xff]
        %v1147 = vld [vmem:[#allocation6 + $0x130] sm:$0xff]
        %v1148 = vld [vmem:[#allocation6 + $0x138] sm:$0xff]
        %v1149 = vld [vmem:[#allocation6 + $0x140] sm:$0xff]
        %v1150 = vld [vmem:[#allocation6 + $0x148] sm:$0xff]
        %v1151 = vld [vmem:[#allocation6 + $0x150] sm:$0xff]
        %v1152 = vld [vmem:[#allocation6 + $0x158] sm:$0xff]
        %v1153 = vld [vmem:[#allocation6 + $0x160] sm:$0xff]
        %v1154 = vld [vmem:[#allocation6 + $0x168] sm:$0xff]
        %v1155 = vld [vmem:[#allocation6 + $0x170] sm:$0xff]
        %v1156 = vld [vmem:[#allocation6 + $0x178] sm:$0xff]
        %v1157 = vld [vmem:[#allocation6 + $0x180] sm:$0xff]
        %v1158 = vld [vmem:[#allocation6 + $0x188] sm:$0xff]
        %v1159 = vld [vmem:[#allocation6 + $0x190] sm:$0xff]
        %v1160 = vld [vmem:[#allocation6 + $0x198] sm:$0xff]
        %v1161 = vld [vmem:[#allocation6 + $0x1a0] sm:$0xff]
        %v1162 = vld [vmem:[#allocation6 + $0x1a8] sm:$0xff]
        %v1163 = vld [vmem:[#allocation6 + $0x1b0] sm:$0xff]
        %v1164 = vld [vmem:[#allocation6 + $0x1b8] sm:$0xff]
        %v1165 = vld [vmem:[#allocation6 + $0x1c0] sm:$0xff]
        %v1166 = vld [vmem:[#allocation6 + $0x1c8] sm:$0xff]
        %v1167 = vld [vmem:[#allocation6 + $0x1d0] sm:$0xff]
        %v1168 = vld [vmem:[#allocation6 + $0x1d8] sm:$0xff]
        %v1169 = vld [vmem:[#allocation6 + $0x1e0] sm:$0xff]
        %v1170 = vld [vmem:[#allocation6 + $0x1e8] sm:$0xff]
        %v1171 = vld [vmem:[#allocation6 + $0x1f0] sm:$0xff]
        %v1172 = vld [vmem:[#allocation6 + $0x1f8] sm:$0xff]
        %v1173 = vld [vmem:[%s6] sm:$0xff]
        %v1175 = vlaneseq
        %v1176 = vshrl.u32 %v1175, 7
        %v1177 = vsub.s32 0, %v1176
        %v1178 = vrot.slane %v1173, %v1177
        %v1179 = vlaneseq
        %v1180 = vshrl.u32 %v1179, 7
        %v1181 = vsub.s32 1, %v1180
        %v1182 = vrot.slane %v1173, %v1181
        %v1183 = vlaneseq
        %v1184 = vshrl.u32 %v1183, 7
        %v1185 = vsub.s32 2, %v1184
        %v1186 = vrot.slane %v1173, %v1185
        %v1187 = vlaneseq
        %v1188 = vshrl.u32 %v1187, 7
        %v1189 = vsub.s32 3, %v1188
        %v1190 = vrot.slane %v1173, %v1189
        %v1191 = vlaneseq
        %v1192 = vshrl.u32 %v1191, 7
        %v1193 = vsub.s32 4, %v1192
        %v1194 = vrot.slane %v1173, %v1193
        %v1195 = vlaneseq
        %v1196 = vshrl.u32 %v1195, 7
        %v1197 = vsub.s32 5, %v1196
        %v1198 = vrot.slane %v1173, %v1197
        %v1199 = vlaneseq
        %v1200 = vshrl.u32 %v1199, 7
        %v1201 = vsub.s32 6, %v1200
        %v1202 = vrot.slane %v1173, %v1201
        %v1203 = vlaneseq
        %v1204 = vshrl.u32 %v1203, 7
        %v1205 = vsub.s32 7, %v1204
        %v1206 = vrot.slane %v1173, %v1205
        %v1231 = vunpack.c.l.b16 %v1093
        %v1232 = vunpack.c.l.b16 %v1094
        %v1233 = vunpack.c.l.b16 %v1095
        %v1234 = vunpack.c.l.b16 %v1096
        %v1235 = vunpack.c.l.b16 %v1097
        %v1236 = vunpack.c.l.b16 %v1098
        %v1237 = vunpack.c.l.b16 %v1099
        %v1238 = vunpack.c.l.b16 %v1100
        %v1239 = vunpack.c.l.b16 %v1101
        %v1240 = vunpack.c.l.b16 %v1102
        %v1241 = vunpack.c.l.b16 %v1103
        %v1242 = vunpack.c.l.b16 %v1104
        %v1243 = vunpack.c.l.b16 %v1105
        %v1244 = vunpack.c.l.b16 %v1106
        %v1245 = vunpack.c.l.b16 %v1107
        %v1246 = vunpack.c.l.b16 %v1108
        %vm1247 = vcmask 1041409
        %v1248 = vsel %vm1247, %v1232, %v1231
        %vm1249 = vcmask 1042434
        %v1250 = vsel %vm1249, %v1233, %v1248
        %vm1251 = vcmask 1043459
        %v1252 = vsel %vm1251, %v1234, %v1250
        %vm1253 = vcmask 1044484
        %v1254 = vsel %vm1253, %v1235, %v1252
        %vm1255 = vcmask 1045509
        %v1256 = vsel %vm1255, %v1236, %v1254
        %vm1257 = vcmask 1046534
        %v1258 = vsel %vm1257, %v1237, %v1256
        %vm1259 = vcmask 1047559
        %v1260 = vsel %vm1259, %v1238, %v1258
        %v1261 = vsel %vm1247, %v1240, %v1239
        %v1262 = vsel %vm1249, %v1241, %v1261
        %v1263 = vsel %vm1251, %v1242, %v1262
        %v1264 = vsel %vm1253, %v1243, %v1263
        %v1265 = vsel %vm1255, %v1244, %v1264
        %v1266 = vsel %vm1257, %v1245, %v1265
        %v1267 = vsel %vm1259, %v1246, %v1266
        %v1268 = vpack.c.b16 %v1267, %v1260
        %v1334 = vunpack.c.l.b16 %v1109
        %v1335 = vunpack.c.h.b16 %v1109
        %v1336 = vunpack.c.l.b16 %v1110
        %v1337 = vunpack.c.h.b16 %v1110
        %v1338 = vunpack.c.l.b16 %v1111
        %v1339 = vunpack.c.h.b16 %v1111
        %v1340 = vunpack.c.l.b16 %v1112
        %v1341 = vunpack.c.h.b16 %v1112
        %v1342 = vunpack.c.l.b16 %v1113
        %v1343 = vunpack.c.h.b16 %v1113
        %v1344 = vunpack.c.l.b16 %v1114
        %v1345 = vunpack.c.h.b16 %v1114
        %v1346 = vunpack.c.l.b16 %v1115
        %v1347 = vunpack.c.h.b16 %v1115
        %v1348 = vunpack.c.l.b16 %v1116
        %v1349 = vunpack.c.h.b16 %v1116
        %v1350 = vunpack.c.l.b16 %v1117
        %v1351 = vunpack.c.h.b16 %v1117
        %v1352 = vunpack.c.l.b16 %v1118
        %v1353 = vunpack.c.h.b16 %v1118
        %v1354 = vunpack.c.l.b16 %v1119
        %v1355 = vunpack.c.h.b16 %v1119
        %v1356 = vunpack.c.l.b16 %v1120
        %v1357 = vunpack.c.h.b16 %v1120
        %v1358 = vunpack.c.l.b16 %v1121
        %v1359 = vunpack.c.h.b16 %v1121
        %v1360 = vunpack.c.l.b16 %v1122
        %v1361 = vunpack.c.h.b16 %v1122
        %v1362 = vunpack.c.l.b16 %v1123
        %v1363 = vunpack.c.h.b16 %v1123
        %v1364 = vunpack.c.l.b16 %v1124
        %v1365 = vunpack.c.h.b16 %v1124
        %v1366 = vunpack.c.l.b16 %v1125
        %v1367 = vunpack.c.h.b16 %v1125
        %v1368 = vunpack.c.l.b16 %v1126
        %v1369 = vunpack.c.h.b16 %v1126
        %v1370 = vunpack.c.l.b16 %v1127
        %v1371 = vunpack.c.h.b16 %v1127
        %v1372 = vunpack.c.l.b16 %v1128
        %v1373 = vunpack.c.h.b16 %v1128
        %v1374 = vunpack.c.l.b16 %v1129
        %v1375 = vunpack.c.h.b16 %v1129
        %v1376 = vunpack.c.l.b16 %v1130
        %v1377 = vunpack.c.h.b16 %v1130
        %v1378 = vunpack.c.l.b16 %v1131
        %v1379 = vunpack.c.h.b16 %v1131
        %v1380 = vunpack.c.l.b16 %v1132
        %v1381 = vunpack.c.h.b16 %v1132
        %v1382 = vunpack.c.l.b16 %v1133
        %v1383 = vunpack.c.h.b16 %v1133
        %v1384 = vunpack.c.l.b16 %v1134
        %v1385 = vunpack.c.h.b16 %v1134
        %v1386 = vunpack.c.l.b16 %v1135
        %v1387 = vunpack.c.h.b16 %v1135
        %v1388 = vunpack.c.l.b16 %v1136
        %v1389 = vunpack.c.h.b16 %v1136
        %v1390 = vunpack.c.l.b16 %v1137
        %v1391 = vunpack.c.h.b16 %v1137
        %v1392 = vunpack.c.l.b16 %v1138
        %v1393 = vunpack.c.h.b16 %v1138
        %v1394 = vunpack.c.l.b16 %v1139
        %v1395 = vunpack.c.h.b16 %v1139
        %v1396 = vunpack.c.l.b16 %v1140
        %v1397 = vunpack.c.h.b16 %v1140
        %v1398 = vunpack.c.l.b16 %v1141
        %v1399 = vunpack.c.h.b16 %v1141
        %v1400 = vunpack.c.l.b16 %v1142
        %v1401 = vunpack.c.h.b16 %v1142
        %v1402 = vunpack.c.l.b16 %v1143
        %v1403 = vunpack.c.h.b16 %v1143
        %v1404 = vunpack.c.l.b16 %v1144
        %v1405 = vunpack.c.h.b16 %v1144
        %v1406 = vunpack.c.l.b16 %v1145
        %v1407 = vunpack.c.h.b16 %v1145
        %v1408 = vunpack.c.l.b16 %v1146
        %v1409 = vunpack.c.h.b16 %v1146
        %v1410 = vunpack.c.l.b16 %v1147
        %v1411 = vunpack.c.h.b16 %v1147
        %v1412 = vunpack.c.l.b16 %v1148
        %v1413 = vunpack.c.h.b16 %v1148
        %v1414 = vunpack.c.l.b16 %v1149
        %v1415 = vunpack.c.h.b16 %v1149
        %v1416 = vunpack.c.l.b16 %v1150
        %v1417 = vunpack.c.h.b16 %v1150
        %v1418 = vunpack.c.l.b16 %v1151
        %v1419 = vunpack.c.h.b16 %v1151
        %v1420 = vunpack.c.l.b16 %v1152
        %v1421 = vunpack.c.h.b16 %v1152
        %v1422 = vunpack.c.l.b16 %v1153
        %v1423 = vunpack.c.h.b16 %v1153
        %v1424 = vunpack.c.l.b16 %v1154
        %v1425 = vunpack.c.h.b16 %v1154
        %v1426 = vunpack.c.l.b16 %v1155
        %v1427 = vunpack.c.h.b16 %v1155
        %v1428 = vunpack.c.l.b16 %v1156
        %v1429 = vunpack.c.h.b16 %v1156
        %v1430 = vunpack.c.l.b16 %v1157
        %v1431 = vunpack.c.h.b16 %v1157
        %v1432 = vunpack.c.l.b16 %v1158
        %v1433 = vunpack.c.h.b16 %v1158
        %v1434 = vunpack.c.l.b16 %v1159
        %v1435 = vunpack.c.h.b16 %v1159
        %v1436 = vunpack.c.l.b16 %v1160
        %v1437 = vunpack.c.h.b16 %v1160
        %v1438 = vunpack.c.l.b16 %v1161
        %v1439 = vunpack.c.h.b16 %v1161
        %v1440 = vunpack.c.l.b16 %v1162
        %v1441 = vunpack.c.h.b16 %v1162
        %v1442 = vunpack.c.l.b16 %v1163
        %v1443 = vunpack.c.h.b16 %v1163
        %v1444 = vunpack.c.l.b16 %v1164
        %v1445 = vunpack.c.h.b16 %v1164
        %v1446 = vunpack.c.l.b16 %v1165
        %v1447 = vunpack.c.h.b16 %v1165
        %v1448 = vunpack.c.l.b16 %v1166
        %v1449 = vunpack.c.h.b16 %v1166
        %v1450 = vunpack.c.l.b16 %v1167
        %v1451 = vunpack.c.h.b16 %v1167
        %v1452 = vunpack.c.l.b16 %v1168
        %v1453 = vunpack.c.h.b16 %v1168
        %v1454 = vunpack.c.l.b16 %v1169
        %v1455 = vunpack.c.h.b16 %v1169
        %v1456 = vunpack.c.l.b16 %v1170
        %v1457 = vunpack.c.h.b16 %v1170
        %v1458 = vunpack.c.l.b16 %v1171
        %v1459 = vunpack.c.h.b16 %v1171
        %v1460 = vunpack.c.l.b16 %v1172
        %v1461 = vunpack.c.h.b16 %v1172
        %v1462 = vpack.c.b16 %v1342, %v1334
        %v1463 = vpack.c.b16 %v1343, %v1335
        %v1464 = vpack.c.b16 %v1344, %v1336
        %v1465 = vpack.c.b16 %v1345, %v1337
        %v1466 = vpack.c.b16 %v1346, %v1338
        %v1467 = vpack.c.b16 %v1347, %v1339
        %v1468 = vpack.c.b16 %v1348, %v1340
        %v1469 = vpack.c.b16 %v1349, %v1341
        %v1470 = vpack.c.b16 %v1358, %v1350
        %v1471 = vpack.c.b16 %v1359, %v1351
        %v1472 = vpack.c.b16 %v1360, %v1352
        %v1473 = vpack.c.b16 %v1361, %v1353
        %v1474 = vpack.c.b16 %v1362, %v1354
        %v1475 = vpack.c.b16 %v1363, %v1355
        %v1476 = vpack.c.b16 %v1364, %v1356
        %v1477 = vpack.c.b16 %v1365, %v1357
        %v1478 = vpack.c.b16 %v1374, %v1366
        %v1479 = vpack.c.b16 %v1375, %v1367
        %v1480 = vpack.c.b16 %v1376, %v1368
        %v1481 = vpack.c.b16 %v1377, %v1369
        %v1482 = vpack.c.b16 %v1378, %v1370
        %v1483 = vpack.c.b16 %v1379, %v1371
        %v1484 = vpack.c.b16 %v1380, %v1372
        %v1485 = vpack.c.b16 %v1381, %v1373
        %v1486 = vpack.c.b16 %v1390, %v1382
        %v1487 = vpack.c.b16 %v1391, %v1383
        %v1488 = vpack.c.b16 %v1392, %v1384
        %v1489 = vpack.c.b16 %v1393, %v1385
        %v1490 = vpack.c.b16 %v1394, %v1386
        %v1491 = vpack.c.b16 %v1395, %v1387
        %v1492 = vpack.c.b16 %v1396, %v1388
        %v1493 = vpack.c.b16 %v1397, %v1389
        %v1494 = vpack.c.b16 %v1406, %v1398
        %v1495 = vpack.c.b16 %v1407, %v1399
        %v1496 = vpack.c.b16 %v1408, %v1400
        %v1497 = vpack.c.b16 %v1409, %v1401
        %v1498 = vpack.c.b16 %v1410, %v1402
        %v1499 = vpack.c.b16 %v1411, %v1403
        %v1500 = vpack.c.b16 %v1412, %v1404
        %v1501 = vpack.c.b16 %v1413, %v1405
        %v1502 = vpack.c.b16 %v1422, %v1414
        %v1503 = vpack.c.b16 %v1423, %v1415
        %v1504 = vpack.c.b16 %v1424, %v1416
        %v1505 = vpack.c.b16 %v1425, %v1417
        %v1506 = vpack.c.b16 %v1426, %v1418
        %v1507 = vpack.c.b16 %v1427, %v1419
        %v1508 = vpack.c.b16 %v1428, %v1420
        %v1509 = vpack.c.b16 %v1429, %v1421
        %v1510 = vpack.c.b16 %v1438, %v1430
        %v1511 = vpack.c.b16 %v1439, %v1431
        %v1512 = vpack.c.b16 %v1440, %v1432
        %v1513 = vpack.c.b16 %v1441, %v1433
        %v1514 = vpack.c.b16 %v1442, %v1434
        %v1515 = vpack.c.b16 %v1443, %v1435
        %v1516 = vpack.c.b16 %v1444, %v1436
        %v1517 = vpack.c.b16 %v1445, %v1437
        %v1518 = vpack.c.b16 %v1454, %v1446
        %v1519 = vpack.c.b16 %v1455, %v1447
        %v1520 = vpack.c.b16 %v1456, %v1448
        %v1521 = vpack.c.b16 %v1457, %v1449
        %v1522 = vpack.c.b16 %v1458, %v1450
        %v1523 = vpack.c.b16 %v1459, %v1451
        %v1524 = vpack.c.b16 %v1460, %v1452
        %v1525 = vpack.c.b16 %v1461, %v1453
        %1590 = vmatprep.subr.bf16.mxu0 %v1463
        %1591 = vmatpush1.bf16.msra.mxu0 %v1462
        %1592 = vmatprep.subr.bf16.mxu0 %v1471
        %1593 = vmatpush1.bf16.msra.mxu0 %v1470
        %1594 = vmatprep.subr.bf16.mxu0 %v1479
        %1595 = vmatpush1.bf16.msra.mxu0 %v1478
        %1596 = vmatprep.subr.bf16.mxu0 %v1487
        %1597 = vmatpush1.bf16.msra.mxu0 %v1486
        %1598 = vmatprep.subr.bf16.mxu0 %v1495
        %1599 = vmatpush1.bf16.msra.mxu0 %v1494
        %1600 = vmatprep.subr.bf16.mxu0 %v1503
        %1601 = vmatpush1.bf16.msra.mxu0 %v1502
        %1602 = vmatprep.subr.bf16.mxu0 %v1511
        %1603 = vmatpush1.bf16.msra.mxu0 %v1510
        %1604 = vmatprep.subr.bf16.mxu0 %v1519
        %1605 = vmatpush1.bf16.msra.mxu0 %v1518
        %1606 = vmatprep.subr.bf16.mxu0 0
        %1607 = vmatpush1.bf16.msra.mxu0 0
        %1608 = vmatprep.subr.bf16.mxu0 0
        %1609 = vmatpush1.bf16.msra.mxu0 0
        %1610 = vmatprep.subr.bf16.mxu0 0
        %1611 = vmatpush1.bf16.msra.mxu0 0
        %1612 = vmatprep.subr.bf16.mxu0 0
        %1613 = vmatpush1.bf16.msra.mxu0 0
        %1614 = vmatprep.subr.bf16.mxu0 0
        %1615 = vmatpush1.bf16.msra.mxu0 0
        %1616 = vmatprep.subr.bf16.mxu0 0
        %1617 = vmatpush1.bf16.msra.mxu0 0
        %1618 = vmatprep.subr.bf16.mxu0 0
        %1619 = vmatpush1.bf16.msra.mxu0 0
        %1620 = vmatprep.subr.bf16.mxu0 0
        %1621 = vmatpush1.bf16.msra.mxu0 0
        %1622 = vmatprep.mubr.bf16.mxu0 0
        %1623 = vmatmul.mubr.bf16.gmra.mrb[0].mxu0 %v1268
        %v1624 = vpop.f32.mrb[0].mxu0
        %v1625 = vadd.f32 %v1178, %v1624
        %v1626 = vpop.f32.mrb[0].mxu0
        %v1627 = vadd.f32 %v1182, %v1626
        %v1628 = vpop.f32.mrb[0].mxu0
        %v1629 = vadd.f32 %v1178, %v1628
        %v1630 = vpop.f32.mrb[0].mxu0
        %v1631 = vadd.f32 %v1182, %v1630
        %1632 = vdwg.mxu0
        %1633 = vmatprep.subr.bf16.mxu0 %v1465
        %1634 = vmatpush1.bf16.msra.mxu0 %v1464
        %1635 = vmatprep.subr.bf16.mxu0 %v1473
        %1636 = vmatpush1.bf16.msra.mxu0 %v1472
        %1637 = vmatprep.subr.bf16.mxu0 %v1481
        %1638 = vmatpush1.bf16.msra.mxu0 %v1480
        %1639 = vmatprep.subr.bf16.mxu0 %v1489
        %1640 = vmatpush1.bf16.msra.mxu0 %v1488
        %1641 = vmatprep.subr.bf16.mxu0 %v1497
        %1642 = vmatpush1.bf16.msra.mxu0 %v1496
        %1643 = vmatprep.subr.bf16.mxu0 %v1505
        %1644 = vmatpush1.bf16.msra.mxu0 %v1504
        %1645 = vmatprep.subr.bf16.mxu0 %v1513
        %1646 = vmatpush1.bf16.msra.mxu0 %v1512
        %1647 = vmatprep.subr.bf16.mxu0 %v1521
        %1648 = vmatpush1.bf16.msra.mxu0 %v1520
        %1649 = vmatprep.subr.bf16.mxu0 0
        %1650 = vmatpush1.bf16.msra.mxu0 0
        %1651 = vmatprep.subr.bf16.mxu0 0
        %1652 = vmatpush1.bf16.msra.mxu0 0
        %1653 = vmatprep.subr.bf16.mxu0 0
        %1654 = vmatpush1.bf16.msra.mxu0 0
        %1655 = vmatprep.subr.bf16.mxu0 0
        %1656 = vmatpush1.bf16.msra.mxu0 0
        %1657 = vmatprep.subr.bf16.mxu0 0
        %1658 = vmatpush1.bf16.msra.mxu0 0
        %1659 = vmatprep.subr.bf16.mxu0 0
        %1660 = vmatpush1.bf16.msra.mxu0 0
        %1661 = vmatprep.subr.bf16.mxu0 0
        %1662 = vmatpush1.bf16.msra.mxu0 0
        %1663 = vmatprep.subr.bf16.mxu0 0
        %1664 = vmatpush1.bf16.msra.mxu0 0
        %1665 = vmatprep.mubr.bf16.mxu0 0
        %1666 = vmatmul.mubr.bf16.gmra.mrb[0].mxu0 %v1268
        %v1667 = vpop.f32.mrb[0].mxu0
        %v1668 = vadd.f32 %v1186, %v1667
        %v1669 = vpop.f32.mrb[0].mxu0
        %v1670 = vadd.f32 %v1190, %v1669
        %v1671 = vpop.f32.mrb[0].mxu0
        %v1672 = vadd.f32 %v1186, %v1671
        %v1673 = vpop.f32.mrb[0].mxu0
        %v1674 = vadd.f32 %v1190, %v1673
        %1675 = vdwg.mxu0
        %1676 = vmatprep.subr.bf16.mxu0 %v1467
        %1677 = vmatpush1.bf16.msra.mxu0 %v1466
        %1678 = vmatprep.subr.bf16.mxu0 %v1475
        %1679 = vmatpush1.bf16.msra.mxu0 %v1474
        %1680 = vmatprep.subr.bf16.mxu0 %v1483
        %1681 = vmatpush1.bf16.msra.mxu0 %v1482
        %1682 = vmatprep.subr.bf16.mxu0 %v1491
        %1683 = vmatpush1.bf16.msra.mxu0 %v1490
        %1684 = vmatprep.subr.bf16.mxu0 %v1499
        %1685 = vmatpush1.bf16.msra.mxu0 %v1498
        %1686 = vmatprep.subr.bf16.mxu0 %v1507
        %1687 = vmatpush1.bf16.msra.mxu0 %v1506
        %1688 = vmatprep.subr.bf16.mxu0 %v1515
        %1689 = vmatpush1.bf16.msra.mxu0 %v1514
        %1690 = vmatprep.subr.bf16.mxu0 %v1523
        %1691 = vmatpush1.bf16.msra.mxu0 %v1522
        %1692 = vmatprep.subr.bf16.mxu0 0
        %1693 = vmatpush1.bf16.msra.mxu0 0
        %1694 = vmatprep.subr.bf16.mxu0 0
        %1695 = vmatpush1.bf16.msra.mxu0 0
        %1696 = vmatprep.subr.bf16.mxu0 0
        %1697 = vmatpush1.bf16.msra.mxu0 0
        %1698 = vmatprep.subr.bf16.mxu0 0
        %1699 = vmatpush1.bf16.msra.mxu0 0
        %1700 = vmatprep.subr.bf16.mxu0 0
        %1701 = vmatpush1.bf16.msra.mxu0 0
        %1702 = vmatprep.subr.bf16.mxu0 0
        %1703 = vmatpush1.bf16.msra.mxu0 0
        %1704 = vmatprep.subr.bf16.mxu0 0
        %1705 = vmatpush1.bf16.msra.mxu0 0
        %1706 = vmatprep.subr.bf16.mxu0 0
        %1707 = vmatpush1.bf16.msra.mxu0 0
        %1708 = vmatprep.mubr.bf16.mxu0 0
        %1709 = vmatmul.mubr.bf16.gmra.mrb[0].mxu0 %v1268
        %v1710 = vpop.f32.mrb[0].mxu0
        %v1711 = vadd.f32 %v1194, %v1710
        %v1712 = vpop.f32.mrb[0].mxu0
        %v1713 = vadd.f32 %v1198, %v1712
        %v1714 = vpop.f32.mrb[0].mxu0
        %v1715 = vadd.f32 %v1194, %v1714
        %v1716 = vpop.f32.mrb[0].mxu0
        %v1717 = vadd.f32 %v1198, %v1716
        %1718 = vdwg.mxu0
        %1719 = vmatprep.subr.bf16.mxu0 %v1469
        %1720 = vmatpush1.bf16.msra.mxu0 %v1468
        %1721 = vmatprep.subr.bf16.mxu0 %v1477
        %1722 = vmatpush1.bf16.msra.mxu0 %v1476
        %1723 = vmatprep.subr.bf16.mxu0 %v1485
        %1724 = vmatpush1.bf16.msra.mxu0 %v1484
        %1725 = vmatprep.subr.bf16.mxu0 %v1493
        %1726 = vmatpush1.bf16.msra.mxu0 %v1492
        %1727 = vmatprep.subr.bf16.mxu0 %v1501
        %1728 = vmatpush1.bf16.msra.mxu0 %v1500
        %1729 = vmatprep.subr.bf16.mxu0 %v1509
        %1730 = vmatpush1.bf16.msra.mxu0 %v1508
        %1731 = vmatprep.subr.bf16.mxu0 %v1517
        %1732 = vmatpush1.bf16.msra.mxu0 %v1516
        %1733 = vmatprep.subr.bf16.mxu0 %v1525
        %1734 = vmatpush1.bf16.msra.mxu0 %v1524
        %1735 = vmatprep.subr.bf16.mxu0 0
        %1736 = vmatpush1.bf16.msra.mxu0 0
        %1737 = vmatprep.subr.bf16.mxu0 0
        %1738 = vmatpush1.bf16.msra.mxu0 0
        %1739 = vmatprep.subr.bf16.mxu0 0
        %1740 = vmatpush1.bf16.msra.mxu0 0
        %1741 = vmatprep.subr.bf16.mxu0 0
        %1742 = vmatpush1.bf16.msra.mxu0 0
        %1743 = vmatprep.subr.bf16.mxu0 0
        %1744 = vmatpush1.bf16.msra.mxu0 0
        %1745 = vmatprep.subr.bf16.mxu0 0
        %1746 = vmatpush1.bf16.msra.mxu0 0
        %1747 = vmatprep.subr.bf16.mxu0 0
        %1748 = vmatpush1.bf16.msra.mxu0 0
        %1749 = vmatprep.subr.bf16.mxu0 0
        %1750 = vmatpush1.bf16.msra.mxu0 0
        %1751 = vmatprep.mubr.bf16.mxu0 0
        %1752 = vmatmul.mubr.bf16.gmra.mrb[0].mxu0 %v1268
        %v1753 = vpop.f32.mrb[0].mxu0
        %v1754 = vadd.f32 %v1202, %v1753
        %v1755 = vpop.f32.mrb[0].mxu0
        %v1756 = vadd.f32 %v1206, %v1755
        %v1757 = vpop.f32.mrb[0].mxu0
        %v1758 = vadd.f32 %v1202, %v1757
        %v1759 = vpop.f32.mrb[0].mxu0
        %v1760 = vadd.f32 %v1206, %v1759
        %1761 = vdwg.mxu0
        %vm1762 = vcmp.gt.f32.partialorder %v1625, 0.0
        %vm1763 = vcmp.gt.f32.partialorder %v1627, 0.0
        %vm1764 = vcmp.gt.f32.partialorder %v1668, 0.0
        %vm1765 = vcmp.gt.f32.partialorder %v1670, 0.0
        %vm1766 = vcmp.gt.f32.partialorder %v1711, 0.0
        %vm1767 = vcmp.gt.f32.partialorder %v1713, 0.0
        %vm1768 = vcmp.gt.f32.partialorder %v1754, 0.0
        %vm1769 = vcmp.gt.f32.partialorder %v1756, 0.0
        %vm1770 = vcmp.gt.f32.partialorder %v1629, 0.0
        %vm1771 = vcmp.gt.f32.partialorder %v1631, 0.0
        %vm1772 = vcmp.gt.f32.partialorder %v1672, 0.0
        %vm1773 = vcmp.gt.f32.partialorder %v1674, 0.0
        %vm1774 = vcmp.gt.f32.partialorder %v1715, 0.0
        %vm1775 = vcmp.gt.f32.partialorder %v1717, 0.0
        %vm1776 = vcmp.gt.f32.partialorder %v1758, 0.0
        %vm1777 = vcmp.gt.f32.partialorder %v1760, 0.0
        %v1778 = vmul.f32 %v1625, 0.2
        %v1779 = vmul.f32 %v1627, 0.2
        %v1780 = vmul.f32 %v1668, 0.2
        %v1781 = vmul.f32 %v1670, 0.2
        %v1782 = vmul.f32 %v1711, 0.2
        %v1783 = vmul.f32 %v1713, 0.2
        %v1784 = vmul.f32 %v1754, 0.2
        %v1785 = vmul.f32 %v1756, 0.2
        %v1786 = vmul.f32 %v1629, 0.2
        %v1787 = vmul.f32 %v1631, 0.2
        %v1788 = vmul.f32 %v1672, 0.2
        %v1789 = vmul.f32 %v1674, 0.2
        %v1790 = vmul.f32 %v1715, 0.2
        %v1791 = vmul.f32 %v1717, 0.2
        %v1792 = vmul.f32 %v1758, 0.2
        %v1793 = vmul.f32 %v1760, 0.2
        %v1794 = vsel %vm1762, %v1625, %v1778
        %v1795 = vsel %vm1763, %v1627, %v1779
        %v1796 = vsel %vm1764, %v1668, %v1780
        %v1797 = vsel %vm1765, %v1670, %v1781
        %v1798 = vsel %vm1766, %v1711, %v1782
        %v1799 = vsel %vm1767, %v1713, %v1783
        %v1800 = vsel %vm1768, %v1754, %v1784
        %v1801 = vsel %vm1769, %v1756, %v1785
        %v1802 = vsel %vm1770, %v1629, %v1786
        %v1803 = vsel %vm1771, %v1631, %v1787
        %v1804 = vsel %vm1772, %v1672, %v1788
        %v1805 = vsel %vm1773, %v1674, %v1789
        %v1806 = vsel %vm1774, %v1715, %v1790
        %v1807 = vsel %vm1775, %v1717, %v1791
        %v1808 = vsel %vm1776, %v1758, %v1792
        %v1809 = vsel %vm1777, %v1760, %v1793
        %v1810 = vld [vmem:[#allocation2] sm:$0xff]
        %v1811 = vmax.f32 %v1794, %v1802
        %v1812 = vrot.slane %v1811, 4
        %v1813 = vmax.f32 %v1811, %v1812
        %v1814 = vrot.slane %v1813, 2
        %v1815 = vmax.f32 %v1813, %v1814
        %v1816 = vrot.slane %v1815, 1
        %v1817 = vmax.f32 %v1815, %v1816
        %v1818 = vmax.f32 %v1795, %v1803
        %v1819 = vrot.slane %v1818, 4
        %v1820 = vmax.f32 %v1818, %v1819
        %v1821 = vrot.slane %v1820, 2
        %v1822 = vmax.f32 %v1820, %v1821
        %v1823 = vrot.slane %v1822, 1
        %v1824 = vmax.f32 %v1822, %v1823
        %v1825 = vmax.f32 %v1796, %v1804
        %v1826 = vrot.slane %v1825, 4
        %v1827 = vmax.f32 %v1825, %v1826
        %v1828 = vrot.slane %v1827, 2
        %v1829 = vmax.f32 %v1827, %v1828
        %v1830 = vrot.slane %v1829, 1
        %v1831 = vmax.f32 %v1829, %v1830
        %v1832 = vmax.f32 %v1797, %v1805
        %v1833 = vrot.slane %v1832, 4
        %v1834 = vmax.f32 %v1832, %v1833
        %v1835 = vrot.slane %v1834, 2
        %v1836 = vmax.f32 %v1834, %v1835
        %v1837 = vrot.slane %v1836, 1
        %v1838 = vmax.f32 %v1836, %v1837
        %v1839 = vmax.f32 %v1798, %v1806
        %v1840 = vrot.slane %v1839, 4
        %v1841 = vmax.f32 %v1839, %v1840
        %v1842 = vrot.slane %v1841, 2
        %v1843 = vmax.f32 %v1841, %v1842
        %v1844 = vrot.slane %v1843, 1
        %v1845 = vmax.f32 %v1843, %v1844
        %v1846 = vmax.f32 %v1799, %v1807
        %v1847 = vrot.slane %v1846, 4
        %v1848 = vmax.f32 %v1846, %v1847
        %v1849 = vrot.slane %v1848, 2
        %v1850 = vmax.f32 %v1848, %v1849
        %v1851 = vrot.slane %v1850, 1
        %v1852 = vmax.f32 %v1850, %v1851
        %v1853 = vmax.f32 %v1800, %v1808
        %v1854 = vrot.slane %v1853, 4
        %v1855 = vmax.f32 %v1853, %v1854
        %v1856 = vrot.slane %v1855, 2
        %v1857 = vmax.f32 %v1855, %v1856
        %v1858 = vrot.slane %v1857, 1
        %v1859 = vmax.f32 %v1857, %v1858
        %v1860 = vmax.f32 %v1801, %v1809
        %v1861 = vrot.slane %v1860, 4
        %v1862 = vmax.f32 %v1860, %v1861
        %v1863 = vrot.slane %v1862, 2
        %v1864 = vmax.f32 %v1862, %v1863
        %v1865 = vrot.slane %v1864, 1
        %v1866 = vmax.f32 %v1864, %v1865
        %v1875 = vcombine.low %v1817, %v1824
        %v1876 = vcombine.low %v1831, %v1838
        %v1877 = vcombine.low %v1845, %v1852
        %v1878 = vcombine.low %v1859, %v1866
        %v1880 = vunpack.c.l.s4 1966171168
        %v1881 = vunpack.c.0.s8 %v1880
        %v1882 = vlaneseq
        %v1883 = vshrl.u32 %v1882, 7
        %v1884 = vsub.s32 %v1881, %v1883
        %v1885 = vrot.slane %v1875, %v1884
        %v1887 = vunpack.c.l.s4 1966171168
        %v1888 = vunpack.c.0.s8 %v1887
        %v1889 = vlaneseq
        %v1890 = vshrl.u32 %v1889, 7
        %v1891 = vsub.s32 %v1888, %v1890
        %v1892 = vrot.slane %v1876, %v1891
        %v1894 = vunpack.c.l.s4 1966171168
        %v1895 = vunpack.c.0.s8 %v1894
        %v1896 = vlaneseq
        %v1897 = vshrl.u32 %v1896, 7
        %v1898 = vsub.s32 %v1895, %v1897
        %v1899 = vrot.slane %v1877, %v1898
        %v1901 = vunpack.c.l.s4 1966171168
        %v1902 = vunpack.c.0.s8 %v1901
        %v1903 = vlaneseq
        %v1904 = vshrl.u32 %v1903, 7
        %v1905 = vsub.s32 %v1902, %v1904
        %v1906 = vrot.slane %v1878, %v1905
        %v1907 = vcombine.low %v1885, %v1892
        %v1908 = vcombine.low %v1899, %v1906
        %v1910 = vunpack.c.l.s4 1966171168
        %v1911 = vunpack.c.0.s8 %v1910
        %v1912 = vlaneseq
        %v1913 = vshrl.u32 %v1912, 7
        %v1914 = vsub.s32 %v1911, %v1913
        %v1915 = vrot.slane %v1907, %v1914
        %v1917 = vunpack.c.l.s4 1966171168
        %v1918 = vunpack.c.0.s8 %v1917
        %v1919 = vlaneseq
        %v1920 = vshrl.u32 %v1919, 7
        %v1921 = vsub.s32 %v1918, %v1920
        %v1922 = vrot.slane %v1908, %v1921
        %v1923 = vcombine.low %v1915, %v1922
        %v1925 = vmax.f32 %v1810, %v1923
        %1926 = vst [vmem:[#allocation2] sm:$0xff] %v1925
        // Predicated region
        $region97: #{tpu_custom_call.1} parent=71 // pred_check
          %p1927 = pneg %p537
        $region98: #{tpu_custom_call.1} parent=71 // pred_check_branch
          %1929 = sbr.rel (%p1927) target = $region100
        $region99: #{tpu_custom_call.1} parent=71 // pred_region
          %v1930 = vld [vmem:[#allocation2] sm:$0xff]
          %v1932 = vlaneseq
          %v1933 = vshrl.u32 %v1932, 7
          %v1934 = vsub.s32 0, %v1933
          %v1935 = vrot.slane %v1930, %v1934
          %v1936 = vlaneseq
          %v1937 = vshrl.u32 %v1936, 7
          %v1938 = vsub.s32 1, %v1937
          %v1939 = vrot.slane %v1930, %v1938
          %v1940 = vlaneseq
          %v1941 = vshrl.u32 %v1940, 7
          %v1942 = vsub.s32 2, %v1941
          %v1943 = vrot.slane %v1930, %v1942
          %v1944 = vlaneseq
          %v1945 = vshrl.u32 %v1944, 7
          %v1946 = vsub.s32 3, %v1945
          %v1947 = vrot.slane %v1930, %v1946
          %v1948 = vlaneseq
          %v1949 = vshrl.u32 %v1948, 7
          %v1950 = vsub.s32 4, %v1949
          %v1951 = vrot.slane %v1930, %v1950
          %v1952 = vlaneseq
          %v1953 = vshrl.u32 %v1952, 7
          %v1954 = vsub.s32 5, %v1953
          %v1955 = vrot.slane %v1930, %v1954
          %v1956 = vlaneseq
          %v1957 = vshrl.u32 %v1956, 7
          %v1958 = vsub.s32 6, %v1957
          %v1959 = vrot.slane %v1930, %v1958
          %v1960 = vlaneseq
          %v1961 = vshrl.u32 %v1960, 7
          %v1962 = vsub.s32 7, %v1961
          %v1963 = vrot.slane %v1930, %v1962
          %v1972 = vpack.c.bf16 %v1935, %v1935
          %v1973 = vpack.c.bf16 %v1939, %v1939
          %v1974 = vpack.c.bf16 %v1943, %v1943
          %v1975 = vpack.c.bf16 %v1947, %v1947
          %v1976 = vpack.c.bf16 %v1951, %v1951
          %v1977 = vpack.c.bf16 %v1955, %v1955
          %v1978 = vpack.c.bf16 %v1959, %v1959
          %v1979 = vpack.c.bf16 %v1963, %v1963
          %v1980 = vld [vmem:[#allocation8] sm:$0xff]
          %v1981 = vld [vmem:[#allocation8 + $0x8] sm:$0xff]
          %v1982 = vld [vmem:[#allocation8 + $0x10] sm:$0xff]
          %v1983 = vld [vmem:[#allocation8 + $0x18] sm:$0xff]
          %v1984 = vld [vmem:[#allocation8 + $0x20] sm:$0xff]
          %v1985 = vld [vmem:[#allocation8 + $0x28] sm:$0xff]
          %v1986 = vld [vmem:[#allocation8 + $0x30] sm:$0xff]
          %v1987 = vld [vmem:[#allocation8 + $0x38] sm:$0xff]
          %v1988 = vld [vmem:[#allocation8 + $0x40] sm:$0xff]
          %v1989 = vld [vmem:[#allocation8 + $0x48] sm:$0xff]
          %v1990 = vld [vmem:[#allocation8 + $0x50] sm:$0xff]
          %v1991 = vld [vmem:[#allocation8 + $0x58] sm:$0xff]
          %v1992 = vld [vmem:[#allocation8 + $0x60] sm:$0xff]
          %v1993 = vld [vmem:[#allocation8 + $0x68] sm:$0xff]
          %v1994 = vld [vmem:[#allocation8 + $0x70] sm:$0xff]
          %v1995 = vld [vmem:[#allocation8 + $0x78] sm:$0xff]
          %v1996 = vld [vmem:[#allocation8 + $0x80] sm:$0xff]
          %v1997 = vld [vmem:[#allocation8 + $0x88] sm:$0xff]
          %v1998 = vld [vmem:[#allocation8 + $0x90] sm:$0xff]
          %v1999 = vld [vmem:[#allocation8 + $0x98] sm:$0xff]
          %v2000 = vld [vmem:[#allocation8 + $0xa0] sm:$0xff]
          %v2001 = vld [vmem:[#allocation8 + $0xa8] sm:$0xff]
          %v2002 = vld [vmem:[#allocation8 + $0xb0] sm:$0xff]
          %v2003 = vld [vmem:[#allocation8 + $0xb8] sm:$0xff]
          %v2004 = vld [vmem:[#allocation8 + $0xc0] sm:$0xff]
          %v2005 = vld [vmem:[#allocation8 + $0xc8] sm:$0xff]
          %v2006 = vld [vmem:[#allocation8 + $0xd0] sm:$0xff]
          %v2007 = vld [vmem:[#allocation8 + $0xd8] sm:$0xff]
          %v2008 = vld [vmem:[#allocation8 + $0xe0] sm:$0xff]
          %v2009 = vld [vmem:[#allocation8 + $0xe8] sm:$0xff]
          %v2010 = vld [vmem:[#allocation8 + $0xf0] sm:$0xff]
          %v2011 = vld [vmem:[#allocation8 + $0xf8] sm:$0xff]
          %v2012 = vld [vmem:[#allocation8 + $0x100] sm:$0xff]
          %v2013 = vld [vmem:[#allocation8 + $0x108] sm:$0xff]
          %v2014 = vld [vmem:[#allocation8 + $0x110] sm:$0xff]
          %v2015 = vld [vmem:[#allocation8 + $0x118] sm:$0xff]
          %v2016 = vld [vmem:[#allocation8 + $0x120] sm:$0xff]
          %v2017 = vld [vmem:[#allocation8 + $0x128] sm:$0xff]
          %v2018 = vld [vmem:[#allocation8 + $0x130] sm:$0xff]
          %v2019 = vld [vmem:[#allocation8 + $0x138] sm:$0xff]
          %v2020 = vld [vmem:[#allocation8 + $0x140] sm:$0xff]
          %v2021 = vld [vmem:[#allocation8 + $0x148] sm:$0xff]
          %v2022 = vld [vmem:[#allocation8 + $0x150] sm:$0xff]
          %v2023 = vld [vmem:[#allocation8 + $0x158] sm:$0xff]
          %v2024 = vld [vmem:[#allocation8 + $0x160] sm:$0xff]
          %v2025 = vld [vmem:[#allocation8 + $0x168] sm:$0xff]
          %v2026 = vld [vmem:[#allocation8 + $0x170] sm:$0xff]
          %v2027 = vld [vmem:[#allocation8 + $0x178] sm:$0xff]
          %v2028 = vld [vmem:[#allocation8 + $0x180] sm:$0xff]
          %v2029 = vld [vmem:[#allocation8 + $0x188] sm:$0xff]
          %v2030 = vld [vmem:[#allocation8 + $0x190] sm:$0xff]
          %v2031 = vld [vmem:[#allocation8 + $0x198] sm:$0xff]
          %v2032 = vld [vmem:[#allocation8 + $0x1a0] sm:$0xff]
          %v2033 = vld [vmem:[#allocation8 + $0x1a8] sm:$0xff]
          %v2034 = vld [vmem:[#allocation8 + $0x1b0] sm:$0xff]
          %v2035 = vld [vmem:[#allocation8 + $0x1b8] sm:$0xff]
          %v2036 = vld [vmem:[#allocation8 + $0x1c0] sm:$0xff]
          %v2037 = vld [vmem:[#allocation8 + $0x1c8] sm:$0xff]
          %v2038 = vld [vmem:[#allocation8 + $0x1d0] sm:$0xff]
          %v2039 = vld [vmem:[#allocation8 + $0x1d8] sm:$0xff]
          %v2040 = vld [vmem:[#allocation8 + $0x1e0] sm:$0xff]
          %v2041 = vld [vmem:[#allocation8 + $0x1e8] sm:$0xff]
          %v2042 = vld [vmem:[#allocation8 + $0x1f0] sm:$0xff]
          %v2043 = vld [vmem:[#allocation8 + $0x1f8] sm:$0xff]
          %v2044 = vld [vmem:[#allocation8 + $0x200] sm:$0xff]
          %v2045 = vld [vmem:[#allocation8 + $0x208] sm:$0xff]
          %v2046 = vld [vmem:[#allocation8 + $0x210] sm:$0xff]
          %v2047 = vld [vmem:[#allocation8 + $0x218] sm:$0xff]
          %v2048 = vld [vmem:[#allocation8 + $0x220] sm:$0xff]
          %v2049 = vld [vmem:[#allocation8 + $0x228] sm:$0xff]
          %v2050 = vld [vmem:[#allocation8 + $0x230] sm:$0xff]
          %v2051 = vld [vmem:[#allocation8 + $0x238] sm:$0xff]
          %v2052 = vld [vmem:[#allocation8 + $0x240] sm:$0xff]
          %v2053 = vld [vmem:[#allocation8 + $0x248] sm:$0xff]
          %v2054 = vld [vmem:[#allocation8 + $0x250] sm:$0xff]
          %v2055 = vld [vmem:[#allocation8 + $0x258] sm:$0xff]
          %v2056 = vld [vmem:[#allocation8 + $0x260] sm:$0xff]
          %v2057 = vld [vmem:[#allocation8 + $0x268] sm:$0xff]
          %v2058 = vld [vmem:[#allocation8 + $0x270] sm:$0xff]
          %v2059 = vld [vmem:[#allocation8 + $0x278] sm:$0xff]
          %v2060 = vld [vmem:[#allocation8 + $0x280] sm:$0xff]
          %v2061 = vld [vmem:[#allocation8 + $0x288] sm:$0xff]
          %v2062 = vld [vmem:[#allocation8 + $0x290] sm:$0xff]
          %v2063 = vld [vmem:[#allocation8 + $0x298] sm:$0xff]
          %v2064 = vld [vmem:[#allocation8 + $0x2a0] sm:$0xff]
          %v2065 = vld [vmem:[#allocation8 + $0x2a8] sm:$0xff]
          %v2066 = vld [vmem:[#allocation8 + $0x2b0] sm:$0xff]
          %v2067 = vld [vmem:[#allocation8 + $0x2b8] sm:$0xff]
          %v2068 = vld [vmem:[#allocation8 + $0x2c0] sm:$0xff]
          %v2069 = vld [vmem:[#allocation8 + $0x2c8] sm:$0xff]
          %v2070 = vld [vmem:[#allocation8 + $0x2d0] sm:$0xff]
          %v2071 = vld [vmem:[#allocation8 + $0x2d8] sm:$0xff]
          %v2072 = vld [vmem:[#allocation8 + $0x2e0] sm:$0xff]
          %v2073 = vld [vmem:[#allocation8 + $0x2e8] sm:$0xff]
          %v2074 = vld [vmem:[#allocation8 + $0x2f0] sm:$0xff]
          %v2075 = vld [vmem:[#allocation8 + $0x2f8] sm:$0xff]
          %v2076 = vld [vmem:[#allocation8 + $0x300] sm:$0xff]
          %v2077 = vld [vmem:[#allocation8 + $0x308] sm:$0xff]
          %v2078 = vld [vmem:[#allocation8 + $0x310] sm:$0xff]
          %v2079 = vld [vmem:[#allocation8 + $0x318] sm:$0xff]
          %v2080 = vld [vmem:[#allocation8 + $0x320] sm:$0xff]
          %v2081 = vld [vmem:[#allocation8 + $0x328] sm:$0xff]
          %v2082 = vld [vmem:[#allocation8 + $0x330] sm:$0xff]
          %v2083 = vld [vmem:[#allocation8 + $0x338] sm:$0xff]
          %v2084 = vld [vmem:[#allocation8 + $0x340] sm:$0xff]
          %v2085 = vld [vmem:[#allocation8 + $0x348] sm:$0xff]
          %v2086 = vld [vmem:[#allocation8 + $0x350] sm:$0xff]
          %v2087 = vld [vmem:[#allocation8 + $0x358] sm:$0xff]
          %v2088 = vld [vmem:[#allocation8 + $0x360] sm:$0xff]
          %v2089 = vld [vmem:[#allocation8 + $0x368] sm:$0xff]
          %v2090 = vld [vmem:[#allocation8 + $0x370] sm:$0xff]
          %v2091 = vld [vmem:[#allocation8 + $0x378] sm:$0xff]
          %v2092 = vld [vmem:[#allocation8 + $0x380] sm:$0xff]
          %v2093 = vld [vmem:[#allocation8 + $0x388] sm:$0xff]
          %v2094 = vld [vmem:[#allocation8 + $0x390] sm:$0xff]
          %v2095 = vld [vmem:[#allocation8 + $0x398] sm:$0xff]
          %v2096 = vld [vmem:[#allocation8 + $0x3a0] sm:$0xff]
          %v2097 = vld [vmem:[#allocation8 + $0x3a8] sm:$0xff]
          %v2098 = vld [vmem:[#allocation8 + $0x3b0] sm:$0xff]
          %v2099 = vld [vmem:[#allocation8 + $0x3b8] sm:$0xff]
          %v2100 = vld [vmem:[#allocation8 + $0x3c0] sm:$0xff]
          %v2101 = vld [vmem:[#allocation8 + $0x3c8] sm:$0xff]
          %v2102 = vld [vmem:[#allocation8 + $0x3d0] sm:$0xff]
          %v2103 = vld [vmem:[#allocation8 + $0x3d8] sm:$0xff]
          %v2104 = vld [vmem:[#allocation8 + $0x3e0] sm:$0xff]
          %v2105 = vld [vmem:[#allocation8 + $0x3e8] sm:$0xff]
          %v2106 = vld [vmem:[#allocation8 + $0x3f0] sm:$0xff]
          %v2107 = vld [vmem:[#allocation8 + $0x3f8] sm:$0xff]
          %v2108 = vld [vmem:[#allocation8 + $0x400] sm:$0xff]
          %v2109 = vld [vmem:[#allocation8 + $0x408] sm:$0xff]
          %v2110 = vld [vmem:[#allocation8 + $0x410] sm:$0xff]
          %v2111 = vld [vmem:[#allocation8 + $0x418] sm:$0xff]
          %v2112 = vld [vmem:[#allocation8 + $0x420] sm:$0xff]
          %v2113 = vld [vmem:[#allocation8 + $0x428] sm:$0xff]
          %v2114 = vld [vmem:[#allocation8 + $0x430] sm:$0xff]
          %v2115 = vld [vmem:[#allocation8 + $0x438] sm:$0xff]
          %v2116 = vld [vmem:[#allocation8 + $0x440] sm:$0xff]
          %v2117 = vld [vmem:[#allocation8 + $0x448] sm:$0xff]
          %v2118 = vld [vmem:[#allocation8 + $0x450] sm:$0xff]
          %v2119 = vld [vmem:[#allocation8 + $0x458] sm:$0xff]
          %v2120 = vld [vmem:[#allocation8 + $0x460] sm:$0xff]
          %v2121 = vld [vmem:[#allocation8 + $0x468] sm:$0xff]
          %v2122 = vld [vmem:[#allocation8 + $0x470] sm:$0xff]
          %v2123 = vld [vmem:[#allocation8 + $0x478] sm:$0xff]
          %v2124 = vld [vmem:[#allocation8 + $0x480] sm:$0xff]
          %v2125 = vld [vmem:[#allocation8 + $0x488] sm:$0xff]
          %v2126 = vld [vmem:[#allocation8 + $0x490] sm:$0xff]
          %v2127 = vld [vmem:[#allocation8 + $0x498] sm:$0xff]
          %v2128 = vld [vmem:[#allocation8 + $0x4a0] sm:$0xff]
          %v2129 = vld [vmem:[#allocation8 + $0x4a8] sm:$0xff]
          %v2130 = vld [vmem:[#allocation8 + $0x4b0] sm:$0xff]
          %v2131 = vld [vmem:[#allocation8 + $0x4b8] sm:$0xff]
          %v2132 = vld [vmem:[#allocation8 + $0x4c0] sm:$0xff]
          %v2133 = vld [vmem:[#allocation8 + $0x4c8] sm:$0xff]
          %v2134 = vld [vmem:[#allocation8 + $0x4d0] sm:$0xff]
          %v2135 = vld [vmem:[#allocation8 + $0x4d8] sm:$0xff]
          %v2136 = vld [vmem:[#allocation8 + $0x4e0] sm:$0xff]
          %v2137 = vld [vmem:[#allocation8 + $0x4e8] sm:$0xff]
          %v2138 = vld [vmem:[#allocation8 + $0x4f0] sm:$0xff]
          %v2139 = vld [vmem:[#allocation8 + $0x4f8] sm:$0xff]
          %v2140 = vld [vmem:[#allocation8 + $0x500] sm:$0xff]
          %v2141 = vld [vmem:[#allocation8 + $0x508] sm:$0xff]
          %v2142 = vld [vmem:[#allocation8 + $0x510] sm:$0xff]
          %v2143 = vld [vmem:[#allocation8 + $0x518] sm:$0xff]
          %v2144 = vld [vmem:[#allocation8 + $0x520] sm:$0xff]
          %v2145 = vld [vmem:[#allocation8 + $0x528] sm:$0xff]
          %v2146 = vld [vmem:[#allocation8 + $0x530] sm:$0xff]
          %v2147 = vld [vmem:[#allocation8 + $0x538] sm:$0xff]
          %v2148 = vld [vmem:[#allocation8 + $0x540] sm:$0xff]
          %v2149 = vld [vmem:[#allocation8 + $0x548] sm:$0xff]
          %v2150 = vld [vmem:[#allocation8 + $0x550] sm:$0xff]
          %v2151 = vld [vmem:[#allocation8 + $0x558] sm:$0xff]
          %v2152 = vld [vmem:[#allocation8 + $0x560] sm:$0xff]
          %v2153 = vld [vmem:[#allocation8 + $0x568] sm:$0xff]
          %v2154 = vld [vmem:[#allocation8 + $0x570] sm:$0xff]
          %v2155 = vld [vmem:[#allocation8 + $0x578] sm:$0xff]
          %v2156 = vld [vmem:[#allocation8 + $0x580] sm:$0xff]
          %v2157 = vld [vmem:[#allocation8 + $0x588] sm:$0xff]
          %v2158 = vld [vmem:[#allocation8 + $0x590] sm:$0xff]
          %v2159 = vld [vmem:[#allocation8 + $0x598] sm:$0xff]
          %v2160 = vld [vmem:[#allocation8 + $0x5a0] sm:$0xff]
          %v2161 = vld [vmem:[#allocation8 + $0x5a8] sm:$0xff]
          %v2162 = vld [vmem:[#allocation8 + $0x5b0] sm:$0xff]
          %v2163 = vld [vmem:[#allocation8 + $0x5b8] sm:$0xff]
          %v2164 = vld [vmem:[#allocation8 + $0x5c0] sm:$0xff]
          %v2165 = vld [vmem:[#allocation8 + $0x5c8] sm:$0xff]
          %v2166 = vld [vmem:[#allocation8 + $0x5d0] sm:$0xff]
          %v2167 = vld [vmem:[#allocation8 + $0x5d8] sm:$0xff]
          %v2168 = vld [vmem:[#allocation8 + $0x5e0] sm:$0xff]
          %v2169 = vld [vmem:[#allocation8 + $0x5e8] sm:$0xff]
          %v2170 = vld [vmem:[#allocation8 + $0x5f0] sm:$0xff]
          %v2171 = vld [vmem:[#allocation8 + $0x5f8] sm:$0xff]
          %v2172 = vld [vmem:[#allocation8 + $0x600] sm:$0xff]
          %v2173 = vld [vmem:[#allocation8 + $0x608] sm:$0xff]
          %v2174 = vld [vmem:[#allocation8 + $0x610] sm:$0xff]
          %v2175 = vld [vmem:[#allocation8 + $0x618] sm:$0xff]
          %v2176 = vld [vmem:[#allocation8 + $0x620] sm:$0xff]
          %v2177 = vld [vmem:[#allocation8 + $0x628] sm:$0xff]
          %v2178 = vld [vmem:[#allocation8 + $0x630] sm:$0xff]
          %v2179 = vld [vmem:[#allocation8 + $0x638] sm:$0xff]
          %v2180 = vld [vmem:[#allocation8 + $0x640] sm:$0xff]
          %v2181 = vld [vmem:[#allocation8 + $0x648] sm:$0xff]
          %v2182 = vld [vmem:[#allocation8 + $0x650] sm:$0xff]
          %v2183 = vld [vmem:[#allocation8 + $0x658] sm:$0xff]
          %v2184 = vld [vmem:[#allocation8 + $0x660] sm:$0xff]
          %v2185 = vld [vmem:[#allocation8 + $0x668] sm:$0xff]
          %v2186 = vld [vmem:[#allocation8 + $0x670] sm:$0xff]
          %v2187 = vld [vmem:[#allocation8 + $0x678] sm:$0xff]
          %v2188 = vld [vmem:[#allocation8 + $0x680] sm:$0xff]
          %v2189 = vld [vmem:[#allocation8 + $0x688] sm:$0xff]
          %v2190 = vld [vmem:[#allocation8 + $0x690] sm:$0xff]
          %v2191 = vld [vmem:[#allocation8 + $0x698] sm:$0xff]
          %v2192 = vld [vmem:[#allocation8 + $0x6a0] sm:$0xff]
          %v2193 = vld [vmem:[#allocation8 + $0x6a8] sm:$0xff]
          %v2194 = vld [vmem:[#allocation8 + $0x6b0] sm:$0xff]
          %v2195 = vld [vmem:[#allocation8 + $0x6b8] sm:$0xff]
          %v2196 = vld [vmem:[#allocation8 + $0x6c0] sm:$0xff]
          %v2197 = vld [vmem:[#allocation8 + $0x6c8] sm:$0xff]
          %v2198 = vld [vmem:[#allocation8 + $0x6d0] sm:$0xff]
          %v2199 = vld [vmem:[#allocation8 + $0x6d8] sm:$0xff]
          %v2200 = vld [vmem:[#allocation8 + $0x6e0] sm:$0xff]
          %v2201 = vld [vmem:[#allocation8 + $0x6e8] sm:$0xff]
          %v2202 = vld [vmem:[#allocation8 + $0x6f0] sm:$0xff]
          %v2203 = vld [vmem:[#allocation8 + $0x6f8] sm:$0xff]
          %v2204 = vld [vmem:[#allocation8 + $0x700] sm:$0xff]
          %v2205 = vld [vmem:[#allocation8 + $0x708] sm:$0xff]
          %v2206 = vld [vmem:[#allocation8 + $0x710] sm:$0xff]
          %v2207 = vld [vmem:[#allocation8 + $0x718] sm:$0xff]
          %v2208 = vld [vmem:[#allocation8 + $0x720] sm:$0xff]
          %v2209 = vld [vmem:[#allocation8 + $0x728] sm:$0xff]
          %v2210 = vld [vmem:[#allocation8 + $0x730] sm:$0xff]
          %v2211 = vld [vmem:[#allocation8 + $0x738] sm:$0xff]
          %v2212 = vld [vmem:[#allocation8 + $0x740] sm:$0xff]
          %v2213 = vld [vmem:[#allocation8 + $0x748] sm:$0xff]
          %v2214 = vld [vmem:[#allocation8 + $0x750] sm:$0xff]
          %v2215 = vld [vmem:[#allocation8 + $0x758] sm:$0xff]
          %v2216 = vld [vmem:[#allocation8 + $0x760] sm:$0xff]
          %v2217 = vld [vmem:[#allocation8 + $0x768] sm:$0xff]
          %v2218 = vld [vmem:[#allocation8 + $0x770] sm:$0xff]
          %v2219 = vld [vmem:[#allocation8 + $0x778] sm:$0xff]
          %v2220 = vld [vmem:[#allocation8 + $0x780] sm:$0xff]
          %v2221 = vld [vmem:[#allocation8 + $0x788] sm:$0xff]
          %v2222 = vld [vmem:[#allocation8 + $0x790] sm:$0xff]
          %v2223 = vld [vmem:[#allocation8 + $0x798] sm:$0xff]
          %v2224 = vld [vmem:[#allocation8 + $0x7a0] sm:$0xff]
          %v2225 = vld [vmem:[#allocation8 + $0x7a8] sm:$0xff]
          %v2226 = vld [vmem:[#allocation8 + $0x7b0] sm:$0xff]
          %v2227 = vld [vmem:[#allocation8 + $0x7b8] sm:$0xff]
          %v2228 = vld [vmem:[#allocation8 + $0x7c0] sm:$0xff]
          %v2229 = vld [vmem:[#allocation8 + $0x7c8] sm:$0xff]
          %v2230 = vld [vmem:[#allocation8 + $0x7d0] sm:$0xff]
          %v2231 = vld [vmem:[#allocation8 + $0x7d8] sm:$0xff]
          %v2232 = vld [vmem:[#allocation8 + $0x7e0] sm:$0xff]
          %v2233 = vld [vmem:[#allocation8 + $0x7e8] sm:$0xff]
          %v2234 = vld [vmem:[#allocation8 + $0x7f0] sm:$0xff]
          %v2235 = vld [vmem:[#allocation8 + $0x7f8] sm:$0xff]
          %v2236 = vld [vmem:[%s8] sm:$0xf]
          %v2238 = vlaneseq
          %v2239 = vshrl.u32 %v2238, 7
          %v2240 = vsub.s32 0, %v2239
          %v2241 = vrot.slane %v2236, %v2240
          %v2242 = vlaneseq
          %v2243 = vshrl.u32 %v2242, 7
          %v2244 = vsub.s32 1, %v2243
          %v2245 = vrot.slane %v2236, %v2244
          %v2246 = vlaneseq
          %v2247 = vshrl.u32 %v2246, 7
          %v2248 = vsub.s32 2, %v2247
          %v2249 = vrot.slane %v2236, %v2248
          %v2250 = vlaneseq
          %v2251 = vshrl.u32 %v2250, 7
          %v2252 = vsub.s32 3, %v2251
          %v2253 = vrot.slane %v2236, %v2252
          %v2514 = vunpack.c.l.b16 %v1980
          %v2515 = vunpack.c.h.b16 %v1980
          %v2516 = vunpack.c.l.b16 %v1981
          %v2517 = vunpack.c.h.b16 %v1981
          %v2518 = vunpack.c.l.b16 %v1982
          %v2519 = vunpack.c.h.b16 %v1982
          %v2520 = vunpack.c.l.b16 %v1983
          %v2521 = vunpack.c.h.b16 %v1983
          %v2522 = vunpack.c.l.b16 %v1984
          %v2523 = vunpack.c.h.b16 %v1984
          %v2524 = vunpack.c.l.b16 %v1985
          %v2525 = vunpack.c.h.b16 %v1985
          %v2526 = vunpack.c.l.b16 %v1986
          %v2527 = vunpack.c.h.b16 %v1986
          %v2528 = vunpack.c.l.b16 %v1987
          %v2529 = vunpack.c.h.b16 %v1987
          %v2530 = vunpack.c.l.b16 %v1988
          %v2531 = vunpack.c.h.b16 %v1988
          %v2532 = vunpack.c.l.b16 %v1989
          %v2533 = vunpack.c.h.b16 %v1989
          %v2534 = vunpack.c.l.b16 %v1990
          %v2535 = vunpack.c.h.b16 %v1990
          %v2536 = vunpack.c.l.b16 %v1991
          %v2537 = vunpack.c.h.b16 %v1991
          %v2538 = vunpack.c.l.b16 %v1992
          %v2539 = vunpack.c.h.b16 %v1992
          %v2540 = vunpack.c.l.b16 %v1993
          %v2541 = vunpack.c.h.b16 %v1993
          %v2542 = vunpack.c.l.b16 %v1994
          %v2543 = vunpack.c.h.b16 %v1994
          %v2544 = vunpack.c.l.b16 %v1995
          %v2545 = vunpack.c.h.b16 %v1995
          %v2546 = vunpack.c.l.b16 %v1996
          %v2547 = vunpack.c.h.b16 %v1996
          %v2548 = vunpack.c.l.b16 %v1997
          %v2549 = vunpack.c.h.b16 %v1997
          %v2550 = vunpack.c.l.b16 %v1998
          %v2551 = vunpack.c.h.b16 %v1998
          %v2552 = vunpack.c.l.b16 %v1999
          %v2553 = vunpack.c.h.b16 %v1999
          %v2554 = vunpack.c.l.b16 %v2000
          %v2555 = vunpack.c.h.b16 %v2000
          %v2556 = vunpack.c.l.b16 %v2001
          %v2557 = vunpack.c.h.b16 %v2001
          %v2558 = vunpack.c.l.b16 %v2002
          %v2559 = vunpack.c.h.b16 %v2002
          %v2560 = vunpack.c.l.b16 %v2003
          %v2561 = vunpack.c.h.b16 %v2003
          %v2562 = vunpack.c.l.b16 %v2004
          %v2563 = vunpack.c.h.b16 %v2004
          %v2564 = vunpack.c.l.b16 %v2005
          %v2565 = vunpack.c.h.b16 %v2005
          %v2566 = vunpack.c.l.b16 %v2006
          %v2567 = vunpack.c.h.b16 %v2006
          %v2568 = vunpack.c.l.b16 %v2007
          %v2569 = vunpack.c.h.b16 %v2007
          %v2570 = vunpack.c.l.b16 %v2008
          %v2571 = vunpack.c.h.b16 %v2008
          %v2572 = vunpack.c.l.b16 %v2009
          %v2573 = vunpack.c.h.b16 %v2009
          %v2574 = vunpack.c.l.b16 %v2010
          %v2575 = vunpack.c.h.b16 %v2010
          %v2576 = vunpack.c.l.b16 %v2011
          %v2577 = vunpack.c.h.b16 %v2011
          %v2578 = vunpack.c.l.b16 %v2012
          %v2579 = vunpack.c.h.b16 %v2012
          %v2580 = vunpack.c.l.b16 %v2013
          %v2581 = vunpack.c.h.b16 %v2013
          %v2582 = vunpack.c.l.b16 %v2014
          %v2583 = vunpack.c.h.b16 %v2014
          %v2584 = vunpack.c.l.b16 %v2015
          %v2585 = vunpack.c.h.b16 %v2015
          %v2586 = vunpack.c.l.b16 %v2016
          %v2587 = vunpack.c.h.b16 %v2016
          %v2588 = vunpack.c.l.b16 %v2017
          %v2589 = vunpack.c.h.b16 %v2017
          %v2590 = vunpack.c.l.b16 %v2018
          %v2591 = vunpack.c.h.b16 %v2018
          %v2592 = vunpack.c.l.b16 %v2019
          %v2593 = vunpack.c.h.b16 %v2019
          %v2594 = vunpack.c.l.b16 %v2020
          %v2595 = vunpack.c.h.b16 %v2020
          %v2596 = vunpack.c.l.b16 %v2021
          %v2597 = vunpack.c.h.b16 %v2021
          %v2598 = vunpack.c.l.b16 %v2022
          %v2599 = vunpack.c.h.b16 %v2022
          %v2600 = vunpack.c.l.b16 %v2023
          %v2601 = vunpack.c.h.b16 %v2023
          %v2602 = vunpack.c.l.b16 %v2024
          %v2603 = vunpack.c.h.b16 %v2024
          %v2604 = vunpack.c.l.b16 %v2025
          %v2605 = vunpack.c.h.b16 %v2025
          %v2606 = vunpack.c.l.b16 %v2026
          %v2607 = vunpack.c.h.b16 %v2026
          %v2608 = vunpack.c.l.b16 %v2027
          %v2609 = vunpack.c.h.b16 %v2027
          %v2610 = vunpack.c.l.b16 %v2028
          %v2611 = vunpack.c.h.b16 %v2028
          %v2612 = vunpack.c.l.b16 %v2029
          %v2613 = vunpack.c.h.b16 %v2029
          %v2614 = vunpack.c.l.b16 %v2030
          %v2615 = vunpack.c.h.b16 %v2030
          %v2616 = vunpack.c.l.b16 %v2031
          %v2617 = vunpack.c.h.b16 %v2031
          %v2618 = vunpack.c.l.b16 %v2032
          %v2619 = vunpack.c.h.b16 %v2032
          %v2620 = vunpack.c.l.b16 %v2033
          %v2621 = vunpack.c.h.b16 %v2033
          %v2622 = vunpack.c.l.b16 %v2034
          %v2623 = vunpack.c.h.b16 %v2034
          %v2624 = vunpack.c.l.b16 %v2035
          %v2625 = vunpack.c.h.b16 %v2035
          %v2626 = vunpack.c.l.b16 %v2036
          %v2627 = vunpack.c.h.b16 %v2036
          %v2628 = vunpack.c.l.b16 %v2037
          %v2629 = vunpack.c.h.b16 %v2037
          %v2630 = vunpack.c.l.b16 %v2038
          %v2631 = vunpack.c.h.b16 %v2038
          %v2632 = vunpack.c.l.b16 %v2039
          %v2633 = vunpack.c.h.b16 %v2039
          %v2634 = vunpack.c.l.b16 %v2040
          %v2635 = vunpack.c.h.b16 %v2040
          %v2636 = vunpack.c.l.b16 %v2041
          %v2637 = vunpack.c.h.b16 %v2041
          %v2638 = vunpack.c.l.b16 %v2042
          %v2639 = vunpack.c.h.b16 %v2042
          %v2640 = vunpack.c.l.b16 %v2043
          %v2641 = vunpack.c.h.b16 %v2043
          %v2642 = vunpack.c.l.b16 %v2044
          %v2643 = vunpack.c.h.b16 %v2044
          %v2644 = vunpack.c.l.b16 %v2045
          %v2645 = vunpack.c.h.b16 %v2045
          %v2646 = vunpack.c.l.b16 %v2046
          %v2647 = vunpack.c.h.b16 %v2046
          %v2648 = vunpack.c.l.b16 %v2047
          %v2649 = vunpack.c.h.b16 %v2047
          %v2650 = vunpack.c.l.b16 %v2048
          %v2651 = vunpack.c.h.b16 %v2048
          %v2652 = vunpack.c.l.b16 %v2049
          %v2653 = vunpack.c.h.b16 %v2049
          %v2654 = vunpack.c.l.b16 %v2050
          %v2655 = vunpack.c.h.b16 %v2050
          %v2656 = vunpack.c.l.b16 %v2051
          %v2657 = vunpack.c.h.b16 %v2051
          %v2658 = vunpack.c.l.b16 %v2052
          %v2659 = vunpack.c.h.b16 %v2052
          %v2660 = vunpack.c.l.b16 %v2053
          %v2661 = vunpack.c.h.b16 %v2053
          %v2662 = vunpack.c.l.b16 %v2054
          %v2663 = vunpack.c.h.b16 %v2054
          %v2664 = vunpack.c.l.b16 %v2055
          %v2665 = vunpack.c.h.b16 %v2055
          %v2666 = vunpack.c.l.b16 %v2056
          %v2667 = vunpack.c.h.b16 %v2056
          %v2668 = vunpack.c.l.b16 %v2057
          %v2669 = vunpack.c.h.b16 %v2057
          %v2670 = vunpack.c.l.b16 %v2058
          %v2671 = vunpack.c.h.b16 %v2058
          %v2672 = vunpack.c.l.b16 %v2059
          %v2673 = vunpack.c.h.b16 %v2059
          %v2674 = vunpack.c.l.b16 %v2060
          %v2675 = vunpack.c.h.b16 %v2060
          %v2676 = vunpack.c.l.b16 %v2061
          %v2677 = vunpack.c.h.b16 %v2061
          %v2678 = vunpack.c.l.b16 %v2062
          %v2679 = vunpack.c.h.b16 %v2062
          %v2680 = vunpack.c.l.b16 %v2063
          %v2681 = vunpack.c.h.b16 %v2063
          %v2682 = vunpack.c.l.b16 %v2064
          %v2683 = vunpack.c.h.b16 %v2064
          %v2684 = vunpack.c.l.b16 %v2065
          %v2685 = vunpack.c.h.b16 %v2065
          %v2686 = vunpack.c.l.b16 %v2066
          %v2687 = vunpack.c.h.b16 %v2066
          %v2688 = vunpack.c.l.b16 %v2067
          %v2689 = vunpack.c.h.b16 %v2067
          %v2690 = vunpack.c.l.b16 %v2068
          %v2691 = vunpack.c.h.b16 %v2068
          %v2692 = vunpack.c.l.b16 %v2069
          %v2693 = vunpack.c.h.b16 %v2069
          %v2694 = vunpack.c.l.b16 %v2070
          %v2695 = vunpack.c.h.b16 %v2070
          %v2696 = vunpack.c.l.b16 %v2071
          %v2697 = vunpack.c.h.b16 %v2071
          %v2698 = vunpack.c.l.b16 %v2072
          %v2699 = vunpack.c.h.b16 %v2072
          %v2700 = vunpack.c.l.b16 %v2073
          %v2701 = vunpack.c.h.b16 %v2073
          %v2702 = vunpack.c.l.b16 %v2074
          %v2703 = vunpack.c.h.b16 %v2074
          %v2704 = vunpack.c.l.b16 %v2075
          %v2705 = vunpack.c.h.b16 %v2075
          %v2706 = vunpack.c.l.b16 %v2076
          %v2707 = vunpack.c.h.b16 %v2076
          %v2708 = vunpack.c.l.b16 %v2077
          %v2709 = vunpack.c.h.b16 %v2077
          %v2710 = vunpack.c.l.b16 %v2078
          %v2711 = vunpack.c.h.b16 %v2078
          %v2712 = vunpack.c.l.b16 %v2079
          %v2713 = vunpack.c.h.b16 %v2079
          %v2714 = vunpack.c.l.b16 %v2080
          %v2715 = vunpack.c.h.b16 %v2080
          %v2716 = vunpack.c.l.b16 %v2081
          %v2717 = vunpack.c.h.b16 %v2081
          %v2718 = vunpack.c.l.b16 %v2082
          %v2719 = vunpack.c.h.b16 %v2082
          %v2720 = vunpack.c.l.b16 %v2083
          %v2721 = vunpack.c.h.b16 %v2083
          %v2722 = vunpack.c.l.b16 %v2084
          %v2723 = vunpack.c.h.b16 %v2084
          %v2724 = vunpack.c.l.b16 %v2085
          %v2725 = vunpack.c.h.b16 %v2085
          %v2726 = vunpack.c.l.b16 %v2086
          %v2727 = vunpack.c.h.b16 %v2086
          %v2728 = vunpack.c.l.b16 %v2087
          %v2729 = vunpack.c.h.b16 %v2087
          %v2730 = vunpack.c.l.b16 %v2088
          %v2731 = vunpack.c.h.b16 %v2088
          %v2732 = vunpack.c.l.b16 %v2089
          %v2733 = vunpack.c.h.b16 %v2089
          %v2734 = vunpack.c.l.b16 %v2090
          %v2735 = vunpack.c.h.b16 %v2090
          %v2736 = vunpack.c.l.b16 %v2091
          %v2737 = vunpack.c.h.b16 %v2091
          %v2738 = vunpack.c.l.b16 %v2092
          %v2739 = vunpack.c.h.b16 %v2092
          %v2740 = vunpack.c.l.b16 %v2093
          %v2741 = vunpack.c.h.b16 %v2093
          %v2742 = vunpack.c.l.b16 %v2094
          %v2743 = vunpack.c.h.b16 %v2094
          %v2744 = vunpack.c.l.b16 %v2095
          %v2745 = vunpack.c.h.b16 %v2095
          %v2746 = vunpack.c.l.b16 %v2096
          %v2747 = vunpack.c.h.b16 %v2096
          %v2748 = vunpack.c.l.b16 %v2097
          %v2749 = vunpack.c.h.b16 %v2097
          %v2750 = vunpack.c.l.b16 %v2098
          %v2751 = vunpack.c.h.b16 %v2098
          %v2752 = vunpack.c.l.b16 %v2099
          %v2753 = vunpack.c.h.b16 %v2099
          %v2754 = vunpack.c.l.b16 %v2100
          %v2755 = vunpack.c.h.b16 %v2100
          %v2756 = vunpack.c.l.b16 %v2101
          %v2757 = vunpack.c.h.b16 %v2101
          %v2758 = vunpack.c.l.b16 %v2102
          %v2759 = vunpack.c.h.b16 %v2102
          %v2760 = vunpack.c.l.b16 %v2103
          %v2761 = vunpack.c.h.b16 %v2103
          %v2762 = vunpack.c.l.b16 %v2104
          %v2763 = vunpack.c.h.b16 %v2104
          %v2764 = vunpack.c.l.b16 %v2105
          %v2765 = vunpack.c.h.b16 %v2105
          %v2766 = vunpack.c.l.b16 %v2106
          %v2767 = vunpack.c.h.b16 %v2106
          %v2768 = vunpack.c.l.b16 %v2107
          %v2769 = vunpack.c.h.b16 %v2107
          %v2770 = vunpack.c.l.b16 %v2108
          %v2771 = vunpack.c.h.b16 %v2108
          %v2772 = vunpack.c.l.b16 %v2109
          %v2773 = vunpack.c.h.b16 %v2109
          %v2774 = vunpack.c.l.b16 %v2110
          %v2775 = vunpack.c.h.b16 %v2110
          %v2776 = vunpack.c.l.b16 %v2111
          %v2777 = vunpack.c.h.b16 %v2111
          %v2778 = vunpack.c.l.b16 %v2112
          %v2779 = vunpack.c.h.b16 %v2112
          %v2780 = vunpack.c.l.b16 %v2113
          %v2781 = vunpack.c.h.b16 %v2113
          %v2782 = vunpack.c.l.b16 %v2114
          %v2783 = vunpack.c.h.b16 %v2114
          %v2784 = vunpack.c.l.b16 %v2115
          %v2785 = vunpack.c.h.b16 %v2115
          %v2786 = vunpack.c.l.b16 %v2116
          %v2787 = vunpack.c.h.b16 %v2116
          %v2788 = vunpack.c.l.b16 %v2117
          %v2789 = vunpack.c.h.b16 %v2117
          %v2790 = vunpack.c.l.b16 %v2118
          %v2791 = vunpack.c.h.b16 %v2118
          %v2792 = vunpack.c.l.b16 %v2119
          %v2793 = vunpack.c.h.b16 %v2119
          %v2794 = vunpack.c.l.b16 %v2120
          %v2795 = vunpack.c.h.b16 %v2120
          %v2796 = vunpack.c.l.b16 %v2121
          %v2797 = vunpack.c.h.b16 %v2121
          %v2798 = vunpack.c.l.b16 %v2122
          %v2799 = vunpack.c.h.b16 %v2122
          %v2800 = vunpack.c.l.b16 %v2123
          %v2801 = vunpack.c.h.b16 %v2123
          %v2802 = vunpack.c.l.b16 %v2124
          %v2803 = vunpack.c.h.b16 %v2124
          %v2804 = vunpack.c.l.b16 %v2125
          %v2805 = vunpack.c.h.b16 %v2125
          %v2806 = vunpack.c.l.b16 %v2126
          %v2807 = vunpack.c.h.b16 %v2126
          %v2808 = vunpack.c.l.b16 %v2127
          %v2809 = vunpack.c.h.b16 %v2127
          %v2810 = vunpack.c.l.b16 %v2128
          %v2811 = vunpack.c.h.b16 %v2128
          %v2812 = vunpack.c.l.b16 %v2129
          %v2813 = vunpack.c.h.b16 %v2129
          %v2814 = vunpack.c.l.b16 %v2130
          %v2815 = vunpack.c.h.b16 %v2130
          %v2816 = vunpack.c.l.b16 %v2131
          %v2817 = vunpack.c.h.b16 %v2131
          %v2818 = vunpack.c.l.b16 %v2132
          %v2819 = vunpack.c.h.b16 %v2132
          %v2820 = vunpack.c.l.b16 %v2133
          %v2821 = vunpack.c.h.b16 %v2133
          %v2822 = vunpack.c.l.b16 %v2134
          %v2823 = vunpack.c.h.b16 %v2134
          %v2824 = vunpack.c.l.b16 %v2135
          %v2825 = vunpack.c.h.b16 %v2135
          %v2826 = vunpack.c.l.b16 %v2136
          %v2827 = vunpack.c.h.b16 %v2136
          %v2828 = vunpack.c.l.b16 %v2137
          %v2829 = vunpack.c.h.b16 %v2137
          %v2830 = vunpack.c.l.b16 %v2138
          %v2831 = vunpack.c.h.b16 %v2138
          %v2832 = vunpack.c.l.b16 %v2139
          %v2833 = vunpack.c.h.b16 %v2139
          %v2834 = vunpack.c.l.b16 %v2140
          %v2835 = vunpack.c.h.b16 %v2140
          %v2836 = vunpack.c.l.b16 %v2141
          %v2837 = vunpack.c.h.b16 %v2141
          %v2838 = vunpack.c.l.b16 %v2142
          %v2839 = vunpack.c.h.b16 %v2142
          %v2840 = vunpack.c.l.b16 %v2143
          %v2841 = vunpack.c.h.b16 %v2143
          %v2842 = vunpack.c.l.b16 %v2144
          %v2843 = vunpack.c.h.b16 %v2144
          %v2844 = vunpack.c.l.b16 %v2145
          %v2845 = vunpack.c.h.b16 %v2145
          %v2846 = vunpack.c.l.b16 %v2146
          %v2847 = vunpack.c.h.b16 %v2146
          %v2848 = vunpack.c.l.b16 %v2147
          %v2849 = vunpack.c.h.b16 %v2147
          %v2850 = vunpack.c.l.b16 %v2148
          %v2851 = vunpack.c.h.b16 %v2148
          %v2852 = vunpack.c.l.b16 %v2149
          %v2853 = vunpack.c.h.b16 %v2149
          %v2854 = vunpack.c.l.b16 %v2150
          %v2855 = vunpack.c.h.b16 %v2150
          %v2856 = vunpack.c.l.b16 %v2151
          %v2857 = vunpack.c.h.b16 %v2151
          %v2858 = vunpack.c.l.b16 %v2152
          %v2859 = vunpack.c.h.b16 %v2152
          %v2860 = vunpack.c.l.b16 %v2153
          %v2861 = vunpack.c.h.b16 %v2153
          %v2862 = vunpack.c.l.b16 %v2154
          %v2863 = vunpack.c.h.b16 %v2154
          %v2864 = vunpack.c.l.b16 %v2155
          %v2865 = vunpack.c.h.b16 %v2155
          %v2866 = vunpack.c.l.b16 %v2156
          %v2867 = vunpack.c.h.b16 %v2156
          %v2868 = vunpack.c.l.b16 %v2157
          %v2869 = vunpack.c.h.b16 %v2157
          %v2870 = vunpack.c.l.b16 %v2158
          %v2871 = vunpack.c.h.b16 %v2158
          %v2872 = vunpack.c.l.b16 %v2159
          %v2873 = vunpack.c.h.b16 %v2159
          %v2874 = vunpack.c.l.b16 %v2160
          %v2875 = vunpack.c.h.b16 %v2160
          %v2876 = vunpack.c.l.b16 %v2161
          %v2877 = vunpack.c.h.b16 %v2161
          %v2878 = vunpack.c.l.b16 %v2162
          %v2879 = vunpack.c.h.b16 %v2162
          %v2880 = vunpack.c.l.b16 %v2163
          %v2881 = vunpack.c.h.b16 %v2163
          %v2882 = vunpack.c.l.b16 %v2164
          %v2883 = vunpack.c.h.b16 %v2164
          %v2884 = vunpack.c.l.b16 %v2165
          %v2885 = vunpack.c.h.b16 %v2165
          %v2886 = vunpack.c.l.b16 %v2166
          %v2887 = vunpack.c.h.b16 %v2166
          %v2888 = vunpack.c.l.b16 %v2167
          %v2889 = vunpack.c.h.b16 %v2167
          %v2890 = vunpack.c.l.b16 %v2168
          %v2891 = vunpack.c.h.b16 %v2168
          %v2892 = vunpack.c.l.b16 %v2169
          %v2893 = vunpack.c.h.b16 %v2169
          %v2894 = vunpack.c.l.b16 %v2170
          %v2895 = vunpack.c.h.b16 %v2170
          %v2896 = vunpack.c.l.b16 %v2171
          %v2897 = vunpack.c.h.b16 %v2171
          %v2898 = vunpack.c.l.b16 %v2172
          %v2899 = vunpack.c.h.b16 %v2172
          %v2900 = vunpack.c.l.b16 %v2173
          %v2901 = vunpack.c.h.b16 %v2173
          %v2902 = vunpack.c.l.b16 %v2174
          %v2903 = vunpack.c.h.b16 %v2174
          %v2904 = vunpack.c.l.b16 %v2175
          %v2905 = vunpack.c.h.b16 %v2175
          %v2906 = vunpack.c.l.b16 %v2176
          %v2907 = vunpack.c.h.b16 %v2176
          %v2908 = vunpack.c.l.b16 %v2177
          %v2909 = vunpack.c.h.b16 %v2177
          %v2910 = vunpack.c.l.b16 %v2178
          %v2911 = vunpack.c.h.b16 %v2178
          %v2912 = vunpack.c.l.b16 %v2179
          %v2913 = vunpack.c.h.b16 %v2179
          %v2914 = vunpack.c.l.b16 %v2180
          %v2915 = vunpack.c.h.b16 %v2180
          %v2916 = vunpack.c.l.b16 %v2181
          %v2917 = vunpack.c.h.b16 %v2181
          %v2918 = vunpack.c.l.b16 %v2182
          %v2919 = vunpack.c.h.b16 %v2182
          %v2920 = vunpack.c.l.b16 %v2183
          %v2921 = vunpack.c.h.b16 %v2183
          %v2922 = vunpack.c.l.b16 %v2184
          %v2923 = vunpack.c.h.b16 %v2184
          %v2924 = vunpack.c.l.b16 %v2185
          %v2925 = vunpack.c.h.b16 %v2185
          %v2926 = vunpack.c.l.b16 %v2186
          %v2927 = vunpack.c.h.b16 %v2186
          %v2928 = vunpack.c.l.b16 %v2187
          %v2929 = vunpack.c.h.b16 %v2187
          %v2930 = vunpack.c.l.b16 %v2188
          %v2931 = vunpack.c.h.b16 %v2188
          %v2932 = vunpack.c.l.b16 %v2189
          %v2933 = vunpack.c.h.b16 %v2189
          %v2934 = vunpack.c.l.b16 %v2190
          %v2935 = vunpack.c.h.b16 %v2190
          %v2936 = vunpack.c.l.b16 %v2191
          %v2937 = vunpack.c.h.b16 %v2191
          %v2938 = vunpack.c.l.b16 %v2192
          %v2939 = vunpack.c.h.b16 %v2192
          %v2940 = vunpack.c.l.b16 %v2193
          %v2941 = vunpack.c.h.b16 %v2193
          %v2942 = vunpack.c.l.b16 %v2194
          %v2943 = vunpack.c.h.b16 %v2194
          %v2944 = vunpack.c.l.b16 %v2195
          %v2945 = vunpack.c.h.b16 %v2195
          %v2946 = vunpack.c.l.b16 %v2196
          %v2947 = vunpack.c.h.b16 %v2196
          %v2948 = vunpack.c.l.b16 %v2197
          %v2949 = vunpack.c.h.b16 %v2197
          %v2950 = vunpack.c.l.b16 %v2198
          %v2951 = vunpack.c.h.b16 %v2198
          %v2952 = vunpack.c.l.b16 %v2199
          %v2953 = vunpack.c.h.b16 %v2199
          %v2954 = vunpack.c.l.b16 %v2200
          %v2955 = vunpack.c.h.b16 %v2200
          %v2956 = vunpack.c.l.b16 %v2201
          %v2957 = vunpack.c.h.b16 %v2201
          %v2958 = vunpack.c.l.b16 %v2202
          %v2959 = vunpack.c.h.b16 %v2202
          %v2960 = vunpack.c.l.b16 %v2203
          %v2961 = vunpack.c.h.b16 %v2203
          %v2962 = vunpack.c.l.b16 %v2204
          %v2963 = vunpack.c.h.b16 %v2204
          %v2964 = vunpack.c.l.b16 %v2205
          %v2965 = vunpack.c.h.b16 %v2205
          %v2966 = vunpack.c.l.b16 %v2206
          %v2967 = vunpack.c.h.b16 %v2206
          %v2968 = vunpack.c.l.b16 %v2207
          %v2969 = vunpack.c.h.b16 %v2207
          %v2970 = vunpack.c.l.b16 %v2208
          %v2971 = vunpack.c.h.b16 %v2208
          %v2972 = vunpack.c.l.b16 %v2209
          %v2973 = vunpack.c.h.b16 %v2209
          %v2974 = vunpack.c.l.b16 %v2210
          %v2975 = vunpack.c.h.b16 %v2210
          %v2976 = vunpack.c.l.b16 %v2211
          %v2977 = vunpack.c.h.b16 %v2211
          %v2978 = vunpack.c.l.b16 %v2212
          %v2979 = vunpack.c.h.b16 %v2212
          %v2980 = vunpack.c.l.b16 %v2213
          %v2981 = vunpack.c.h.b16 %v2213
          %v2982 = vunpack.c.l.b16 %v2214
          %v2983 = vunpack.c.h.b16 %v2214
          %v2984 = vunpack.c.l.b16 %v2215
          %v2985 = vunpack.c.h.b16 %v2215
          %v2986 = vunpack.c.l.b16 %v2216
          %v2987 = vunpack.c.h.b16 %v2216
          %v2988 = vunpack.c.l.b16 %v2217
          %v2989 = vunpack.c.h.b16 %v2217
          %v2990 = vunpack.c.l.b16 %v2218
          %v2991 = vunpack.c.h.b16 %v2218
          %v2992 = vunpack.c.l.b16 %v2219
          %v2993 = vunpack.c.h.b16 %v2219
          %v2994 = vunpack.c.l.b16 %v2220
          %v2995 = vunpack.c.h.b16 %v2220
          %v2996 = vunpack.c.l.b16 %v2221
          %v2997 = vunpack.c.h.b16 %v2221
          %v2998 = vunpack.c.l.b16 %v2222
          %v2999 = vunpack.c.h.b16 %v2222
          %v3000 = vunpack.c.l.b16 %v2223
          %v3001 = vunpack.c.h.b16 %v2223
          %v3002 = vunpack.c.l.b16 %v2224
          %v3003 = vunpack.c.h.b16 %v2224
          %v3004 = vunpack.c.l.b16 %v2225
          %v3005 = vunpack.c.h.b16 %v2225
          %v3006 = vunpack.c.l.b16 %v2226
          %v3007 = vunpack.c.h.b16 %v2226
          %v3008 = vunpack.c.l.b16 %v2227
          %v3009 = vunpack.c.h.b16 %v2227
          %v3010 = vunpack.c.l.b16 %v2228
          %v3011 = vunpack.c.h.b16 %v2228
          %v3012 = vunpack.c.l.b16 %v2229
          %v3013 = vunpack.c.h.b16 %v2229
          %v3014 = vunpack.c.l.b16 %v2230
          %v3015 = vunpack.c.h.b16 %v2230
          %v3016 = vunpack.c.l.b16 %v2231
          %v3017 = vunpack.c.h.b16 %v2231
          %v3018 = vunpack.c.l.b16 %v2232
          %v3019 = vunpack.c.h.b16 %v2232
          %v3020 = vunpack.c.l.b16 %v2233
          %v3021 = vunpack.c.h.b16 %v2233
          %v3022 = vunpack.c.l.b16 %v2234
          %v3023 = vunpack.c.h.b16 %v2234
          %v3024 = vunpack.c.l.b16 %v2235
          %v3025 = vunpack.c.h.b16 %v2235
          %v3026 = vpack.c.b16 %v2518, %v2514
          %v3027 = vpack.c.b16 %v2519, %v2515
          %v3028 = vpack.c.b16 %v2520, %v2516
          %v3029 = vpack.c.b16 %v2521, %v2517
          %v3030 = vpack.c.b16 %v2526, %v2522
          %v3031 = vpack.c.b16 %v2527, %v2523
          %v3032 = vpack.c.b16 %v2528, %v2524
          %v3033 = vpack.c.b16 %v2529, %v2525
          %v3034 = vpack.c.b16 %v2534, %v2530
          %v3035 = vpack.c.b16 %v2535, %v2531
          %v3036 = vpack.c.b16 %v2536, %v2532
          %v3037 = vpack.c.b16 %v2537, %v2533
          %v3038 = vpack.c.b16 %v2542, %v2538
          %v3039 = vpack.c.b16 %v2543, %v2539
          %v3040 = vpack.c.b16 %v2544, %v2540
          %v3041 = vpack.c.b16 %v2545, %v2541
          %v3042 = vpack.c.b16 %v2550, %v2546
          %v3043 = vpack.c.b16 %v2551, %v2547
          %v3044 = vpack.c.b16 %v2552, %v2548
          %v3045 = vpack.c.b16 %v2553, %v2549
          %v3046 = vpack.c.b16 %v2558, %v2554
          %v3047 = vpack.c.b16 %v2559, %v2555
          %v3048 = vpack.c.b16 %v2560, %v2556
          %v3049 = vpack.c.b16 %v2561, %v2557
          %v3050 = vpack.c.b16 %v2566, %v2562
          %v3051 = vpack.c.b16 %v2567, %v2563
          %v3052 = vpack.c.b16 %v2568, %v2564
          %v3053 = vpack.c.b16 %v2569, %v2565
          %v3054 = vpack.c.b16 %v2574, %v2570
          %v3055 = vpack.c.b16 %v2575, %v2571
          %v3056 = vpack.c.b16 %v2576, %v2572
          %v3057 = vpack.c.b16 %v2577, %v2573
          %v3058 = vpack.c.b16 %v2582, %v2578
          %v3059 = vpack.c.b16 %v2583, %v2579
          %v3060 = vpack.c.b16 %v2584, %v2580
          %v3061 = vpack.c.b16 %v2585, %v2581
          %v3062 = vpack.c.b16 %v2590, %v2586
          %v3063 = vpack.c.b16 %v2591, %v2587
          %v3064 = vpack.c.b16 %v2592, %v2588
          %v3065 = vpack.c.b16 %v2593, %v2589
          %v3066 = vpack.c.b16 %v2598, %v2594
          %v3067 = vpack.c.b16 %v2599, %v2595
          %v3068 = vpack.c.b16 %v2600, %v2596
          %v3069 = vpack.c.b16 %v2601, %v2597
          %v3070 = vpack.c.b16 %v2606, %v2602
          %v3071 = vpack.c.b16 %v2607, %v2603
          %v3072 = vpack.c.b16 %v2608, %v2604
          %v3073 = vpack.c.b16 %v2609, %v2605
          %v3074 = vpack.c.b16 %v2614, %v2610
          %v3075 = vpack.c.b16 %v2615, %v2611
          %v3076 = vpack.c.b16 %v2616, %v2612
          %v3077 = vpack.c.b16 %v2617, %v2613
          %v3078 = vpack.c.b16 %v2622, %v2618
          %v3079 = vpack.c.b16 %v2623, %v2619
          %v3080 = vpack.c.b16 %v2624, %v2620
          %v3081 = vpack.c.b16 %v2625, %v2621
          %v3082 = vpack.c.b16 %v2630, %v2626
          %v3083 = vpack.c.b16 %v2631, %v2627
          %v3084 = vpack.c.b16 %v2632, %v2628
          %v3085 = vpack.c.b16 %v2633, %v2629
          %v3086 = vpack.c.b16 %v2638, %v2634
          %v3087 = vpack.c.b16 %v2639, %v2635
          %v3088 = vpack.c.b16 %v2640, %v2636
          %v3089 = vpack.c.b16 %v2641, %v2637
          %v3090 = vpack.c.b16 %v2646, %v2642
          %v3091 = vpack.c.b16 %v2647, %v2643
          %v3092 = vpack.c.b16 %v2648, %v2644
          %v3093 = vpack.c.b16 %v2649, %v2645
          %v3094 = vpack.c.b16 %v2654, %v2650
          %v3095 = vpack.c.b16 %v2655, %v2651
          %v3096 = vpack.c.b16 %v2656, %v2652
          %v3097 = vpack.c.b16 %v2657, %v2653
          %v3098 = vpack.c.b16 %v2662, %v2658
          %v3099 = vpack.c.b16 %v2663, %v2659
          %v3100 = vpack.c.b16 %v2664, %v2660
          %v3101 = vpack.c.b16 %v2665, %v2661
          %v3102 = vpack.c.b16 %v2670, %v2666
          %v3103 = vpack.c.b16 %v2671, %v2667
          %v3104 = vpack.c.b16 %v2672, %v2668
          %v3105 = vpack.c.b16 %v2673, %v2669
          %v3106 = vpack.c.b16 %v2678, %v2674
          %v3107 = vpack.c.b16 %v2679, %v2675
          %v3108 = vpack.c.b16 %v2680, %v2676
          %v3109 = vpack.c.b16 %v2681, %v2677
          %v3110 = vpack.c.b16 %v2686, %v2682
          %v3111 = vpack.c.b16 %v2687, %v2683
          %v3112 = vpack.c.b16 %v2688, %v2684
          %v3113 = vpack.c.b16 %v2689, %v2685
          %v3114 = vpack.c.b16 %v2694, %v2690
          %v3115 = vpack.c.b16 %v2695, %v2691
          %v3116 = vpack.c.b16 %v2696, %v2692
          %v3117 = vpack.c.b16 %v2697, %v2693
          %v3118 = vpack.c.b16 %v2702, %v2698
          %v3119 = vpack.c.b16 %v2703, %v2699
          %v3120 = vpack.c.b16 %v2704, %v2700
          %v3121 = vpack.c.b16 %v2705, %v2701
          %v3122 = vpack.c.b16 %v2710, %v2706
          %v3123 = vpack.c.b16 %v2711, %v2707
          %v3124 = vpack.c.b16 %v2712, %v2708
          %v3125 = vpack.c.b16 %v2713, %v2709
          %v3126 = vpack.c.b16 %v2718, %v2714
          %v3127 = vpack.c.b16 %v2719, %v2715
          %v3128 = vpack.c.b16 %v2720, %v2716
          %v3129 = vpack.c.b16 %v2721, %v2717
          %v3130 = vpack.c.b16 %v2726, %v2722
          %v3131 = vpack.c.b16 %v2727, %v2723
          %v3132 = vpack.c.b16 %v2728, %v2724
          %v3133 = vpack.c.b16 %v2729, %v2725
          %v3134 = vpack.c.b16 %v2734, %v2730
          %v3135 = vpack.c.b16 %v2735, %v2731
          %v3136 = vpack.c.b16 %v2736, %v2732
          %v3137 = vpack.c.b16 %v2737, %v2733
          %v3138 = vpack.c.b16 %v2742, %v2738
          %v3139 = vpack.c.b16 %v2743, %v2739
          %v3140 = vpack.c.b16 %v2744, %v2740
          %v3141 = vpack.c.b16 %v2745, %v2741
          %v3142 = vpack.c.b16 %v2750, %v2746
          %v3143 = vpack.c.b16 %v2751, %v2747
          %v3144 = vpack.c.b16 %v2752, %v2748
          %v3145 = vpack.c.b16 %v2753, %v2749
          %v3146 = vpack.c.b16 %v2758, %v2754
          %v3147 = vpack.c.b16 %v2759, %v2755
          %v3148 = vpack.c.b16 %v2760, %v2756
          %v3149 = vpack.c.b16 %v2761, %v2757
          %v3150 = vpack.c.b16 %v2766, %v2762
          %v3151 = vpack.c.b16 %v2767, %v2763
          %v3152 = vpack.c.b16 %v2768, %v2764
          %v3153 = vpack.c.b16 %v2769, %v2765
          %v3154 = vpack.c.b16 %v2774, %v2770
          %v3155 = vpack.c.b16 %v2775, %v2771
          %v3156 = vpack.c.b16 %v2776, %v2772
          %v3157 = vpack.c.b16 %v2777, %v2773
          %v3158 = vpack.c.b16 %v2782, %v2778
          %v3159 = vpack.c.b16 %v2783, %v2779
          %v3160 = vpack.c.b16 %v2784, %v2780
          %v3161 = vpack.c.b16 %v2785, %v2781
          %v3162 = vpack.c.b16 %v2790, %v2786
          %v3163 = vpack.c.b16 %v2791, %v2787
          %v3164 = vpack.c.b16 %v2792, %v2788
          %v3165 = vpack.c.b16 %v2793, %v2789
          %v3166 = vpack.c.b16 %v2798, %v2794
          %v3167 = vpack.c.b16 %v2799, %v2795
          %v3168 = vpack.c.b16 %v2800, %v2796
          %v3169 = vpack.c.b16 %v2801, %v2797
          %v3170 = vpack.c.b16 %v2806, %v2802
          %v3171 = vpack.c.b16 %v2807, %v2803
          %v3172 = vpack.c.b16 %v2808, %v2804
          %v3173 = vpack.c.b16 %v2809, %v2805
          %v3174 = vpack.c.b16 %v2814, %v2810
          %v3175 = vpack.c.b16 %v2815, %v2811
          %v3176 = vpack.c.b16 %v2816, %v2812
          %v3177 = vpack.c.b16 %v2817, %v2813
          %v3178 = vpack.c.b16 %v2822, %v2818
          %v3179 = vpack.c.b16 %v2823, %v2819
          %v3180 = vpack.c.b16 %v2824, %v2820
          %v3181 = vpack.c.b16 %v2825, %v2821
          %v3182 = vpack.c.b16 %v2830, %v2826
          %v3183 = vpack.c.b16 %v2831, %v2827
          %v3184 = vpack.c.b16 %v2832, %v2828
          %v3185 = vpack.c.b16 %v2833, %v2829
          %v3186 = vpack.c.b16 %v2838, %v2834
          %v3187 = vpack.c.b16 %v2839, %v2835
          %v3188 = vpack.c.b16 %v2840, %v2836
          %v3189 = vpack.c.b16 %v2841, %v2837
          %v3190 = vpack.c.b16 %v2846, %v2842
          %v3191 = vpack.c.b16 %v2847, %v2843
          %v3192 = vpack.c.b16 %v2848, %v2844
          %v3193 = vpack.c.b16 %v2849, %v2845
          %v3194 = vpack.c.b16 %v2854, %v2850
          %v3195 = vpack.c.b16 %v2855, %v2851
          %v3196 = vpack.c.b16 %v2856, %v2852
          %v3197 = vpack.c.b16 %v2857, %v2853
          %v3198 = vpack.c.b16 %v2862, %v2858
          %v3199 = vpack.c.b16 %v2863, %v2859
          %v3200 = vpack.c.b16 %v2864, %v2860
          %v3201 = vpack.c.b16 %v2865, %v2861
          %v3202 = vpack.c.b16 %v2870, %v2866
          %v3203 = vpack.c.b16 %v2871, %v2867
          %v3204 = vpack.c.b16 %v2872, %v2868
          %v3205 = vpack.c.b16 %v2873, %v2869
          %v3206 = vpack.c.b16 %v2878, %v2874
          %v3207 = vpack.c.b16 %v2879, %v2875
          %v3208 = vpack.c.b16 %v2880, %v2876
          %v3209 = vpack.c.b16 %v2881, %v2877
          %v3210 = vpack.c.b16 %v2886, %v2882
          %v3211 = vpack.c.b16 %v2887, %v2883
          %v3212 = vpack.c.b16 %v2888, %v2884
          %v3213 = vpack.c.b16 %v2889, %v2885
          %v3214 = vpack.c.b16 %v2894, %v2890
          %v3215 = vpack.c.b16 %v2895, %v2891
          %v3216 = vpack.c.b16 %v2896, %v2892
          %v3217 = vpack.c.b16 %v2897, %v2893
          %v3218 = vpack.c.b16 %v2902, %v2898
          %v3219 = vpack.c.b16 %v2903, %v2899
          %v3220 = vpack.c.b16 %v2904, %v2900
          %v3221 = vpack.c.b16 %v2905, %v2901
          %v3222 = vpack.c.b16 %v2910, %v2906
          %v3223 = vpack.c.b16 %v2911, %v2907
          %v3224 = vpack.c.b16 %v2912, %v2908
          %v3225 = vpack.c.b16 %v2913, %v2909
          %v3226 = vpack.c.b16 %v2918, %v2914
          %v3227 = vpack.c.b16 %v2919, %v2915
          %v3228 = vpack.c.b16 %v2920, %v2916
          %v3229 = vpack.c.b16 %v2921, %v2917
          %v3230 = vpack.c.b16 %v2926, %v2922
          %v3231 = vpack.c.b16 %v2927, %v2923
          %v3232 = vpack.c.b16 %v2928, %v2924
          %v3233 = vpack.c.b16 %v2929, %v2925
          %v3234 = vpack.c.b16 %v2934, %v2930
          %v3235 = vpack.c.b16 %v2935, %v2931
          %v3236 = vpack.c.b16 %v2936, %v2932
          %v3237 = vpack.c.b16 %v2937, %v2933
          %v3238 = vpack.c.b16 %v2942, %v2938
          %v3239 = vpack.c.b16 %v2943, %v2939
          %v3240 = vpack.c.b16 %v2944, %v2940
          %v3241 = vpack.c.b16 %v2945, %v2941
          %v3242 = vpack.c.b16 %v2950, %v2946
          %v3243 = vpack.c.b16 %v2951, %v2947
          %v3244 = vpack.c.b16 %v2952, %v2948
          %v3245 = vpack.c.b16 %v2953, %v2949
          %v3246 = vpack.c.b16 %v2958, %v2954
          %v3247 = vpack.c.b16 %v2959, %v2955
          %v3248 = vpack.c.b16 %v2960, %v2956
          %v3249 = vpack.c.b16 %v2961, %v2957
          %v3250 = vpack.c.b16 %v2966, %v2962
          %v3251 = vpack.c.b16 %v2967, %v2963
          %v3252 = vpack.c.b16 %v2968, %v2964
          %v3253 = vpack.c.b16 %v2969, %v2965
          %v3254 = vpack.c.b16 %v2974, %v2970
          %v3255 = vpack.c.b16 %v2975, %v2971
          %v3256 = vpack.c.b16 %v2976, %v2972
          %v3257 = vpack.c.b16 %v2977, %v2973
          %v3258 = vpack.c.b16 %v2982, %v2978
          %v3259 = vpack.c.b16 %v2983, %v2979
          %v3260 = vpack.c.b16 %v2984, %v2980
          %v3261 = vpack.c.b16 %v2985, %v2981
          %v3262 = vpack.c.b16 %v2990, %v2986
          %v3263 = vpack.c.b16 %v2991, %v2987
          %v3264 = vpack.c.b16 %v2992, %v2988
          %v3265 = vpack.c.b16 %v2993, %v2989
          %v3266 = vpack.c.b16 %v2998, %v2994
          %v3267 = vpack.c.b16 %v2999, %v2995
          %v3268 = vpack.c.b16 %v3000, %v2996
          %v3269 = vpack.c.b16 %v3001, %v2997
          %v3270 = vpack.c.b16 %v3006, %v3002
          %v3271 = vpack.c.b16 %v3007, %v3003
          %v3272 = vpack.c.b16 %v3008, %v3004
          %v3273 = vpack.c.b16 %v3009, %v3005
          %v3274 = vpack.c.b16 %v3014, %v3010
          %v3275 = vpack.c.b16 %v3015, %v3011
          %v3276 = vpack.c.b16 %v3016, %v3012
          %v3277 = vpack.c.b16 %v3017, %v3013
          %v3278 = vpack.c.b16 %v3022, %v3018
          %v3279 = vpack.c.b16 %v3023, %v3019
          %v3280 = vpack.c.b16 %v3024, %v3020
          %v3281 = vpack.c.b16 %v3025, %v3021
          %3538 = vmatprep.subr.bf16.mxu0 %v3027
          %3539 = vmatpush1.bf16.msra.mxu0 %v3026
          %3540 = vmatprep.subr.bf16.mxu0 %v3031
          %3541 = vmatpush1.bf16.msra.mxu0 %v3030
          %3542 = vmatprep.subr.bf16.mxu0 %v3035
          %3543 = vmatpush1.bf16.msra.mxu0 %v3034
          %3544 = vmatprep.subr.bf16.mxu0 %v3039
          %3545 = vmatpush1.bf16.msra.mxu0 %v3038
          %3546 = vmatprep.subr.bf16.mxu0 %v3043
          %3547 = vmatpush1.bf16.msra.mxu0 %v3042
          %3548 = vmatprep.subr.bf16.mxu0 %v3047
          %3549 = vmatpush1.bf16.msra.mxu0 %v3046
          %3550 = vmatprep.subr.bf16.mxu0 %v3051
          %3551 = vmatpush1.bf16.msra.mxu0 %v3050
          %3552 = vmatprep.subr.bf16.mxu0 %v3055
          %3553 = vmatpush1.bf16.msra.mxu0 %v3054
          %3554 = vmatprep.subr.bf16.mxu0 %v3059
          %3555 = vmatpush1.bf16.msra.mxu0 %v3058
          %3556 = vmatprep.subr.bf16.mxu0 %v3063
          %3557 = vmatpush1.bf16.msra.mxu0 %v3062
          %3558 = vmatprep.subr.bf16.mxu0 %v3067
          %3559 = vmatpush1.bf16.msra.mxu0 %v3066
          %3560 = vmatprep.subr.bf16.mxu0 %v3071
          %3561 = vmatpush1.bf16.msra.mxu0 %v3070
          %3562 = vmatprep.subr.bf16.mxu0 %v3075
          %3563 = vmatpush1.bf16.msra.mxu0 %v3074
          %3564 = vmatprep.subr.bf16.mxu0 %v3079
          %3565 = vmatpush1.bf16.msra.mxu0 %v3078
          %3566 = vmatprep.subr.bf16.mxu0 %v3083
          %3567 = vmatpush1.bf16.msra.mxu0 %v3082
          %3568 = vmatprep.subr.bf16.mxu0 %v3087
          %3569 = vmatpush1.bf16.msra.mxu0 %v3086
          %3570 = vmatprep.mubr.bf16.mxu0 %v1973
          %3571 = vmatmul.mubr.bf16.gmra.mrb[0].mxu0 %v1972
          %v3572 = vpop.f32.mrb[0].mxu0
          %v3573 = vadd.f32 %v2241, %v3572
          %v3574 = vpop.f32.mrb[0].mxu0
          %v3575 = vadd.f32 %v2245, %v3574
          %v3576 = vpop.f32.mrb[0].mxu0
          %v3577 = vpop.f32.mrb[0].mxu0
          %3578 = vdwg.mxu0
          %3579 = vmatprep.subr.bf16.mxu0 %v3091
          %3580 = vmatpush1.bf16.msra.mxu0 %v3090
          %3581 = vmatprep.subr.bf16.mxu0 %v3095
          %3582 = vmatpush1.bf16.msra.mxu0 %v3094
          %3583 = vmatprep.subr.bf16.mxu0 %v3099
          %3584 = vmatpush1.bf16.msra.mxu0 %v3098
          %3585 = vmatprep.subr.bf16.mxu0 %v3103
          %3586 = vmatpush1.bf16.msra.mxu0 %v3102
          %3587 = vmatprep.subr.bf16.mxu0 %v3107
          %3588 = vmatpush1.bf16.msra.mxu0 %v3106
          %3589 = vmatprep.subr.bf16.mxu0 %v3111
          %3590 = vmatpush1.bf16.msra.mxu0 %v3110
          %3591 = vmatprep.subr.bf16.mxu0 %v3115
          %3592 = vmatpush1.bf16.msra.mxu0 %v3114
          %3593 = vmatprep.subr.bf16.mxu0 %v3119
          %3594 = vmatpush1.bf16.msra.mxu0 %v3118
          %3595 = vmatprep.subr.bf16.mxu0 %v3123
          %3596 = vmatpush1.bf16.msra.mxu0 %v3122
          %3597 = vmatprep.subr.bf16.mxu0 %v3127
          %3598 = vmatpush1.bf16.msra.mxu0 %v3126
          %3599 = vmatprep.subr.bf16.mxu0 %v3131
          %3600 = vmatpush1.bf16.msra.mxu0 %v3130
          %3601 = vmatprep.subr.bf16.mxu0 %v3135
          %3602 = vmatpush1.bf16.msra.mxu0 %v3134
          %3603 = vmatprep.subr.bf16.mxu0 %v3139
          %3604 = vmatpush1.bf16.msra.mxu0 %v3138
          %3605 = vmatprep.subr.bf16.mxu0 %v3143
          %3606 = vmatpush1.bf16.msra.mxu0 %v3142
          %3607 = vmatprep.subr.bf16.mxu0 %v3147
          %3608 = vmatpush1.bf16.msra.mxu0 %v3146
          %3609 = vmatprep.subr.bf16.mxu0 %v3151
          %3610 = vmatpush1.bf16.msra.mxu0 %v3150
          %3611 = vmatprep.mubr.bf16.mxu0 %v1975
          %3612 = vmatmul.mubr.bf16.gmra.mrb[0].mxu0 %v1974
          %v3613 = vpop.f32.mrb[0].mxu0
          %v3614 = vadd.f32 %v3573, %v3613
          %v3615 = vpop.f32.mrb[0].mxu0
          %v3616 = vadd.f32 %v3575, %v3615
          %v3617 = vpop.f32.mrb[0].mxu0
          %v3618 = vpop.f32.mrb[0].mxu0
          %3619 = vdwg.mxu0
          %3620 = vmatprep.subr.bf16.mxu0 %v3155
          %3621 = vmatpush1.bf16.msra.mxu0 %v3154
          %3622 = vmatprep.subr.bf16.mxu0 %v3159
          %3623 = vmatpush1.bf16.msra.mxu0 %v3158
          %3624 = vmatprep.subr.bf16.mxu0 %v3163
          %3625 = vmatpush1.bf16.msra.mxu0 %v3162
          %3626 = vmatprep.subr.bf16.mxu0 %v3167
          %3627 = vmatpush1.bf16.msra.mxu0 %v3166
          %3628 = vmatprep.subr.bf16.mxu0 %v3171
          %3629 = vmatpush1.bf16.msra.mxu0 %v3170
          %3630 = vmatprep.subr.bf16.mxu0 %v3175
          %3631 = vmatpush1.bf16.msra.mxu0 %v3174
          %3632 = vmatprep.subr.bf16.mxu0 %v3179
          %3633 = vmatpush1.bf16.msra.mxu0 %v3178
          %3634 = vmatprep.subr.bf16.mxu0 %v3183
          %3635 = vmatpush1.bf16.msra.mxu0 %v3182
          %3636 = vmatprep.subr.bf16.mxu0 %v3187
          %3637 = vmatpush1.bf16.msra.mxu0 %v3186
          %3638 = vmatprep.subr.bf16.mxu0 %v3191
          %3639 = vmatpush1.bf16.msra.mxu0 %v3190
          %3640 = vmatprep.subr.bf16.mxu0 %v3195
          %3641 = vmatpush1.bf16.msra.mxu0 %v3194
          %3642 = vmatprep.subr.bf16.mxu0 %v3199
          %3643 = vmatpush1.bf16.msra.mxu0 %v3198
          %3644 = vmatprep.subr.bf16.mxu0 %v3203
          %3645 = vmatpush1.bf16.msra.mxu0 %v3202
          %3646 = vmatprep.subr.bf16.mxu0 %v3207
          %3647 = vmatpush1.bf16.msra.mxu0 %v3206
          %3648 = vmatprep.subr.bf16.mxu0 %v3211
          %3649 = vmatpush1.bf16.msra.mxu0 %v3210
          %3650 = vmatprep.subr.bf16.mxu0 %v3215
          %3651 = vmatpush1.bf16.msra.mxu0 %v3214
          %3652 = vmatprep.mubr.bf16.mxu0 %v1977
          %3653 = vmatmul.mubr.bf16.gmra.mrb[0].mxu0 %v1976
          %v3654 = vpop.f32.mrb[0].mxu0
          %v3655 = vadd.f32 %v3614, %v3654
          %v3656 = vpop.f32.mrb[0].mxu0
          %v3657 = vadd.f32 %v3616, %v3656
          %v3658 = vpop.f32.mrb[0].mxu0
          %v3659 = vpop.f32.mrb[0].mxu0
          %3660 = vdwg.mxu0
          %3661 = vmatprep.subr.bf16.mxu0 %v3219
          %3662 = vmatpush1.bf16.msra.mxu0 %v3218
          %3663 = vmatprep.subr.bf16.mxu0 %v3223
          %3664 = vmatpush1.bf16.msra.mxu0 %v3222
          %3665 = vmatprep.subr.bf16.mxu0 %v3227
          %3666 = vmatpush1.bf16.msra.mxu0 %v3226
          %3667 = vmatprep.subr.bf16.mxu0 %v3231
          %3668 = vmatpush1.bf16.msra.mxu0 %v3230
          %3669 = vmatprep.subr.bf16.mxu0 %v3235
          %3670 = vmatpush1.bf16.msra.mxu0 %v3234
          %3671 = vmatprep.subr.bf16.mxu0 %v3239
          %3672 = vmatpush1.bf16.msra.mxu0 %v3238
          %3673 = vmatprep.subr.bf16.mxu0 %v3243
          %3674 = vmatpush1.bf16.msra.mxu0 %v3242
          %3675 = vmatprep.subr.bf16.mxu0 %v3247
          %3676 = vmatpush1.bf16.msra.mxu0 %v3246
          %3677 = vmatprep.subr.bf16.mxu0 %v3251
          %3678 = vmatpush1.bf16.msra.mxu0 %v3250
          %3679 = vmatprep.subr.bf16.mxu0 %v3255
          %3680 = vmatpush1.bf16.msra.mxu0 %v3254
          %3681 = vmatprep.subr.bf16.mxu0 %v3259
          %3682 = vmatpush1.bf16.msra.mxu0 %v3258
          %3683 = vmatprep.subr.bf16.mxu0 %v3263
          %3684 = vmatpush1.bf16.msra.mxu0 %v3262
          %3685 = vmatprep.subr.bf16.mxu0 %v3267
          %3686 = vmatpush1.bf16.msra.mxu0 %v3266
          %3687 = vmatprep.subr.bf16.mxu0 %v3271
          %3688 = vmatpush1.bf16.msra.mxu0 %v3270
          %3689 = vmatprep.subr.bf16.mxu0 %v3275
          %3690 = vmatpush1.bf16.msra.mxu0 %v3274
          %3691 = vmatprep.subr.bf16.mxu0 %v3279
          %3692 = vmatpush1.bf16.msra.mxu0 %v3278
          %3693 = vmatprep.mubr.bf16.mxu0 %v1979
          %3694 = vmatmul.mubr.bf16.gmra.mrb[0].mxu0 %v1978
          %v3695 = vpop.f32.mrb[0].mxu0
          %v3696 = vadd.f32 %v3655, %v3695
          %v3697 = vpop.f32.mrb[0].mxu0
          %v3698 = vadd.f32 %v3657, %v3697
          %v3699 = vpop.f32.mrb[0].mxu0
          %v3700 = vpop.f32.mrb[0].mxu0
          %3701 = vdwg.mxu0
          %3702 = vmatprep.subr.bf16.mxu0 %v3029
          %3703 = vmatpush1.bf16.msra.mxu0 %v3028
          %3704 = vmatprep.subr.bf16.mxu0 %v3033
          %3705 = vmatpush1.bf16.msra.mxu0 %v3032
          %3706 = vmatprep.subr.bf16.mxu0 %v3037
          %3707 = vmatpush1.bf16.msra.mxu0 %v3036
          %3708 = vmatprep.subr.bf16.mxu0 %v3041
          %3709 = vmatpush1.bf16.msra.mxu0 %v3040
          %3710 = vmatprep.subr.bf16.mxu0 %v3045
          %3711 = vmatpush1.bf16.msra.mxu0 %v3044
          %3712 = vmatprep.subr.bf16.mxu0 %v3049
          %3713 = vmatpush1.bf16.msra.mxu0 %v3048
          %3714 = vmatprep.subr.bf16.mxu0 %v3053
          %3715 = vmatpush1.bf16.msra.mxu0 %v3052
          %3716 = vmatprep.subr.bf16.mxu0 %v3057
          %3717 = vmatpush1.bf16.msra.mxu0 %v3056
          %3718 = vmatprep.subr.bf16.mxu0 %v3061
          %3719 = vmatpush1.bf16.msra.mxu0 %v3060
          %3720 = vmatprep.subr.bf16.mxu0 %v3065
          %3721 = vmatpush1.bf16.msra.mxu0 %v3064
          %3722 = vmatprep.subr.bf16.mxu0 %v3069
          %3723 = vmatpush1.bf16.msra.mxu0 %v3068
          %3724 = vmatprep.subr.bf16.mxu0 %v3073
          %3725 = vmatpush1.bf16.msra.mxu0 %v3072
          %3726 = vmatprep.subr.bf16.mxu0 %v3077
          %3727 = vmatpush1.bf16.msra.mxu0 %v3076
          %3728 = vmatprep.subr.bf16.mxu0 %v3081
          %3729 = vmatpush1.bf16.msra.mxu0 %v3080
          %3730 = vmatprep.subr.bf16.mxu0 %v3085
          %3731 = vmatpush1.bf16.msra.mxu0 %v3084
          %3732 = vmatprep.subr.bf16.mxu0 %v3089
          %3733 = vmatpush1.bf16.msra.mxu0 %v3088
          %3734 = vmatprep.mubr.bf16.mxu0 %v1973
          %3735 = vmatmul.mubr.bf16.gmra.mrb[0].mxu0 %v1972
          %v3736 = vpop.f32.mrb[0].mxu0
          %v3737 = vadd.f32 %v2249, %v3736
          %v3738 = vpop.f32.mrb[0].mxu0
          %v3739 = vadd.f32 %v2253, %v3738
          %v3740 = vpop.f32.mrb[0].mxu0
          %v3741 = vpop.f32.mrb[0].mxu0
          %3742 = vdwg.mxu0
          %3743 = vmatprep.subr.bf16.mxu0 %v3093
          %3744 = vmatpush1.bf16.msra.mxu0 %v3092
          %3745 = vmatprep.subr.bf16.mxu0 %v3097
          %3746 = vmatpush1.bf16.msra.mxu0 %v3096
          %3747 = vmatprep.subr.bf16.mxu0 %v3101
          %3748 = vmatpush1.bf16.msra.mxu0 %v3100
          %3749 = vmatprep.subr.bf16.mxu0 %v3105
          %3750 = vmatpush1.bf16.msra.mxu0 %v3104
          %3751 = vmatprep.subr.bf16.mxu0 %v3109
          %3752 = vmatpush1.bf16.msra.mxu0 %v3108
          %3753 = vmatprep.subr.bf16.mxu0 %v3113
          %3754 = vmatpush1.bf16.msra.mxu0 %v3112
          %3755 = vmatprep.subr.bf16.mxu0 %v3117
          %3756 = vmatpush1.bf16.msra.mxu0 %v3116
          %3757 = vmatprep.subr.bf16.mxu0 %v3121
          %3758 = vmatpush1.bf16.msra.mxu0 %v3120
          %3759 = vmatprep.subr.bf16.mxu0 %v3125
          %3760 = vmatpush1.bf16.msra.mxu0 %v3124
          %3761 = vmatprep.subr.bf16.mxu0 %v3129
          %3762 = vmatpush1.bf16.msra.mxu0 %v3128
          %3763 = vmatprep.subr.bf16.mxu0 %v3133
          %3764 = vmatpush1.bf16.msra.mxu0 %v3132
          %3765 = vmatprep.subr.bf16.mxu0 %v3137
          %3766 = vmatpush1.bf16.msra.mxu0 %v3136
          %3767 = vmatprep.subr.bf16.mxu0 %v3141
          %3768 = vmatpush1.bf16.msra.mxu0 %v3140
          %3769 = vmatprep.subr.bf16.mxu0 %v3145
          %3770 = vmatpush1.bf16.msra.mxu0 %v3144
          %3771 = vmatprep.subr.bf16.mxu0 %v3149
          %3772 = vmatpush1.bf16.msra.mxu0 %v3148
          %3773 = vmatprep.subr.bf16.mxu0 %v3153
          %3774 = vmatpush1.bf16.msra.mxu0 %v3152
          %3775 = vmatprep.mubr.bf16.mxu0 %v1975
          %3776 = vmatmul.mubr.bf16.gmra.mrb[0].mxu0 %v1974
          %v3777 = vpop.f32.mrb[0].mxu0
          %v3778 = vadd.f32 %v3737, %v3777
          %v3779 = vpop.f32.mrb[0].mxu0
          %v3780 = vadd.f32 %v3739, %v3779
          %v3781 = vpop.f32.mrb[0].mxu0
          %v3782 = vpop.f32.mrb[0].mxu0
          %3783 = vdwg.mxu0
          %3784 = vmatprep.subr.bf16.mxu0 %v3157
          %3785 = vmatpush1.bf16.msra.mxu0 %v3156
          %3786 = vmatprep.subr.bf16.mxu0 %v3161
          %3787 = vmatpush1.bf16.msra.mxu0 %v3160
          %3788 = vmatprep.subr.bf16.mxu0 %v3165
          %3789 = vmatpush1.bf16.msra.mxu0 %v3164
          %3790 = vmatprep.subr.bf16.mxu0 %v3169
          %3791 = vmatpush1.bf16.msra.mxu0 %v3168
          %3792 = vmatprep.subr.bf16.mxu0 %v3173
          %3793 = vmatpush1.bf16.msra.mxu0 %v3172
          %3794 = vmatprep.subr.bf16.mxu0 %v3177
          %3795 = vmatpush1.bf16.msra.mxu0 %v3176
          %3796 = vmatprep.subr.bf16.mxu0 %v3181
          %3797 = vmatpush1.bf16.msra.mxu0 %v3180
          %3798 = vmatprep.subr.bf16.mxu0 %v3185
          %3799 = vmatpush1.bf16.msra.mxu0 %v3184
          %3800 = vmatprep.subr.bf16.mxu0 %v3189
          %3801 = vmatpush1.bf16.msra.mxu0 %v3188
          %3802 = vmatprep.subr.bf16.mxu0 %v3193
          %3803 = vmatpush1.bf16.msra.mxu0 %v3192
          %3804 = vmatprep.subr.bf16.mxu0 %v3197
          %3805 = vmatpush1.bf16.msra.mxu0 %v3196
          %3806 = vmatprep.subr.bf16.mxu0 %v3201
          %3807 = vmatpush1.bf16.msra.mxu0 %v3200
          %3808 = vmatprep.subr.bf16.mxu0 %v3205
          %3809 = vmatpush1.bf16.msra.mxu0 %v3204
          %3810 = vmatprep.subr.bf16.mxu0 %v3209
          %3811 = vmatpush1.bf16.msra.mxu0 %v3208
          %3812 = vmatprep.subr.bf16.mxu0 %v3213
          %3813 = vmatpush1.bf16.msra.mxu0 %v3212
          %3814 = vmatprep.subr.bf16.mxu0 %v3217
          %3815 = vmatpush1.bf16.msra.mxu0 %v3216
          %3816 = vmatprep.mubr.bf16.mxu0 %v1977
          %3817 = vmatmul.mubr.bf16.gmra.mrb[0].mxu0 %v1976
          %v3818 = vpop.f32.mrb[0].mxu0
          %v3819 = vadd.f32 %v3778, %v3818
          %v3820 = vpop.f32.mrb[0].mxu0
          %v3821 = vadd.f32 %v3780, %v3820
          %v3822 = vpop.f32.mrb[0].mxu0
          %v3823 = vpop.f32.mrb[0].mxu0
          %3824 = vdwg.mxu0
          %3825 = vmatprep.subr.bf16.mxu0 %v3221
          %3826 = vmatpush1.bf16.msra.mxu0 %v3220
          %3827 = vmatprep.subr.bf16.mxu0 %v3225
          %3828 = vmatpush1.bf16.msra.mxu0 %v3224
          %3829 = vmatprep.subr.bf16.mxu0 %v3229
          %3830 = vmatpush1.bf16.msra.mxu0 %v3228
          %3831 = vmatprep.subr.bf16.mxu0 %v3233
          %3832 = vmatpush1.bf16.msra.mxu0 %v3232
          %3833 = vmatprep.subr.bf16.mxu0 %v3237
          %3834 = vmatpush1.bf16.msra.mxu0 %v3236
          %3835 = vmatprep.subr.bf16.mxu0 %v3241
          %3836 = vmatpush1.bf16.msra.mxu0 %v3240
          %3837 = vmatprep.subr.bf16.mxu0 %v3245
          %3838 = vmatpush1.bf16.msra.mxu0 %v3244
          %3839 = vmatprep.subr.bf16.mxu0 %v3249
          %3840 = vmatpush1.bf16.msra.mxu0 %v3248
          %3841 = vmatprep.subr.bf16.mxu0 %v3253
          %3842 = vmatpush1.bf16.msra.mxu0 %v3252
          %3843 = vmatprep.subr.bf16.mxu0 %v3257
          %3844 = vmatpush1.bf16.msra.mxu0 %v3256
          %3845 = vmatprep.subr.bf16.mxu0 %v3261
          %3846 = vmatpush1.bf16.msra.mxu0 %v3260
          %3847 = vmatprep.subr.bf16.mxu0 %v3265
          %3848 = vmatpush1.bf16.msra.mxu0 %v3264
          %3849 = vmatprep.subr.bf16.mxu0 %v3269
          %3850 = vmatpush1.bf16.msra.mxu0 %v3268
          %3851 = vmatprep.subr.bf16.mxu0 %v3273
          %3852 = vmatpush1.bf16.msra.mxu0 %v3272
          %3853 = vmatprep.subr.bf16.mxu0 %v3277
          %3854 = vmatpush1.bf16.msra.mxu0 %v3276
          %3855 = vmatprep.subr.bf16.mxu0 %v3281
          %3856 = vmatpush1.bf16.msra.mxu0 %v3280
          %3857 = vmatprep.mubr.bf16.mxu0 %v1979
          %3858 = vmatmul.mubr.bf16.gmra.mrb[0].mxu0 %v1978
          %v3859 = vpop.f32.mrb[0].mxu0
          %v3860 = vadd.f32 %v3819, %v3859
          %v3861 = vpop.f32.mrb[0].mxu0
          %v3862 = vadd.f32 %v3821, %v3861
          %v3863 = vpop.f32.mrb[0].mxu0
          %v3864 = vpop.f32.mrb[0].mxu0
          %3865 = vdwg.mxu0
          %vm3866 = vcmp.gt.f32.partialorder %v3696, 0.0
          %vm3867 = vcmp.gt.f32.partialorder %v3698, 0.0
          %vm3868 = vcmp.gt.f32.partialorder %v3860, 0.0
          %vm3869 = vcmp.gt.f32.partialorder %v3862, 0.0
          %v3870 = vmul.f32 %v3696, 0.2
          %v3871 = vmul.f32 %v3698, 0.2
          %v3872 = vmul.f32 %v3860, 0.2
          %v3873 = vmul.f32 %v3862, 0.2
          %v3874 = vsel %vm3866, %v3696, %v3870
          %v3875 = vsel %vm3867, %v3698, %v3871
          %v3876 = vsel %vm3868, %v3860, %v3872
          %v3877 = vsel %vm3869, %v3862, %v3873
          %v3878 = vpack.c.bf16 %v3874, %v3874
          %v3879 = vpack.c.bf16 %v3875, %v3875
          %v3880 = vpack.c.bf16 %v3876, %v3876
          %v3881 = vpack.c.bf16 %v3877, %v3877
          %v3882 = vld [vmem:[#allocation9] sm:$0xff]
          %v3883 = vld [vmem:[#allocation9 + $0x8] sm:$0xff]
          %v3884 = vld [vmem:[#allocation9 + $0x10] sm:$0xff]
          %v3885 = vld [vmem:[#allocation9 + $0x18] sm:$0xff]
          %v3886 = vld [vmem:[#allocation9 + $0x20] sm:$0xff]
          %v3887 = vld [vmem:[#allocation9 + $0x28] sm:$0xff]
          %v3888 = vld [vmem:[#allocation9 + $0x30] sm:$0xff]
          %v3889 = vld [vmem:[#allocation9 + $0x38] sm:$0xff]
          %v3890 = vld [vmem:[#allocation9 + $0x40] sm:$0xff]
          %v3891 = vld [vmem:[#allocation9 + $0x48] sm:$0xff]
          %v3892 = vld [vmem:[#allocation9 + $0x50] sm:$0xff]
          %v3893 = vld [vmem:[#allocation9 + $0x58] sm:$0xff]
          %v3894 = vld [vmem:[#allocation9 + $0x60] sm:$0xff]
          %v3895 = vld [vmem:[#allocation9 + $0x68] sm:$0xff]
          %v3896 = vld [vmem:[#allocation9 + $0x70] sm:$0xff]
          %v3897 = vld [vmem:[#allocation9 + $0x78] sm:$0xff]
          %v3898 = vld [vmem:[#allocation9 + $0x80] sm:$0xff]
          %v3899 = vld [vmem:[#allocation9 + $0x88] sm:$0xff]
          %v3900 = vld [vmem:[#allocation9 + $0x90] sm:$0xff]
          %v3901 = vld [vmem:[#allocation9 + $0x98] sm:$0xff]
          %v3902 = vld [vmem:[#allocation9 + $0xa0] sm:$0xff]
          %v3903 = vld [vmem:[#allocation9 + $0xa8] sm:$0xff]
          %v3904 = vld [vmem:[#allocation9 + $0xb0] sm:$0xff]
          %v3905 = vld [vmem:[#allocation9 + $0xb8] sm:$0xff]
          %v3906 = vld [vmem:[#allocation9 + $0xc0] sm:$0xff]
          %v3907 = vld [vmem:[#allocation9 + $0xc8] sm:$0xff]
          %v3908 = vld [vmem:[#allocation9 + $0xd0] sm:$0xff]
          %v3909 = vld [vmem:[#allocation9 + $0xd8] sm:$0xff]
          %v3910 = vld [vmem:[#allocation9 + $0xe0] sm:$0xff]
          %v3911 = vld [vmem:[#allocation9 + $0xe8] sm:$0xff]
          %v3912 = vld [vmem:[#allocation9 + $0xf0] sm:$0xff]
          %v3913 = vld [vmem:[#allocation9 + $0xf8] sm:$0xff]
          %v3914 = vld [vmem:[#allocation9 + $0x100] sm:$0xff]
          %v3915 = vld [vmem:[#allocation9 + $0x108] sm:$0xff]
          %v3916 = vld [vmem:[#allocation9 + $0x110] sm:$0xff]
          %v3917 = vld [vmem:[#allocation9 + $0x118] sm:$0xff]
          %v3918 = vld [vmem:[#allocation9 + $0x120] sm:$0xff]
          %v3919 = vld [vmem:[#allocation9 + $0x128] sm:$0xff]
          %v3920 = vld [vmem:[#allocation9 + $0x130] sm:$0xff]
          %v3921 = vld [vmem:[#allocation9 + $0x138] sm:$0xff]
          %v3922 = vld [vmem:[#allocation9 + $0x140] sm:$0xff]
          %v3923 = vld [vmem:[#allocation9 + $0x148] sm:$0xff]
          %v3924 = vld [vmem:[#allocation9 + $0x150] sm:$0xff]
          %v3925 = vld [vmem:[#allocation9 + $0x158] sm:$0xff]
          %v3926 = vld [vmem:[#allocation9 + $0x160] sm:$0xff]
          %v3927 = vld [vmem:[#allocation9 + $0x168] sm:$0xff]
          %v3928 = vld [vmem:[#allocation9 + $0x170] sm:$0xff]
          %v3929 = vld [vmem:[#allocation9 + $0x178] sm:$0xff]
          %v3930 = vld [vmem:[#allocation9 + $0x180] sm:$0xff]
          %v3931 = vld [vmem:[#allocation9 + $0x188] sm:$0xff]
          %v3932 = vld [vmem:[#allocation9 + $0x190] sm:$0xff]
          %v3933 = vld [vmem:[#allocation9 + $0x198] sm:$0xff]
          %v3934 = vld [vmem:[#allocation9 + $0x1a0] sm:$0xff]
          %v3935 = vld [vmem:[#allocation9 + $0x1a8] sm:$0xff]
          %v3936 = vld [vmem:[#allocation9 + $0x1b0] sm:$0xff]
          %v3937 = vld [vmem:[#allocation9 + $0x1b8] sm:$0xff]
          %v3938 = vld [vmem:[#allocation9 + $0x1c0] sm:$0xff]
          %v3939 = vld [vmem:[#allocation9 + $0x1c8] sm:$0xff]
          %v3940 = vld [vmem:[#allocation9 + $0x1d0] sm:$0xff]
          %v3941 = vld [vmem:[#allocation9 + $0x1d8] sm:$0xff]
          %v3942 = vld [vmem:[#allocation9 + $0x1e0] sm:$0xff]
          %v3943 = vld [vmem:[#allocation9 + $0x1e8] sm:$0xff]
          %v3944 = vld [vmem:[#allocation9 + $0x1f0] sm:$0xff]
          %v3945 = vld [vmem:[#allocation9 + $0x1f8] sm:$0xff]
          %v3946 = vld [vmem:[#allocation11] sm:$0x3]
          %v3948 = vlaneseq
          %v3949 = vshrl.u32 %v3948, 7
          %v3950 = vsub.s32 0, %v3949
          %v3951 = vrot.slane %v3946, %v3950
          %v3952 = vlaneseq
          %v3953 = vshrl.u32 %v3952, 7
          %v3954 = vsub.s32 1, %v3953
          %v3955 = vrot.slane %v3946, %v3954
          %v4022 = vunpack.c.l.b16 %v3882
          %v4023 = vunpack.c.h.b16 %v3882
          %v4024 = vunpack.c.l.b16 %v3883
          %v4025 = vunpack.c.h.b16 %v3883
          %v4026 = vunpack.c.l.b16 %v3884
          %v4027 = vunpack.c.h.b16 %v3884
          %v4028 = vunpack.c.l.b16 %v3885
          %v4029 = vunpack.c.h.b16 %v3885
          %v4030 = vunpack.c.l.b16 %v3886
          %v4031 = vunpack.c.h.b16 %v3886
          %v4032 = vunpack.c.l.b16 %v3887
          %v4033 = vunpack.c.h.b16 %v3887
          %v4034 = vunpack.c.l.b16 %v3888
          %v4035 = vunpack.c.h.b16 %v3888
          %v4036 = vunpack.c.l.b16 %v3889
          %v4037 = vunpack.c.h.b16 %v3889
          %v4038 = vunpack.c.l.b16 %v3890
          %v4039 = vunpack.c.h.b16 %v3890
          %v4040 = vunpack.c.l.b16 %v3891
          %v4041 = vunpack.c.h.b16 %v3891
          %v4042 = vunpack.c.l.b16 %v3892
          %v4043 = vunpack.c.h.b16 %v3892
          %v4044 = vunpack.c.l.b16 %v3893
          %v4045 = vunpack.c.h.b16 %v3893
          %v4046 = vunpack.c.l.b16 %v3894
          %v4047 = vunpack.c.h.b16 %v3894
          %v4048 = vunpack.c.l.b16 %v3895
          %v4049 = vunpack.c.h.b16 %v3895
          %v4050 = vunpack.c.l.b16 %v3896
          %v4051 = vunpack.c.h.b16 %v3896
          %v4052 = vunpack.c.l.b16 %v3897
          %v4053 = vunpack.c.h.b16 %v3897
          %v4054 = vunpack.c.l.b16 %v3898
          %v4055 = vunpack.c.h.b16 %v3898
          %v4056 = vunpack.c.l.b16 %v3899
          %v4057 = vunpack.c.h.b16 %v3899
          %v4058 = vunpack.c.l.b16 %v3900
          %v4059 = vunpack.c.h.b16 %v3900
          %v4060 = vunpack.c.l.b16 %v3901
          %v4061 = vunpack.c.h.b16 %v3901
          %v4062 = vunpack.c.l.b16 %v3902
          %v4063 = vunpack.c.h.b16 %v3902
          %v4064 = vunpack.c.l.b16 %v3903
          %v4065 = vunpack.c.h.b16 %v3903
          %v4066 = vunpack.c.l.b16 %v3904
          %v4067 = vunpack.c.h.b16 %v3904
          %v4068 = vunpack.c.l.b16 %v3905
          %v4069 = vunpack.c.h.b16 %v3905
          %v4070 = vunpack.c.l.b16 %v3906
          %v4071 = vunpack.c.h.b16 %v3906
          %v4072 = vunpack.c.l.b16 %v3907
          %v4073 = vunpack.c.h.b16 %v3907
          %v4074 = vunpack.c.l.b16 %v3908
          %v4075 = vunpack.c.h.b16 %v3908
          %v4076 = vunpack.c.l.b16 %v3909
          %v4077 = vunpack.c.h.b16 %v3909
          %v4078 = vunpack.c.l.b16 %v3910
          %v4079 = vunpack.c.h.b16 %v3910
          %v4080 = vunpack.c.l.b16 %v3911
          %v4081 = vunpack.c.h.b16 %v3911
          %v4082 = vunpack.c.l.b16 %v3912
          %v4083 = vunpack.c.h.b16 %v3912
          %v4084 = vunpack.c.l.b16 %v3913
          %v4085 = vunpack.c.h.b16 %v3913
          %v4086 = vunpack.c.l.b16 %v3914
          %v4087 = vunpack.c.h.b16 %v3914
          %v4088 = vunpack.c.l.b16 %v3915
          %v4089 = vunpack.c.h.b16 %v3915
          %v4090 = vunpack.c.l.b16 %v3916
          %v4091 = vunpack.c.h.b16 %v3916
          %v4092 = vunpack.c.l.b16 %v3917
          %v4093 = vunpack.c.h.b16 %v3917
          %v4094 = vunpack.c.l.b16 %v3918
          %v4095 = vunpack.c.h.b16 %v3918
          %v4096 = vunpack.c.l.b16 %v3919
          %v4097 = vunpack.c.h.b16 %v3919
          %v4098 = vunpack.c.l.b16 %v3920
          %v4099 = vunpack.c.h.b16 %v3920
          %v4100 = vunpack.c.l.b16 %v3921
          %v4101 = vunpack.c.h.b16 %v3921
          %v4102 = vunpack.c.l.b16 %v3922
          %v4103 = vunpack.c.h.b16 %v3922
          %v4104 = vunpack.c.l.b16 %v3923
          %v4105 = vunpack.c.h.b16 %v3923
          %v4106 = vunpack.c.l.b16 %v3924
          %v4107 = vunpack.c.h.b16 %v3924
          %v4108 = vunpack.c.l.b16 %v3925
          %v4109 = vunpack.c.h.b16 %v3925
          %v4110 = vunpack.c.l.b16 %v3926
          %v4111 = vunpack.c.h.b16 %v3926
          %v4112 = vunpack.c.l.b16 %v3927
          %v4113 = vunpack.c.h.b16 %v3927
          %v4114 = vunpack.c.l.b16 %v3928
          %v4115 = vunpack.c.h.b16 %v3928
          %v4116 = vunpack.c.l.b16 %v3929
          %v4117 = vunpack.c.h.b16 %v3929
          %v4118 = vunpack.c.l.b16 %v3930
          %v4119 = vunpack.c.h.b16 %v3930
          %v4120 = vunpack.c.l.b16 %v3931
          %v4121 = vunpack.c.h.b16 %v3931
          %v4122 = vunpack.c.l.b16 %v3932
          %v4123 = vunpack.c.h.b16 %v3932
          %v4124 = vunpack.c.l.b16 %v3933
          %v4125 = vunpack.c.h.b16 %v3933
          %v4126 = vunpack.c.l.b16 %v3934
          %v4127 = vunpack.c.h.b16 %v3934
          %v4128 = vunpack.c.l.b16 %v3935
          %v4129 = vunpack.c.h.b16 %v3935
          %v4130 = vunpack.c.l.b16 %v3936
          %v4131 = vunpack.c.h.b16 %v3936
          %v4132 = vunpack.c.l.b16 %v3937
          %v4133 = vunpack.c.h.b16 %v3937
          %v4134 = vunpack.c.l.b16 %v3938
          %v4135 = vunpack.c.h.b16 %v3938
          %v4136 = vunpack.c.l.b16 %v3939
          %v4137 = vunpack.c.h.b16 %v3939
          %v4138 = vunpack.c.l.b16 %v3940
          %v4139 = vunpack.c.h.b16 %v3940
          %v4140 = vunpack.c.l.b16 %v3941
          %v4141 = vunpack.c.h.b16 %v3941
          %v4142 = vunpack.c.l.b16 %v3942
          %v4143 = vunpack.c.h.b16 %v3942
          %v4144 = vunpack.c.l.b16 %v3943
          %v4145 = vunpack.c.h.b16 %v3943
          %v4146 = vunpack.c.l.b16 %v3944
          %v4147 = vunpack.c.h.b16 %v3944
          %v4148 = vunpack.c.l.b16 %v3945
          %v4149 = vunpack.c.h.b16 %v3945
          %v4150 = vpack.c.b16 %v4024, %v4022
          %v4151 = vpack.c.b16 %v4025, %v4023
          %v4152 = vpack.c.b16 %v4028, %v4026
          %v4153 = vpack.c.b16 %v4029, %v4027
          %v4154 = vpack.c.b16 %v4032, %v4030
          %v4155 = vpack.c.b16 %v4033, %v4031
          %v4156 = vpack.c.b16 %v4036, %v4034
          %v4157 = vpack.c.b16 %v4037, %v4035
          %v4158 = vpack.c.b16 %v4040, %v4038
          %v4159 = vpack.c.b16 %v4041, %v4039
          %v4160 = vpack.c.b16 %v4044, %v4042
          %v4161 = vpack.c.b16 %v4045, %v4043
          %v4162 = vpack.c.b16 %v4048, %v4046
          %v4163 = vpack.c.b16 %v4049, %v4047
          %v4164 = vpack.c.b16 %v4052, %v4050
          %v4165 = vpack.c.b16 %v4053, %v4051
          %v4166 = vpack.c.b16 %v4056, %v4054
          %v4167 = vpack.c.b16 %v4057, %v4055
          %v4168 = vpack.c.b16 %v4060, %v4058
          %v4169 = vpack.c.b16 %v4061, %v4059
          %v4170 = vpack.c.b16 %v4064, %v4062
          %v4171 = vpack.c.b16 %v4065, %v4063
          %v4172 = vpack.c.b16 %v4068, %v4066
          %v4173 = vpack.c.b16 %v4069, %v4067
          %v4174 = vpack.c.b16 %v4072, %v4070
          %v4175 = vpack.c.b16 %v4073, %v4071
          %v4176 = vpack.c.b16 %v4076, %v4074
          %v4177 = vpack.c.b16 %v4077, %v4075
          %v4178 = vpack.c.b16 %v4080, %v4078
          %v4179 = vpack.c.b16 %v4081, %v4079
          %v4180 = vpack.c.b16 %v4084, %v4082
          %v4181 = vpack.c.b16 %v4085, %v4083
          %v4182 = vpack.c.b16 %v4088, %v4086
          %v4183 = vpack.c.b16 %v4089, %v4087
          %v4184 = vpack.c.b16 %v4092, %v4090
          %v4185 = vpack.c.b16 %v4093, %v4091
          %v4186 = vpack.c.b16 %v4096, %v4094
          %v4187 = vpack.c.b16 %v4097, %v4095
          %v4188 = vpack.c.b16 %v4100, %v4098
          %v4189 = vpack.c.b16 %v4101, %v4099
          %v4190 = vpack.c.b16 %v4104, %v4102
          %v4191 = vpack.c.b16 %v4105, %v4103
          %v4192 = vpack.c.b16 %v4108, %v4106
          %v4193 = vpack.c.b16 %v4109, %v4107
          %v4194 = vpack.c.b16 %v4112, %v4110
          %v4195 = vpack.c.b16 %v4113, %v4111
          %v4196 = vpack.c.b16 %v4116, %v4114
          %v4197 = vpack.c.b16 %v4117, %v4115
          %v4198 = vpack.c.b16 %v4120, %v4118
          %v4199 = vpack.c.b16 %v4121, %v4119
          %v4200 = vpack.c.b16 %v4124, %v4122
          %v4201 = vpack.c.b16 %v4125, %v4123
          %v4202 = vpack.c.b16 %v4128, %v4126
          %v4203 = vpack.c.b16 %v4129, %v4127
          %v4204 = vpack.c.b16 %v4132, %v4130
          %v4205 = vpack.c.b16 %v4133, %v4131
          %v4206 = vpack.c.b16 %v4136, %v4134
          %v4207 = vpack.c.b16 %v4137, %v4135
          %v4208 = vpack.c.b16 %v4140, %v4138
          %v4209 = vpack.c.b16 %v4141, %v4139
          %v4210 = vpack.c.b16 %v4144, %v4142
          %v4211 = vpack.c.b16 %v4145, %v4143
          %v4212 = vpack.c.b16 %v4148, %v4146
          %v4213 = vpack.c.b16 %v4149, %v4147
          %4278 = vmatprep.subr.bf16.mxu0 %v4151
          %4279 = vmatpush1.bf16.msra.mxu0 %v4150
          %4280 = vmatprep.subr.bf16.mxu0 %v4153
          %4281 = vmatpush1.bf16.msra.mxu0 %v4152
          %4282 = vmatprep.subr.bf16.mxu0 %v4155
          %4283 = vmatpush1.bf16.msra.mxu0 %v4154
          %4284 = vmatprep.subr.bf16.mxu0 %v4157
          %4285 = vmatpush1.bf16.msra.mxu0 %v4156
          %4286 = vmatprep.subr.bf16.mxu0 %v4159
          %4287 = vmatpush1.bf16.msra.mxu0 %v4158
          %4288 = vmatprep.subr.bf16.mxu0 %v4161
          %4289 = vmatpush1.bf16.msra.mxu0 %v4160
          %4290 = vmatprep.subr.bf16.mxu0 %v4163
          %4291 = vmatpush1.bf16.msra.mxu0 %v4162
          %4292 = vmatprep.subr.bf16.mxu0 %v4165
          %4293 = vmatpush1.bf16.msra.mxu0 %v4164
          %4294 = vmatprep.subr.bf16.mxu0 %v4167
          %4295 = vmatpush1.bf16.msra.mxu0 %v4166
          %4296 = vmatprep.subr.bf16.mxu0 %v4169
          %4297 = vmatpush1.bf16.msra.mxu0 %v4168
          %4298 = vmatprep.subr.bf16.mxu0 %v4171
          %4299 = vmatpush1.bf16.msra.mxu0 %v4170
          %4300 = vmatprep.subr.bf16.mxu0 %v4173
          %4301 = vmatpush1.bf16.msra.mxu0 %v4172
          %4302 = vmatprep.subr.bf16.mxu0 %v4175
          %4303 = vmatpush1.bf16.msra.mxu0 %v4174
          %4304 = vmatprep.subr.bf16.mxu0 %v4177
          %4305 = vmatpush1.bf16.msra.mxu0 %v4176
          %4306 = vmatprep.subr.bf16.mxu0 %v4179
          %4307 = vmatpush1.bf16.msra.mxu0 %v4178
          %4308 = vmatprep.subr.bf16.mxu0 %v4181
          %4309 = vmatpush1.bf16.msra.mxu0 %v4180
          %4310 = vmatprep.mubr.bf16.mxu0 %v3879
          %4311 = vmatmul.mubr.bf16.gmra.mrb[0].mxu0 %v3878
          %v4312 = vpop.f32.mrb[0].mxu0
          %v4313 = vadd.f32 %v3951, %v4312
          %v4314 = vpop.f32.mrb[0].mxu0
          %v4315 = vadd.f32 %v3955, %v4314
          %v4316 = vpop.f32.mrb[0].mxu0
          %v4317 = vpop.f32.mrb[0].mxu0
          %4318 = vdwg.mxu0
          %4319 = vmatprep.subr.bf16.mxu0 %v4183
          %4320 = vmatpush1.bf16.msra.mxu0 %v4182
          %4321 = vmatprep.subr.bf16.mxu0 %v4185
          %4322 = vmatpush1.bf16.msra.mxu0 %v4184
          %4323 = vmatprep.subr.bf16.mxu0 %v4187
          %4324 = vmatpush1.bf16.msra.mxu0 %v4186
          %4325 = vmatprep.subr.bf16.mxu0 %v4189
          %4326 = vmatpush1.bf16.msra.mxu0 %v4188
          %4327 = vmatprep.subr.bf16.mxu0 %v4191
          %4328 = vmatpush1.bf16.msra.mxu0 %v4190
          %4329 = vmatprep.subr.bf16.mxu0 %v4193
          %4330 = vmatpush1.bf16.msra.mxu0 %v4192
          %4331 = vmatprep.subr.bf16.mxu0 %v4195
          %4332 = vmatpush1.bf16.msra.mxu0 %v4194
          %4333 = vmatprep.subr.bf16.mxu0 %v4197
          %4334 = vmatpush1.bf16.msra.mxu0 %v4196
          %4335 = vmatprep.subr.bf16.mxu0 %v4199
          %4336 = vmatpush1.bf16.msra.mxu0 %v4198
          %4337 = vmatprep.subr.bf16.mxu0 %v4201
          %4338 = vmatpush1.bf16.msra.mxu0 %v4200
          %4339 = vmatprep.subr.bf16.mxu0 %v4203
          %4340 = vmatpush1.bf16.msra.mxu0 %v4202
          %4341 = vmatprep.subr.bf16.mxu0 %v4205
          %4342 = vmatpush1.bf16.msra.mxu0 %v4204
          %4343 = vmatprep.subr.bf16.mxu0 %v4207
          %4344 = vmatpush1.bf16.msra.mxu0 %v4206
          %4345 = vmatprep.subr.bf16.mxu0 %v4209
          %4346 = vmatpush1.bf16.msra.mxu0 %v4208
          %4347 = vmatprep.subr.bf16.mxu0 %v4211
          %4348 = vmatpush1.bf16.msra.mxu0 %v4210
          %4349 = vmatprep.subr.bf16.mxu0 %v4213
          %4350 = vmatpush1.bf16.msra.mxu0 %v4212
          %4351 = vmatprep.mubr.bf16.mxu0 %v3881
          %4352 = vmatmul.mubr.bf16.gmra.mrb[0].mxu0 %v3880
          %v4353 = vpop.f32.mrb[0].mxu0
          %v4354 = vadd.f32 %v4313, %v4353
          %v4355 = vpop.f32.mrb[0].mxu0
          %v4356 = vadd.f32 %v4315, %v4355
          %v4357 = vpop.f32.mrb[0].mxu0
          %v4358 = vpop.f32.mrb[0].mxu0
          %4359 = vdwg.mxu0
          %vm4360 = vcmp.gt.f32.partialorder %v4354, 0.0
          %vm4361 = vcmp.gt.f32.partialorder %v4356, 0.0
          %v4362 = vmul.f32 %v4354, 0.2
          %v4363 = vmul.f32 %v4356, 0.2
          %v4364 = vsel %vm4360, %v4354, %v4362
          %v4365 = vsel %vm4361, %v4356, %v4363
          %v4366 = vpack.c.bf16 %v4364, %v4364
          %v4367 = vpack.c.bf16 %v4365, %v4365
          %v4368 = vld [vmem:[%s11] sm:$0xf]
          %v4369 = vld [vmem:[%s11 + $0x4] sm:$0xf]
          %v4370 = vld [vmem:[%s11 + $0x8] sm:$0xf]
          %v4371 = vld [vmem:[%s11 + $0xc] sm:$0xf]
          %v4372 = vld [vmem:[%s11 + $0x10] sm:$0xf]
          %v4373 = vld [vmem:[%s11 + $0x14] sm:$0xf]
          %v4374 = vld [vmem:[%s11 + $0x18] sm:$0xf]
          %v4375 = vld [vmem:[%s11 + $0x1c] sm:$0xf]
          %v4376 = vld [vmem:[%s11 + $0x20] sm:$0xf]
          %v4377 = vld [vmem:[%s11 + $0x24] sm:$0xf]
          %v4378 = vld [vmem:[%s11 + $0x28] sm:$0xf]
          %v4379 = vld [vmem:[%s11 + $0x2c] sm:$0xf]
          %v4380 = vld [vmem:[%s11 + $0x30] sm:$0xf]
          %v4381 = vld [vmem:[%s11 + $0x34] sm:$0xf]
          %v4382 = vld [vmem:[%s11 + $0x38] sm:$0xf]
          %v4383 = vld [vmem:[%s11 + $0x3c] sm:$0xf]
          %v4384 = vld [vmem:[%s11 + $0x40] sm:$0xf]
          %v4385 = vld [vmem:[%s11 + $0x44] sm:$0xf]
          %v4386 = vld [vmem:[%s11 + $0x48] sm:$0xf]
          %v4387 = vld [vmem:[%s11 + $0x4c] sm:$0xf]
          %v4388 = vld [vmem:[%s11 + $0x50] sm:$0xf]
          %v4389 = vld [vmem:[%s11 + $0x54] sm:$0xf]
          %v4390 = vld [vmem:[%s11 + $0x58] sm:$0xf]
          %v4391 = vld [vmem:[%s11 + $0x5c] sm:$0xf]
          %v4392 = vld [vmem:[%s11 + $0x60] sm:$0xf]
          %v4393 = vld [vmem:[%s11 + $0x64] sm:$0xf]
          %v4394 = vld [vmem:[%s11 + $0x68] sm:$0xf]
          %v4395 = vld [vmem:[%s11 + $0x6c] sm:$0xf]
          %v4396 = vld [vmem:[%s11 + $0x70] sm:$0xf]
          %v4397 = vld [vmem:[%s11 + $0x74] sm:$0xf]
          %v4398 = vld [vmem:[%s11 + $0x78] sm:$0xf]
          %v4399 = vld [vmem:[%s11 + $0x7c] sm:$0xf]
          %v4400 = vld [vmem:[%s12] sm:$0x1]
          %v4402 = vlaneseq
          %v4403 = vshrl.u32 %v4402, 7
          %v4404 = vsub.s32 0, %v4403
          %v4405 = vrot.slane %v4400, %v4404
          %v4439 = vunpack.c.l.b16 %v4368
          %v4440 = vunpack.c.l.b16 %v4369
          %v4441 = vunpack.c.l.b16 %v4370
          %v4442 = vunpack.c.l.b16 %v4371
          %v4443 = vunpack.c.l.b16 %v4372
          %v4444 = vunpack.c.l.b16 %v4373
          %v4445 = vunpack.c.l.b16 %v4374
          %v4446 = vunpack.c.l.b16 %v4375
          %v4447 = vunpack.c.l.b16 %v4376
          %v4448 = vunpack.c.l.b16 %v4377
          %v4449 = vunpack.c.l.b16 %v4378
          %v4450 = vunpack.c.l.b16 %v4379
          %v4451 = vunpack.c.l.b16 %v4380
          %v4452 = vunpack.c.l.b16 %v4381
          %v4453 = vunpack.c.l.b16 %v4382
          %v4454 = vunpack.c.l.b16 %v4383
          %v4455 = vunpack.c.l.b16 %v4384
          %v4456 = vunpack.c.l.b16 %v4385
          %v4457 = vunpack.c.l.b16 %v4386
          %v4458 = vunpack.c.l.b16 %v4387
          %v4459 = vunpack.c.l.b16 %v4388
          %v4460 = vunpack.c.l.b16 %v4389
          %v4461 = vunpack.c.l.b16 %v4390
          %v4462 = vunpack.c.l.b16 %v4391
          %v4463 = vunpack.c.l.b16 %v4392
          %v4464 = vunpack.c.l.b16 %v4393
          %v4465 = vunpack.c.l.b16 %v4394
          %v4466 = vunpack.c.l.b16 %v4395
          %v4467 = vunpack.c.l.b16 %v4396
          %v4468 = vunpack.c.l.b16 %v4397
          %v4469 = vunpack.c.l.b16 %v4398
          %v4470 = vunpack.c.l.b16 %v4399
          %v4471 = vpack.c.b16 %v4440, %v4439
          %v4472 = vpack.c.b16 %v4442, %v4441
          %v4473 = vpack.c.b16 %v4444, %v4443
          %v4474 = vpack.c.b16 %v4446, %v4445
          %v4475 = vpack.c.b16 %v4448, %v4447
          %v4476 = vpack.c.b16 %v4450, %v4449
          %v4477 = vpack.c.b16 %v4452, %v4451
          %v4478 = vpack.c.b16 %v4454, %v4453
          %v4479 = vpack.c.b16 %v4456, %v4455
          %v4480 = vpack.c.b16 %v4458, %v4457
          %v4481 = vpack.c.b16 %v4460, %v4459
          %v4482 = vpack.c.b16 %v4462, %v4461
          %v4483 = vpack.c.b16 %v4464, %v4463
          %v4484 = vpack.c.b16 %v4466, %v4465
          %v4485 = vpack.c.b16 %v4468, %v4467
          %v4486 = vpack.c.b16 %v4470, %v4469
          %4503 = vmatprep.subr.bf16.mxu0 0
          %4504 = vmatpush1.bf16.msra.mxu0 %v4471
          %4505 = vmatprep.subr.bf16.mxu0 0
          %4506 = vmatpush1.bf16.msra.mxu0 %v4472
          %4507 = vmatprep.subr.bf16.mxu0 0
          %4508 = vmatpush1.bf16.msra.mxu0 %v4473
          %4509 = vmatprep.subr.bf16.mxu0 0
          %4510 = vmatpush1.bf16.msra.mxu0 %v4474
          %4511 = vmatprep.subr.bf16.mxu0 0
          %4512 = vmatpush1.bf16.msra.mxu0 %v4475
          %4513 = vmatprep.subr.bf16.mxu0 0
          %4514 = vmatpush1.bf16.msra.mxu0 %v4476
          %4515 = vmatprep.subr.bf16.mxu0 0
          %4516 = vmatpush1.bf16.msra.mxu0 %v4477
          %4517 = vmatprep.subr.bf16.mxu0 0
          %4518 = vmatpush1.bf16.msra.mxu0 %v4478
          %4519 = vmatprep.subr.bf16.mxu0 0
          %4520 = vmatpush1.bf16.msra.mxu0 %v4479
          %4521 = vmatprep.subr.bf16.mxu0 0
          %4522 = vmatpush1.bf16.msra.mxu0 %v4480
          %4523 = vmatprep.subr.bf16.mxu0 0
          %4524 = vmatpush1.bf16.msra.mxu0 %v4481
          %4525 = vmatprep.subr.bf16.mxu0 0
          %4526 = vmatpush1.bf16.msra.mxu0 %v4482
          %4527 = vmatprep.subr.bf16.mxu0 0
          %4528 = vmatpush1.bf16.msra.mxu0 %v4483
          %4529 = vmatprep.subr.bf16.mxu0 0
          %4530 = vmatpush1.bf16.msra.mxu0 %v4484
          %4531 = vmatprep.subr.bf16.mxu0 0
          %4532 = vmatpush1.bf16.msra.mxu0 %v4485
          %4533 = vmatprep.subr.bf16.mxu0 0
          %4534 = vmatpush1.bf16.msra.mxu0 %v4486
          %4535 = vmatprep.mubr.bf16.mxu0 %v4367
          %4536 = vmatmul.mubr.bf16.gmra.mrb[0].mxu0 %v4366
          %v4537 = vpop.f32.mrb[0].mxu0
          %v4538 = vadd.f32 %v4405, %v4537
          %v4539 = vpop.f32.mrb[0].mxu0
          %v4540 = vpop.f32.mrb[0].mxu0
          %v4541 = vpop.f32.mrb[0].mxu0
          %4542 = vdwg.mxu0
          %4543 = vst [vmem:[%s525] sm:$0xff] %v4538
        $region100: #{tpu_custom_call.1} parent=71 // pred_fallthru
          _
        %s4544 = sand.u32 %s330, 1
        %s4545 = scalar_lea.sflag [#allocation5], %s4544
        %s4546 = sand.u32 %s330, 1
        %s4547 = smul.addr %s4546, 8
        %s4548 = scalar_lea.vmem [#allocation12], %s4547
        // Predicated region
        $region101: #{tpu_custom_call.1} parent=71 // pred_check
          %p4549 = pneg %p340
        $region102: #{tpu_custom_call.1} parent=71 // pred_check_branch
          %4551 = sbr.rel (%p4549) target = $region104
        $region103: #{tpu_custom_call.1} parent=71 // pred_region
          %s4553 = ssub.s32 128, 128
          %4554 = vsyncadd %s4545, %s4553
          %s4555 = smul.addr %s34, 128
          %s4556 = scalar_lea.hbm %s13, %s4555
          %s4558 = sshll.u32 %s4548, 4
          %s4559 = int_to_ptr.vmem [resolvable:$true] %s4558
          %4561 = dma.vmem_to_hbm [thread:$0]  %s4559, 128, %s4556, %s4545
        $region104: #{tpu_custom_call.1} parent=71 // pred_fallthru
          _
      $region72: #{tpu_custom_call.1} parent=5 // pred_fallthru
        _
      %p4562 = scmp.le.s32.totalorder 2, %s25
      // Predicated region
      $region105: #{tpu_custom_call.1} parent=5 // pred_check
        %p4563 = pneg %p4562
      $region106: #{tpu_custom_call.1} parent=5 // pred_check_branch
        %4565 = sbr.rel (%p4563) target = $region108
      $region107: #{tpu_custom_call.1} parent=5 // pred_region
        %s4566 = ssub.s32 %s25, 2
        // Predicated region
        $region109: #{tpu_custom_call.1} parent=107 // pred_check
          %p4567 = pneg %p346
        $region110: #{tpu_custom_call.1} parent=107 // pred_check_branch
          %4569 = sbr.rel (%p4567) target = $region112
        $region111: #{tpu_custom_call.1} parent=107 // pred_region
          %s4570 = sand.u32 %s331, 1
          %s4571 = scalar_lea.sflag [#allocation5], %s4570
          %s4572 = sand.u32 %s331, 1
          %s4573 = smul.addr %s4572, 8
          %s4574 = scalar_lea.vmem [#allocation12], %s4573
          %4575 = dma.done %s4571, 128
        $region112: #{tpu_custom_call.1} parent=107 // pred_fallthru
          _
      $region108: #{tpu_custom_call.1} parent=5 // pred_fallthru
        _
    $region6: #{tpu_custom_call.1} parent=1 // loop_footer
      %s29 = sadd.s32 1, %s25
    $region7: #{tpu_custom_call.1} parent=1 // loop_footer_branch
      %24 = sbr.rel target = $region3
    $region8: #{tpu_custom_call.1} parent=1 // loop_exit
      _
    %4576 = vsyncpa [#allocation4], 1
    %s4577 = scalar_lea.sflag [#allocation4], 1
    %4578 = vsyncpa %s4577, 1
    %4579 = vsyncpa [#allocation7], 1
    %4580 = vsyncpa [#allocation10], 1
    %4581 = vsyncpa [#allocation5], 1
    %s4582 = scalar_lea.sflag [#allocation5], 1
    %4583 = vsyncpa %s4582, 1

</llo_original>
